<compile_context>
chip_gen: v7x
topology: tpu7x:2x2x1
jax: 0.10.0
libtpu: 0.0.40
codegen_flags: <defaults>
</compile_context>

<pallas_src>
import functools

import jax
import jax.numpy as jnp
from jax.experimental import pallas as pl
from jax.experimental.pallas import tpu as pltpu

DILATIONS = (1, 3, 5)
PAD = max(DILATIONS)     # single padded buffer reused by all three branches
LANE = 128


def _round_up(v, m):
    return -(-v // m) * m


def _const_spec(shape):
    nd = len(shape)
    return pl.BlockSpec(shape, lambda b, nd=nd: (0,) * nd)


def _fusion_kernel(x_ref, wd_ref, bd_ref, w1_ref, b1_ref, w2_ref, b2_ref,
                   wm_ref, bm_ref, out_ref, xpad_ref, *, nb, H, W, C, Cp):
    """One grid step = `nb` batch elements, everything resident in VMEM."""
    HW = H * W
    M = nb * HW
    C3p = 3 * Cp

    # ---- in-kernel spatial zero padding (no padded HBM tensor needed) ----
    # Re-zero every step: scratch persists across grid steps and the grid may
    # be split across TensorCores, so "zero only at step 0" would be unsafe.
    xpad_ref[...] = jnp.zeros_like(xpad_ref)
    xpad_ref[:, PAD:PAD + H, PAD:PAD + W, :] = x_ref[...]
    xp = xpad_ref[...]                                   # (nb, Hp, Wp, C) f32

    bd = bd_ref[...]                                     # (3, Cp) f32

    # ---- three dilated 3x3 convs, each as a single im2col matmul ----
    feats = []
    for bidx, d in enumerate(DILATIONS):
        taps = []
        for ky in range(3):
            for kx in range(3):
                hs = PAD + (ky - 1) * d
                ws = PAD + (kx - 1) * d
                tap = xp[:, hs:hs + H, ws:ws + W, :].reshape(M, C)
                taps.append(tap.astype(jnp.bfloat16))    # bf16 before concat
        cols = jnp.concatenate(taps, axis=-1)            # (M, 9C) bf16
        acc = jnp.dot(cols, wd_ref[bidx],                # (M, Cp) f32 acc
                      preferred_element_type=jnp.float32)
        feats.append(jnp.maximum(acc + bd[bidx:bidx + 1, :], 0.0))  # conv+ReLU

    cat = jnp.concatenate(feats, axis=-1)                # (M, 3*Cp) f32

    # ---- SEBlock (f32): global average pool -> FC -> ReLU -> FC -> sigmoid ----
    if nb == 1:
        pooled = jnp.mean(cat, axis=0, keepdims=True)            # (1, 3Cp)
    else:
        pooled = jnp.mean(cat.reshape(nb, HW, C3p), axis=1)      # (nb, 3Cp)
    h1 = jnp.maximum(
        jnp.dot(pooled, w1_ref[...], preferred_element_type=jnp.float32)
        + b1_ref[...], 0.0)                                      # (nb, Rp)
    se = jax.nn.sigmoid(
        jnp.dot(h1, w2_ref[...], preferred_element_type=jnp.float32)
        + b2_ref[...])                                           # (nb, 3Cp)

    # ---- merge 1x1 conv (no activation): (HW, 3Cp) @ (3Cp, Cp) + bias ----
    wm = wm_ref[...]                                     # (3Cp, Cp) bf16
    bm = bm_ref[...]                                     # (1, Cp)  f32
    for i in range(nb):
        cat_i = cat if nb == 1 else cat[i * HW:(i + 1) * HW, :]
        se_i = se if nb == 1 else se[i:i + 1, :]
        weighted = (cat_i * se_i).astype(jnp.bfloat16)   # channel-wise scale
        merged = jnp.dot(weighted, wm,
                         preferred_element_type=jnp.float32) + bm
        out_ref[i] = merged.reshape(H, W, Cp)


def _pack_params(params, C, Cp, Rp):
    """Zero-pad / re-layout logical params to the lane-dense kernel layout."""
    f32 = jnp.float32
    C3 = 3 * C
    R = C3 // 16
    C3p = 3 * Cp

    # dilated 3x3 conv weights: (3, 9, C, C) -> (3, 9*C, Cp) bf16, bias (3, Cp)
    wd = params["wd"].reshape(3, 9 * C, C)
    wd_p = jnp.zeros((3, 9 * C, Cp), f32).at[:, :, :C].set(wd)
    wd_p = wd_p.astype(jnp.bfloat16)
    bd_p = jnp.zeros((3, Cp), f32).at[:, :C].set(params["bd"])

    # SE / merge weights: scatter each branch's C true channels to its
    # padded slot [b*Cp : b*Cp + C] inside the 3*Cp concat layout.
    w1_p = jnp.zeros((C3p, Rp), f32)
    w2_p = jnp.zeros((Rp, C3p), f32)
    b2_p = jnp.zeros((1, C3p), f32)
    wm_p = jnp.zeros((C3p, Cp), f32)
    for b in range(3):
        src = slice(b * C, (b + 1) * C)
        dst = slice(b * Cp, b * Cp + C)
        w1_p = w1_p.at[dst, :R].set(params["w1"][src, :])
        w2_p = w2_p.at[:R, dst].set(params["w2"][:, src])
        b2_p = b2_p.at[:, dst].set(params["b2"][:, src])
        wm_p = wm_p.at[dst, :C].set(params["wm"][src, :])
    b1_p = jnp.zeros((1, Rp), f32).at[:, :R].set(params["b1"])
    bm_p = jnp.zeros((1, Cp), f32).at[:, :C].set(params["bm"])
    return (wd_p, bd_p, w1_p, b1_p, w2_p, b2_p, wm_p.astype(jnp.bfloat16), bm_p)


def multi_branch_fusion(x_nhwc, params, *, nb=1):
    """x_nhwc: (N, H, W, C) float32 -> (N, H, W, C) float32."""
    N, H, W, C = x_nhwc.shape
    assert N % nb == 0
    Cp = _round_up(C, LANE)
    R = (3 * C) // 16
    Rp = _round_up(max(R, 1), LANE)
    Hp, Wp = H + 2 * PAD, W + 2 * PAD

    packed = _pack_params(params, C, Cp, Rp)

    kernel = functools.partial(_fusion_kernel, nb=nb, H=H, W=W, C=C, Cp=Cp)
    out_padded = pl.pallas_call(
        kernel,
        out_shape=jax.ShapeDtypeStruct((N, H, W, Cp), jnp.float32),
        grid_spec=pltpu.PrefetchScalarGridSpec(
            num_scalar_prefetch=0,
            grid=(N // nb,),
            in_specs=[pl.BlockSpec((nb, H, W, C), lambda b: (b, 0, 0, 0))]
                     + [_const_spec(p.shape) for p in packed],
            out_specs=pl.BlockSpec((nb, H, W, Cp), lambda b: (b, 0, 0, 0)),
            scratch_shapes=[pltpu.VMEM((nb, Hp, Wp, C), jnp.float32)],
        ),
        compiler_params=pltpu.CompilerParams(
            dimension_semantics=("parallel",),
            vmem_limit_bytes=32 * 1024 * 1024),
    )(x_nhwc, *packed)
    # Only pay for the channel un-pad when padding was actually added.
    return out_padded if Cp == C else out_padded[..., :C]


def make_params(key, feat_dim):
    """Deterministic synthetic parameters (shapes follow the PyTorch module)."""
    C = feat_dim
    C3 = 3 * C
    R = C3 // 16                                  # SEBlock reduction (r=16)
    ks = jax.random.split(key, 9)
    scale = 0.1
    return {
        # dilated 3x3 convs: (branch, tap=ky*3+kx, C_in, C_out), bias (branch, C)
        "wd": scale * jax.random.normal(ks[0], (3, 9, C, C), jnp.float32),
        "bd": scale * jax.random.normal(ks[1], (3, C), jnp.float32),
        # SEBlock linears
        "w1": scale * jax.random.normal(ks[2], (C3, R), jnp.float32),
        "b1": scale * jax.random.normal(ks[3], (1, R), jnp.float32),
        "w2": scale * jax.random.normal(ks[4], (R, C3), jnp.float32),
        "b2": scale * jax.random.normal(ks[5], (1, C3), jnp.float32),
        # merge 1x1 conv (no activation)
        "wm": scale * jax.random.normal(ks[6], (C3, C), jnp.float32),
        "bm": scale * jax.random.normal(ks[7], (1, C), jnp.float32),
    }


def reference(x_nhwc, params):
    """Pure-JAX reference (mirrors the PyTorch forward) for correctness check."""
    N, H, W, C = x_nhwc.shape
    feats = []
    for i, d in enumerate(DILATIONS):
        w = params["wd"][i].reshape(3, 3, C, C)   # HWIO
        y = jax.lax.conv_general_dilated(
            x_nhwc, w, window_strides=(1, 1),
            padding=[(d, d), (d, d)], rhs_dilation=(d, d),
            dimension_numbers=("NHWC", "HWIO", "NHWC"))
        y = jnp.maximum(y + params["bd"][i][None, None, None, :], 0.0)
        feats.append(y)
    cat = jnp.concatenate(feats, axis=-1)          # (N, H, W, 3C)
    pooled = cat.mean(axis=(1, 2))                 # (N, 3C)
    h = jnp.maximum(pooled @ params["w1"] + params["b1"], 0.0)
    se = jax.nn.sigmoid(h @ params["w2"] + params["b2"])
    weighted = cat * se[:, None, None, :]
    return weighted @ params["wm"] + params["bm"]


if __name__ == "__main__":
    N, FEAT_DIM, H, W = 2, 16, 16, 16              # SE hidden = 48 // 16 = 3
    key = jax.random.PRNGKey(0)
    kx, kp = jax.random.split(key)
    x = jax.random.normal(kx, (N, H, W, FEAT_DIM), jnp.float32)
    params = make_params(kp, FEAT_DIM)

    out = jax.block_until_ready(multi_branch_fusion(x, params))
    ref = jax.block_until_ready(reference(x, params))

    assert out.shape == (N, H, W, FEAT_DIM)
    max_err = float(jnp.max(jnp.abs(out - ref)))
    # bf16 MXU operands (f32 accumulation) -> loosened tolerance vs. pure f32.
    assert jnp.allclose(out, ref, atol=5e-2, rtol=5e-2), max_err

    print("KERNEL_OK")
</pallas_src>

<mosaic_0001>
module attributes {stable_mosaic.version = 11 : i64} {
  func.func @_fusion_kernel(%arg0: i32, %arg1: memref<1x16x16x16xf32, #tpu.memory_space<vmem>>, %arg2: memref<3x144x128xbf16, #tpu.memory_space<vmem>>, %arg3: memref<3x128xf32, #tpu.memory_space<vmem>>, %arg4: memref<384x128xf32, #tpu.memory_space<vmem>>, %arg5: memref<1x128xf32, #tpu.memory_space<vmem>>, %arg6: memref<128x384xf32, #tpu.memory_space<vmem>>, %arg7: memref<1x384xf32, #tpu.memory_space<vmem>>, %arg8: memref<384x128xbf16, #tpu.memory_space<vmem>>, %arg9: memref<1x128xf32, #tpu.memory_space<vmem>>, %arg10: memref<1x16x16x128xf32, #tpu.memory_space<vmem>>, %arg11: memref<1x26x26x16xf32, #tpu.memory_space<vmem>>) attributes {dimension_semantics = [#tpu.dimension_semantics<parallel>], iteration_bounds = array<i64: 2>, scalar_prefetch = 0 : i64, scratch_operands = 1 : i64, tpu.core_type = #tpu.core_type<tc>, window_params = [{transform_indices = @transform_0, window_bounds = array<i64: 1, 16, 16, 16>}, {pipeline_mode = #tpu.pipeline_mode<synchronous>, transform_indices = @transform_1, window_bounds = array<i64: 3, 144, 128>}, {pipeline_mode = #tpu.pipeline_mode<synchronous>, transform_indices = @transform_2, window_bounds = array<i64: 3, 128>}, {pipeline_mode = #tpu.pipeline_mode<synchronous>, transform_indices = @transform_3, window_bounds = array<i64: 384, 128>}, {pipeline_mode = #tpu.pipeline_mode<synchronous>, transform_indices = @transform_4, window_bounds = array<i64: 1, 128>}, {pipeline_mode = #tpu.pipeline_mode<synchronous>, transform_indices = @transform_5, window_bounds = array<i64: 128, 384>}, {pipeline_mode = #tpu.pipeline_mode<synchronous>, transform_indices = @transform_6, window_bounds = array<i64: 1, 384>}, {pipeline_mode = #tpu.pipeline_mode<synchronous>, transform_indices = @transform_7, window_bounds = array<i64: 384, 128>}, {pipeline_mode = #tpu.pipeline_mode<synchronous>, transform_indices = @transform_8, window_bounds = array<i64: 1, 128>}, {transform_indices = @transform_9, window_bounds = array<i64: 1, 16, 16, 128>}]} {
    %cst = arith.constant 0.000000e+00 : f32
    %0 = vector.broadcast %cst : f32 to vector<1x26x26x16xf32>
    %c0 = arith.constant 0 : index
    %c0_0 = arith.constant 0 : index
    %c0_1 = arith.constant 0 : index
    %c0_2 = arith.constant 0 : index
    %1 = vector.load %arg11[%c0, %c0_0, %c0_1, %c0_2] : memref<1x26x26x16xf32, #tpu.memory_space<vmem>>, vector<1x26x26x16xf32>
    tpu.vector_store %arg11[%c0, %c0_0, %c0_1, %c0_2], %0 {strides = array<i32>} : memref<1x26x26x16xf32, #tpu.memory_space<vmem>>, vector<1x26x26x16xf32>,
    %c0_3 = arith.constant 0 : index
    %c0_4 = arith.constant 0 : index
    %c0_5 = arith.constant 0 : index
    %c0_6 = arith.constant 0 : index
    %2 = vector.load %arg1[%c0_3, %c0_4, %c0_5, %c0_6] : memref<1x16x16x16xf32, #tpu.memory_space<vmem>>, vector<1x16x16x16xf32>
    %c0_7 = arith.constant 0 : index
    %c5 = arith.constant 5 : index
    %c5_8 = arith.constant 5 : index
    %c0_9 = arith.constant 0 : index
    %3 = vector.load %arg11[%c0_7, %c5, %c5_8, %c0_9] : memref<1x26x26x16xf32, #tpu.memory_space<vmem>>, vector<1x16x16x16xf32>
    tpu.vector_store %arg11[%c0_7, %c5, %c5_8, %c0_9], %2 {strides = array<i32>} : memref<1x26x26x16xf32, #tpu.memory_space<vmem>>, vector<1x16x16x16xf32>,
    %c0_10 = arith.constant 0 : index
    %c0_11 = arith.constant 0 : index
    %c0_12 = arith.constant 0 : index
    %c0_13 = arith.constant 0 : index
    %4 = vector.load %arg11[%c0_10, %c0_11, %c0_12, %c0_13] : memref<1x26x26x16xf32, #tpu.memory_space<vmem>>, vector<1x26x26x16xf32>
    %c0_14 = arith.constant 0 : index
    %c0_15 = arith.constant 0 : index
    %5 = vector.load %arg3[%c0_14, %c0_15] : memref<3x128xf32, #tpu.memory_space<vmem>>, vector<3x128xf32>
    %6 = vector.extract_strided_slice %4 {offsets = [0, 4, 4, 0], sizes = [1, 16, 16, 16], strides = [1, 1, 1, 1]} : vector<1x26x26x16xf32> to vector<1x16x16x16xf32>
    %7 = vector.shape_cast %6 : vector<1x16x16x16xf32> to vector<256x16xf32>
    %8 = arith.truncf %7 : vector<256x16xf32> to vector<256x16xbf16>
    %9 = vector.extract_strided_slice %4 {offsets = [0, 4, 5, 0], sizes = [1, 16, 16, 16], strides = [1, 1, 1, 1]} : vector<1x26x26x16xf32> to vector<1x16x16x16xf32>
    %10 = vector.shape_cast %9 : vector<1x16x16x16xf32> to vector<256x16xf32>
    %11 = arith.truncf %10 : vector<256x16xf32> to vector<256x16xbf16>
    %12 = vector.extract_strided_slice %4 {offsets = [0, 4, 6, 0], sizes = [1, 16, 16, 16], strides = [1, 1, 1, 1]} : vector<1x26x26x16xf32> to vector<1x16x16x16xf32>
    %13 = vector.shape_cast %12 : vector<1x16x16x16xf32> to vector<256x16xf32>
    %14 = arith.truncf %13 : vector<256x16xf32> to vector<256x16xbf16>
    %15 = vector.extract_strided_slice %4 {offsets = [0, 5, 4, 0], sizes = [1, 16, 16, 16], strides = [1, 1, 1, 1]} : vector<1x26x26x16xf32> to vector<1x16x16x16xf32>
    %16 = vector.shape_cast %15 : vector<1x16x16x16xf32> to vector<256x16xf32>
    %17 = arith.truncf %16 : vector<256x16xf32> to vector<256x16xbf16>
    %18 = vector.extract_strided_slice %4 {offsets = [0, 5, 5, 0], sizes = [1, 16, 16, 16], strides = [1, 1, 1, 1]} : vector<1x26x26x16xf32> to vector<1x16x16x16xf32>
    %19 = vector.shape_cast %18 : vector<1x16x16x16xf32> to vector<256x16xf32>
    %20 = arith.truncf %19 : vector<256x16xf32> to vector<256x16xbf16>
    %21 = vector.extract_strided_slice %4 {offsets = [0, 5, 6, 0], sizes = [1, 16, 16, 16], strides = [1, 1, 1, 1]} : vector<1x26x26x16xf32> to vector<1x16x16x16xf32>
    %22 = vector.shape_cast %21 : vector<1x16x16x16xf32> to vector<256x16xf32>
    %23 = arith.truncf %22 : vector<256x16xf32> to vector<256x16xbf16>
    %24 = vector.extract_strided_slice %4 {offsets = [0, 6, 4, 0], sizes = [1, 16, 16, 16], strides = [1, 1, 1, 1]} : vector<1x26x26x16xf32> to vector<1x16x16x16xf32>
    %25 = vector.shape_cast %24 : vector<1x16x16x16xf32> to vector<256x16xf32>
    %26 = arith.truncf %25 : vector<256x16xf32> to vector<256x16xbf16>
    %27 = vector.extract_strided_slice %4 {offsets = [0, 6, 5, 0], sizes = [1, 16, 16, 16], strides = [1, 1, 1, 1]} : vector<1x26x26x16xf32> to vector<1x16x16x16xf32>
    %28 = vector.shape_cast %27 : vector<1x16x16x16xf32> to vector<256x16xf32>
    %29 = arith.truncf %28 : vector<256x16xf32> to vector<256x16xbf16>
    %30 = vector.extract_strided_slice %4 {offsets = [0, 6, 6, 0], sizes = [1, 16, 16, 16], strides = [1, 1, 1, 1]} : vector<1x26x26x16xf32> to vector<1x16x16x16xf32>
    %31 = vector.shape_cast %30 : vector<1x16x16x16xf32> to vector<256x16xf32>
    %32 = arith.truncf %31 : vector<256x16xf32> to vector<256x16xbf16>
    %33 = tpu.concatenate %8, %11, %14, %17, %20, %23, %26, %29, %32 in 1 : vector<256x16xbf16>, vector<256x16xbf16>, vector<256x16xbf16>, vector<256x16xbf16>, vector<256x16xbf16>, vector<256x16xbf16>, vector<256x16xbf16>, vector<256x16xbf16>, vector<256x16xbf16> -> vector<256x144xbf16>
    %c0_16 = arith.constant 0 : index
    %c0_17 = arith.constant 0 : index
    %c0_18 = arith.constant 0 : index
    %34 = vector.load %arg2[%c0_16, %c0_17, %c0_18] : memref<3x144x128xbf16, #tpu.memory_space<vmem>>, vector<1x144x128xbf16>
    %35 = vector.shape_cast %34 : vector<1x144x128xbf16> to vector<144x128xbf16>
    %cst_19 = arith.constant dense<0.000000e+00> : vector<256x128xf32>
    %36 = tpu.matmul %33, %35, %cst_19 {dimension_numbers = #tpu.dot_dimension_numbers<[1], [0], [0], [1], [0, 0, 1, 1], [], []>} : vector<256x144xbf16>, vector<144x128xbf16>, vector<256x128xf32> -> vector<256x128xf32>
    %37 = vector.extract_strided_slice %5 {offsets = [0, 0], sizes = [1, 128], strides = [1, 1]} : vector<3x128xf32> to vector<1x128xf32>
    %38 = vector.broadcast %37 : vector<1x128xf32> to vector<256x128xf32>
    %39 = arith.addf %36, %38 : vector<256x128xf32>
    %cst_20 = arith.constant 0.000000e+00 : f32
    %40 = vector.broadcast %cst_20 : f32 to vector<256x128xf32>
    %41 = arith.maximumf %39, %40 : vector<256x128xf32>
    %42 = vector.extract_strided_slice %4 {offsets = [0, 2, 2, 0], sizes = [1, 16, 16, 16], strides = [1, 1, 1, 1]} : vector<1x26x26x16xf32> to vector<1x16x16x16xf32>
    %43 = vector.shape_cast %42 : vector<1x16x16x16xf32> to vector<256x16xf32>
    %44 = arith.truncf %43 : vector<256x16xf32> to vector<256x16xbf16>
    %45 = vector.extract_strided_slice %4 {offsets = [0, 2, 5, 0], sizes = [1, 16, 16, 16], strides = [1, 1, 1, 1]} : vector<1x26x26x16xf32> to vector<1x16x16x16xf32>
    %46 = vector.shape_cast %45 : vector<1x16x16x16xf32> to vector<256x16xf32>
    %47 = arith.truncf %46 : vector<256x16xf32> to vector<256x16xbf16>
    %48 = vector.extract_strided_slice %4 {offsets = [0, 2, 8, 0], sizes = [1, 16, 16, 16], strides = [1, 1, 1, 1]} : vector<1x26x26x16xf32> to vector<1x16x16x16xf32>
    %49 = vector.shape_cast %48 : vector<1x16x16x16xf32> to vector<256x16xf32>
    %50 = arith.truncf %49 : vector<256x16xf32> to vector<256x16xbf16>
    %51 = vector.extract_strided_slice %4 {offsets = [0, 5, 2, 0], sizes = [1, 16, 16, 16], strides = [1, 1, 1, 1]} : vector<1x26x26x16xf32> to vector<1x16x16x16xf32>
    %52 = vector.shape_cast %51 : vector<1x16x16x16xf32> to vector<256x16xf32>
    %53 = arith.truncf %52 : vector<256x16xf32> to vector<256x16xbf16>
    %54 = vector.extract_strided_slice %4 {offsets = [0, 5, 5, 0], sizes = [1, 16, 16, 16], strides = [1, 1, 1, 1]} : vector<1x26x26x16xf32> to vector<1x16x16x16xf32>
    %55 = vector.shape_cast %54 : vector<1x16x16x16xf32> to vector<256x16xf32>
    %56 = arith.truncf %55 : vector<256x16xf32> to vector<256x16xbf16>
    %57 = vector.extract_strided_slice %4 {offsets = [0, 5, 8, 0], sizes = [1, 16, 16, 16], strides = [1, 1, 1, 1]} : vector<1x26x26x16xf32> to vector<1x16x16x16xf32>
    %58 = vector.shape_cast %57 : vector<1x16x16x16xf32> to vector<256x16xf32>
    %59 = arith.truncf %58 : vector<256x16xf32> to vector<256x16xbf16>
    %60 = vector.extract_strided_slice %4 {offsets = [0, 8, 2, 0], sizes = [1, 16, 16, 16], strides = [1, 1, 1, 1]} : vector<1x26x26x16xf32> to vector<1x16x16x16xf32>
    %61 = vector.shape_cast %60 : vector<1x16x16x16xf32> to vector<256x16xf32>
    %62 = arith.truncf %61 : vector<256x16xf32> to vector<256x16xbf16>
    %63 = vector.extract_strided_slice %4 {offsets = [0, 8, 5, 0], sizes = [1, 16, 16, 16], strides = [1, 1, 1, 1]} : vector<1x26x26x16xf32> to vector<1x16x16x16xf32>
    %64 = vector.shape_cast %63 : vector<1x16x16x16xf32> to vector<256x16xf32>
    %65 = arith.truncf %64 : vector<256x16xf32> to vector<256x16xbf16>
    %66 = vector.extract_strided_slice %4 {offsets = [0, 8, 8, 0], sizes = [1, 16, 16, 16], strides = [1, 1, 1, 1]} : vector<1x26x26x16xf32> to vector<1x16x16x16xf32>
    %67 = vector.shape_cast %66 : vector<1x16x16x16xf32> to vector<256x16xf32>
    %68 = arith.truncf %67 : vector<256x16xf32> to vector<256x16xbf16>
    %69 = tpu.concatenate %44, %47, %50, %53, %56, %59, %62, %65, %68 in 1 : vector<256x16xbf16>, vector<256x16xbf16>, vector<256x16xbf16>, vector<256x16xbf16>, vector<256x16xbf16>, vector<256x16xbf16>, vector<256x16xbf16>, vector<256x16xbf16>, vector<256x16xbf16> -> vector<256x144xbf16>
    %c1 = arith.constant 1 : index
    %c0_21 = arith.constant 0 : index
    %c0_22 = arith.constant 0 : index
    %70 = vector.load %arg2[%c1, %c0_21, %c0_22] : memref<3x144x128xbf16, #tpu.memory_space<vmem>>, vector<1x144x128xbf16>
    %71 = vector.shape_cast %70 : vector<1x144x128xbf16> to vector<144x128xbf16>
    %cst_23 = arith.constant dense<0.000000e+00> : vector<256x128xf32>
    %72 = tpu.matmul %69, %71, %cst_23 {dimension_numbers = #tpu.dot_dimension_numbers<[1], [0], [0], [1], [0, 0, 1, 1], [], []>} : vector<256x144xbf16>, vector<144x128xbf16>, vector<256x128xf32> -> vector<256x128xf32>
    %73 = vector.extract_strided_slice %5 {offsets = [1, 0], sizes = [1, 128], strides = [1, 1]} : vector<3x128xf32> to vector<1x128xf32>
    %74 = vector.broadcast %73 : vector<1x128xf32> to vector<256x128xf32>
    %75 = arith.addf %72, %74 : vector<256x128xf32>
    %cst_24 = arith.constant 0.000000e+00 : f32
    %76 = vector.broadcast %cst_24 : f32 to vector<256x128xf32>
    %77 = arith.maximumf %75, %76 : vector<256x128xf32>
    %78 = vector.extract_strided_slice %4 {offsets = [0, 0, 0, 0], sizes = [1, 16, 16, 16], strides = [1, 1, 1, 1]} : vector<1x26x26x16xf32> to vector<1x16x16x16xf32>
    %79 = vector.shape_cast %78 : vector<1x16x16x16xf32> to vector<256x16xf32>
    %80 = arith.truncf %79 : vector<256x16xf32> to vector<256x16xbf16>
    %81 = vector.extract_strided_slice %4 {offsets = [0, 0, 5, 0], sizes = [1, 16, 16, 16], strides = [1, 1, 1, 1]} : vector<1x26x26x16xf32> to vector<1x16x16x16xf32>
    %82 = vector.shape_cast %81 : vector<1x16x16x16xf32> to vector<256x16xf32>
    %83 = arith.truncf %82 : vector<256x16xf32> to vector<256x16xbf16>
    %84 = vector.extract_strided_slice %4 {offsets = [0, 0, 10, 0], sizes = [1, 16, 16, 16], strides = [1, 1, 1, 1]} : vector<1x26x26x16xf32> to vector<1x16x16x16xf32>
    %85 = vector.shape_cast %84 : vector<1x16x16x16xf32> to vector<256x16xf32>
    %86 = arith.truncf %85 : vector<256x16xf32> to vector<256x16xbf16>
    %87 = vector.extract_strided_slice %4 {offsets = [0, 5, 0, 0], sizes = [1, 16, 16, 16], strides = [1, 1, 1, 1]} : vector<1x26x26x16xf32> to vector<1x16x16x16xf32>
    %88 = vector.shape_cast %87 : vector<1x16x16x16xf32> to vector<256x16xf32>
    %89 = arith.truncf %88 : vector<256x16xf32> to vector<256x16xbf16>
    %90 = vector.extract_strided_slice %4 {offsets = [0, 5, 5, 0], sizes = [1, 16, 16, 16], strides = [1, 1, 1, 1]} : vector<1x26x26x16xf32> to vector<1x16x16x16xf32>
    %91 = vector.shape_cast %90 : vector<1x16x16x16xf32> to vector<256x16xf32>
    %92 = arith.truncf %91 : vector<256x16xf32> to vector<256x16xbf16>
    %93 = vector.extract_strided_slice %4 {offsets = [0, 5, 10, 0], sizes = [1, 16, 16, 16], strides = [1, 1, 1, 1]} : vector<1x26x26x16xf32> to vector<1x16x16x16xf32>
    %94 = vector.shape_cast %93 : vector<1x16x16x16xf32> to vector<256x16xf32>
    %95 = arith.truncf %94 : vector<256x16xf32> to vector<256x16xbf16>
    %96 = vector.extract_strided_slice %4 {offsets = [0, 10, 0, 0], sizes = [1, 16, 16, 16], strides = [1, 1, 1, 1]} : vector<1x26x26x16xf32> to vector<1x16x16x16xf32>
    %97 = vector.shape_cast %96 : vector<1x16x16x16xf32> to vector<256x16xf32>
    %98 = arith.truncf %97 : vector<256x16xf32> to vector<256x16xbf16>
    %99 = vector.extract_strided_slice %4 {offsets = [0, 10, 5, 0], sizes = [1, 16, 16, 16], strides = [1, 1, 1, 1]} : vector<1x26x26x16xf32> to vector<1x16x16x16xf32>
    %100 = vector.shape_cast %99 : vector<1x16x16x16xf32> to vector<256x16xf32>
    %101 = arith.truncf %100 : vector<256x16xf32> to vector<256x16xbf16>
    %102 = vector.extract_strided_slice %4 {offsets = [0, 10, 10, 0], sizes = [1, 16, 16, 16], strides = [1, 1, 1, 1]} : vector<1x26x26x16xf32> to vector<1x16x16x16xf32>
    %103 = vector.shape_cast %102 : vector<1x16x16x16xf32> to vector<256x16xf32>
    %104 = arith.truncf %103 : vector<256x16xf32> to vector<256x16xbf16>
    %105 = tpu.concatenate %80, %83, %86, %89, %92, %95, %98, %101, %104 in 1 : vector<256x16xbf16>, vector<256x16xbf16>, vector<256x16xbf16>, vector<256x16xbf16>, vector<256x16xbf16>, vector<256x16xbf16>, vector<256x16xbf16>, vector<256x16xbf16>, vector<256x16xbf16> -> vector<256x144xbf16>
    %c2 = arith.constant 2 : index
    %c0_25 = arith.constant 0 : index
    %c0_26 = arith.constant 0 : index
    %106 = vector.load %arg2[%c2, %c0_25, %c0_26] : memref<3x144x128xbf16, #tpu.memory_space<vmem>>, vector<1x144x128xbf16>
    %107 = vector.shape_cast %106 : vector<1x144x128xbf16> to vector<144x128xbf16>
    %cst_27 = arith.constant dense<0.000000e+00> : vector<256x128xf32>
    %108 = tpu.matmul %105, %107, %cst_27 {dimension_numbers = #tpu.dot_dimension_numbers<[1], [0], [0], [1], [0, 0, 1, 1], [], []>} : vector<256x144xbf16>, vector<144x128xbf16>, vector<256x128xf32> -> vector<256x128xf32>
    %109 = vector.extract_strided_slice %5 {offsets = [2, 0], sizes = [1, 128], strides = [1, 1]} : vector<3x128xf32> to vector<1x128xf32>
    %110 = vector.broadcast %109 : vector<1x128xf32> to vector<256x128xf32>
    %111 = arith.addf %108, %110 : vector<256x128xf32>
    %cst_28 = arith.constant 0.000000e+00 : f32
    %112 = vector.broadcast %cst_28 : f32 to vector<256x128xf32>
    %113 = arith.maximumf %111, %112 : vector<256x128xf32>
    %114 = tpu.concatenate %41, %77, %113 in 1 : vector<256x128xf32>, vector<256x128xf32>, vector<256x128xf32> -> vector<256x384xf32>
    %cst_29 = arith.constant dense<0.000000e+00> : vector<384xf32>
    %115 = vector.multi_reduction <add>, %114, %cst_29 [0] : vector<256x384xf32> to vector<384xf32>
    %116 = vector.shape_cast %115 : vector<384xf32> to vector<1x384xf32>
    %cst_30 = arith.constant 2.560000e+02 : f32
    %117 = vector.broadcast %cst_30 : f32 to vector<1x384xf32>
    %118 = arith.divf %116, %117 : vector<1x384xf32>
    %c0_31 = arith.constant 0 : index
    %c0_32 = arith.constant 0 : index
    %119 = vector.load %arg4[%c0_31, %c0_32] : memref<384x128xf32, #tpu.memory_space<vmem>>, vector<384x128xf32>
    %cst_33 = arith.constant dense<0.000000e+00> : vector<1x128xf32>
    %120 = tpu.matmul %118, %119, %cst_33 {dimension_numbers = #tpu.dot_dimension_numbers<[1], [0], [0], [1], [0, 0, 1, 1], [], []>} : vector<1x384xf32>, vector<384x128xf32>, vector<1x128xf32> -> vector<1x128xf32>
    %c0_34 = arith.constant 0 : index
    %c0_35 = arith.constant 0 : index
    %121 = vector.load %arg5[%c0_34, %c0_35] : memref<1x128xf32, #tpu.memory_space<vmem>>, vector<1x128xf32>
    %122 = arith.addf %120, %121 : vector<1x128xf32>
    %cst_36 = arith.constant 0.000000e+00 : f32
    %123 = vector.broadcast %cst_36 : f32 to vector<1x128xf32>
    %124 = arith.maximumf %122, %123 : vector<1x128xf32>
    %c0_37 = arith.constant 0 : index
    %c0_38 = arith.constant 0 : index
    %125 = vector.load %arg6[%c0_37, %c0_38] : memref<128x384xf32, #tpu.memory_space<vmem>>, vector<128x384xf32>
    %cst_39 = arith.constant dense<0.000000e+00> : vector<1x384xf32>
    %126 = tpu.matmul %124, %125, %cst_39 {dimension_numbers = #tpu.dot_dimension_numbers<[1], [0], [0], [1], [0, 0, 1, 1], [], []>} : vector<1x128xf32>, vector<128x384xf32>, vector<1x384xf32> -> vector<1x384xf32>
    %c0_40 = arith.constant 0 : index
    %c0_41 = arith.constant 0 : index
    %127 = vector.load %arg7[%c0_40, %c0_41] : memref<1x384xf32, #tpu.memory_space<vmem>>, vector<1x384xf32>
    %128 = arith.addf %126, %127 : vector<1x384xf32>
    %129 = arith.negf %128 : vector<1x384xf32>
    %130 = math.exp %129 : vector<1x384xf32>
    %cst_42 = arith.constant 1.000000e+00 : f32
    %131 = vector.broadcast %cst_42 : f32 to vector<1x384xf32>
    %132 = arith.addf %131, %130 : vector<1x384xf32>
    %133 = arith.divf %131, %132 : vector<1x384xf32>
    %c0_43 = arith.constant 0 : index
    %c0_44 = arith.constant 0 : index
    %134 = vector.load %arg8[%c0_43, %c0_44] : memref<384x128xbf16, #tpu.memory_space<vmem>>, vector<384x128xbf16>
    %c0_45 = arith.constant 0 : index
    %c0_46 = arith.constant 0 : index
    %135 = vector.load %arg9[%c0_45, %c0_46] : memref<1x128xf32, #tpu.memory_space<vmem>>, vector<1x128xf32>
    %136 = vector.broadcast %133 : vector<1x384xf32> to vector<256x384xf32>
    %137 = arith.mulf %114, %136 : vector<256x384xf32>
    %138 = arith.truncf %137 : vector<256x384xf32> to vector<256x384xbf16>
    %cst_47 = arith.constant dense<0.000000e+00> : vector<256x128xf32>
    %139 = tpu.matmul %138, %134, %cst_47 {dimension_numbers = #tpu.dot_dimension_numbers<[1], [0], [0], [1], [0, 0, 1, 1], [], []>} : vector<256x384xbf16>, vector<384x128xbf16>, vector<256x128xf32> -> vector<256x128xf32>
    %140 = vector.broadcast %135 : vector<1x128xf32> to vector<256x128xf32>
    %141 = arith.addf %139, %140 : vector<256x128xf32>
    %142 = vector.shape_cast %141 : vector<256x128xf32> to vector<16x16x128xf32>
    %c0_48 = arith.constant 0 : index
    %c0_49 = arith.constant 0 : index
    %c0_50 = arith.constant 0 : index
    %c0_51 = arith.constant 0 : index
    %143 = vector.load %arg10[%c0_48, %c0_49, %c0_50, %c0_51] : memref<1x16x16x128xf32, #tpu.memory_space<vmem>>, vector<1x16x16x128xf32>
    %144 = vector.shape_cast %143 : vector<1x16x16x128xf32> to vector<16x16x128xf32>
    %145 = vector.shape_cast %142 : vector<16x16x128xf32> to vector<1x16x16x128xf32>
    tpu.vector_store %arg10[%c0_48, %c0_49, %c0_50, %c0_51], %145 {strides = array<i32>} : memref<1x16x16x128xf32, #tpu.memory_space<vmem>>, vector<1x16x16x128xf32>,
    return
  }
  func.func @transform_0(%arg0: i32) -> (i32, i32, i32, i32) {
    %c0_i32 = arith.constant 0 : i32
    %c0_i32_0 = arith.constant 0 : i32
    %c0_i32_1 = arith.constant 0 : i32
    %c0_i32_2 = arith.constant 0 : i32
    return %arg0, %c0_i32, %c0_i32_0, %c0_i32_1 : i32, i32, i32, i32
  }
  func.func @transform_1(%arg0: i32) -> (i32, i32, i32) {
    %c0_i32 = arith.constant 0 : i32
    %c0_i32_0 = arith.constant 0 : i32
    %c0_i32_1 = arith.constant 0 : i32
    %c0_i32_2 = arith.constant 0 : i32
    return %c0_i32, %c0_i32_0, %c0_i32_1 : i32, i32, i32
  }
  func.func @transform_2(%arg0: i32) -> (i32, i32) {
    %c0_i32 = arith.constant 0 : i32
    %c0_i32_0 = arith.constant 0 : i32
    %c0_i32_1 = arith.constant 0 : i32
    return %c0_i32, %c0_i32_0 : i32, i32
  }
  func.func @transform_3(%arg0: i32) -> (i32, i32) {
    %c0_i32 = arith.constant 0 : i32
    %c0_i32_0 = arith.constant 0 : i32
    %c0_i32_1 = arith.constant 0 : i32
    return %c0_i32, %c0_i32_0 : i32, i32
  }
  func.func @transform_4(%arg0: i32) -> (i32, i32) {
    %c0_i32 = arith.constant 0 : i32
    %c0_i32_0 = arith.constant 0 : i32
    %c0_i32_1 = arith.constant 0 : i32
    return %c0_i32, %c0_i32_0 : i32, i32
  }
  func.func @transform_5(%arg0: i32) -> (i32, i32) {
    %c0_i32 = arith.constant 0 : i32
    %c0_i32_0 = arith.constant 0 : i32
    %c0_i32_1 = arith.constant 0 : i32
    return %c0_i32, %c0_i32_0 : i32, i32
  }
  func.func @transform_6(%arg0: i32) -> (i32, i32) {
    %c0_i32 = arith.constant 0 : i32
    %c0_i32_0 = arith.constant 0 : i32
    %c0_i32_1 = arith.constant 0 : i32
    return %c0_i32, %c0_i32_0 : i32, i32
  }
  func.func @transform_7(%arg0: i32) -> (i32, i32) {
    %c0_i32 = arith.constant 0 : i32
    %c0_i32_0 = arith.constant 0 : i32
    %c0_i32_1 = arith.constant 0 : i32
    return %c0_i32, %c0_i32_0 : i32, i32
  }
  func.func @transform_8(%arg0: i32) -> (i32, i32) {
    %c0_i32 = arith.constant 0 : i32
    %c0_i32_0 = arith.constant 0 : i32
    %c0_i32_1 = arith.constant 0 : i32
    return %c0_i32, %c0_i32_0 : i32, i32
  }
  func.func @transform_9(%arg0: i32) -> (i32, i32, i32, i32) {
    %c0_i32 = arith.constant 0 : i32
    %c0_i32_0 = arith.constant 0 : i32
    %c0_i32_1 = arith.constant 0 : i32
    %c0_i32_2 = arith.constant 0 : i32
    return %arg0, %c0_i32, %c0_i32_0, %c0_i32_1 : i32, i32, i32, i32
  }
}

</mosaic_0001>

<llo_original>
// kernel: tpu_custom_call.1
$region0: #{tpu_custom_call.1}
  #allocation0 [shape = 'u32[]', space=smem, size = 0x4, offset = 0x4, fixed_abs, tag = 'smem constant byte address 0x4 - core index']
  #allocation1 [shape = 'u32[144,128]{1,0:T(1,128)}', space=vmem, size = 0x12000, scoped, tag = 'internal scratch']
  #allocation2 [shape = 'f32[1,26,26,16]{3,2,1,0:T(8,128)}', space=vmem, size = 0x68000, scoped, tag = 'scratch operand']
  %s0 = inlined_call_operand.hbm [shape: f32[2,16,16,16], index: 0, kind: input, shape index: {}]
  %s1 = inlined_call_operand.hbm [shape: bf16[3,144,128], index: 1, kind: input, shape index: {}]
  %s2 = inlined_call_operand.vmem [shape: f32[3,128], index: 2, kind: input, shape index: {}]
  %s3 = inlined_call_operand.hbm [shape: f32[384,128], index: 3, kind: input, shape index: {}]
  %s4 = inlined_call_operand.vmem [shape: f32[1,128], index: 4, kind: input, shape index: {}]
  %s5 = inlined_call_operand.hbm [shape: f32[128,384], index: 5, kind: input, shape index: {}]
  %s6 = inlined_call_operand.vmem [shape: f32[1,384], index: 6, kind: input, shape index: {}]
  %s7 = inlined_call_operand.hbm [shape: bf16[384,128], index: 7, kind: input, shape index: {}]
  %s8 = inlined_call_operand.vmem [shape: f32[1,128], index: 8, kind: input, shape index: {}]
  %s9 = inlined_call_operand.hbm [shape: f32[2,16,16,128], index: 9, kind: output, shape index: {}]
  %s10 = sld [smem:[#allocation0]]
  $region89: #{tpu_custom_call.1} parent=0
    _
  %s12 = ssub.s32 1, %s10
  %s13 = scalar_select 0, %s12, %s10
  $region1: #{tpu_custom_call.1} parent=0
    #allocation3 [shape = 'u8[262144]{0}', space=vmem, size = 0x40000, scoped, tag = 'input window, operand 0']
    #allocation4 [shape = 's32[2]{0}', space=sflag, size = 0x8, scoped, tag = 'scoped memory for tpu_custom_call.1']
    #allocation5 [shape = 's32[2]{0}', space=sflag, size = 0x8, scoped, tag = 'scoped memory for tpu_custom_call.1']
    #allocation6 [shape = 'u8[110592]{0}', space=vmem, size = 0x1b000, scoped, tag = 'input window, operand 1, single buffered']
    #allocation7 [shape = 's32[1]{0}', space=sflag, size = 0x4, scoped, tag = 'scoped memory for tpu_custom_call.1']
    #allocation8 [shape = 'u8[196608]{0}', space=vmem, size = 0x30000, scoped, tag = 'input window, operand 3, single buffered']
    #allocation9 [shape = 'u8[196608]{0}', space=vmem, size = 0x30000, scoped, tag = 'input window, operand 5, single buffered']
    #allocation10 [shape = 's32[1]{0}', space=sflag, size = 0x4, scoped, tag = 'scoped memory for tpu_custom_call.1']
    #allocation11 [shape = 'u8[98304]{0}', space=vmem, size = 0x18000, scoped, tag = 'input window, operand 7, single buffered']
    #allocation12 [shape = 'u8[262144]{0}', space=vmem, size = 0x40000, scoped, tag = 'output window, operand 0']
    %14 = vsyncpa [#allocation4], 0
    %s15 = scalar_lea.sflag [#allocation4], 1
    %16 = vsyncpa %s15, 0
    %17 = vsyncpa [#allocation7], 0
    %18 = vsyncpa [#allocation10], 0
    %19 = vsyncpa [#allocation5], 0
    %s20 = scalar_lea.sflag [#allocation5], 1
    %21 = vsyncpa %s20, 0
    loop: start=0, step=1, limit=4
    $region2: #{tpu_custom_call.1} parent=1 // loop_pre_header
      _
    $region3: #{tpu_custom_call.1} parent=1 // loop_header
      %s23 = sphi 0, %s27
      %p24 = scmp.ge.s32.totalorder %s23, 4
      %s33 = sphi 0, %s35
      %s36 = sphi 0, %s33
      %s37 = sphi 0, %s36
      %s53 = sphi 0, %s37
      %s57 = sphi 0, %s57
      %s59 = sphi 0, %s57
      %s60 = sphi 0, %s59
      %s74 = sphi 0, %s60
      %s78 = sphi 0, %s78
      %s80 = sphi 0, %s78
      %s81 = sphi 0, %s80
      %s95 = sphi 0, %s81
      %s99 = sphi 0, %s99
      %s101 = sphi 0, %s99
      %s102 = sphi 0, %s101
      %s116 = sphi 0, %s102
      %s120 = sphi 0, %s120
      %s122 = sphi 0, %s120
      %s123 = sphi 0, %s122
      %s137 = sphi 0, %s123
      %s141 = sphi 0, %s141
      %s143 = sphi 0, %s141
      %s144 = sphi 0, %s143
      %s158 = sphi 0, %s144
      %s162 = sphi 0, %s162
      %s164 = sphi 0, %s162
      %s165 = sphi 0, %s164
      %s179 = sphi 0, %s165
      %s183 = sphi 0, %s183
      %s185 = sphi 0, %s183
      %s186 = sphi 0, %s185
      %s200 = sphi 0, %s186
      %s204 = sphi 0, %s204
      %s206 = sphi 0, %s204
      %s207 = sphi 0, %s206
      %s221 = sphi 0, %s207
      %s227 = sphi 0, %s229
      %s230 = sphi 0, %s227
      %s231 = sphi 0, %s230
      %s247 = sphi 0, %s231
    $region4: #{tpu_custom_call.1} parent=1 // loop_header_branch
      %26 = sbr.rel (%p24) target = $region8
    $region5: #{tpu_custom_call.1} parent=1 // loop_body
      %s28 = ssub.s32 %s23, 1
      %s29 = ssub.s32 %s23, 2
      %s30 = sadd.s32 %s23, 1
      %s31 = ssub.s32 %s23, %s30
      %p32 = scmp.eq.s32.totalorder %s31, 0
      %s34 = sadd.s32 %s33, 1
      %s35 = scalar_select %p32, %s33, %s34
      %p38 = pneg %p32
      %p39 = scmp.eq.s32.totalorder %s23, 1
      %p40 = por %p38, %p39
      %p41 = scmp.ne.s32.totalorder %s33, %s36
      %p42 = scmp.eq.s32.totalorder %s23, 0
      %p43 = por %p41, %p42
      %p44 = scmp.ne.s32.totalorder %s33, %s36
      %p45 = scmp.eq.s32.totalorder %s28, 1
      %p46 = por %p44, %p45
      %p47 = scmp.ne.s32.totalorder %s36, %s37
      %p48 = scmp.eq.s32.totalorder %s28, 0
      %p49 = por %p47, %p48
      %p50 = scmp.ne.s32.totalorder %s36, %s37
      %p51 = scmp.eq.s32.totalorder %s29, 1
      %p52 = por %p50, %p51
      %p54 = scmp.ne.s32.totalorder %s37, %s53
      %p55 = scmp.eq.s32.totalorder %s29, 0
      %p56 = por %p54, %p55
      %s58 = sadd.s32 %s57, 1
      %p61 = scmp.eq.s32.totalorder %s23, 1
      %p62 = scmp.ne.s32.totalorder %s57, %s59
      %p63 = scmp.eq.s32.totalorder %s23, 0
      %p64 = por %p62, %p63
      %p65 = scmp.ne.s32.totalorder %s57, %s59
      %p66 = scmp.eq.s32.totalorder %s28, 1
      %p67 = por %p65, %p66
      %p68 = scmp.ne.s32.totalorder %s59, %s60
      %p69 = scmp.eq.s32.totalorder %s28, 0
      %p70 = por %p68, %p69
      %p71 = scmp.ne.s32.totalorder %s59, %s60
      %p72 = scmp.eq.s32.totalorder %s29, 1
      %p73 = por %p71, %p72
      %p75 = scmp.ne.s32.totalorder %s60, %s74
      %p76 = scmp.eq.s32.totalorder %s29, 0
      %p77 = por %p75, %p76
      %s79 = sadd.s32 %s78, 1
      %p82 = scmp.eq.s32.totalorder %s23, 1
      %p83 = scmp.ne.s32.totalorder %s78, %s80
      %p84 = scmp.eq.s32.totalorder %s23, 0
      %p85 = por %p83, %p84
      %p86 = scmp.ne.s32.totalorder %s78, %s80
      %p87 = scmp.eq.s32.totalorder %s28, 1
      %p88 = por %p86, %p87
      %p89 = scmp.ne.s32.totalorder %s80, %s81
      %p90 = scmp.eq.s32.totalorder %s28, 0
      %p91 = por %p89, %p90
      %p92 = scmp.ne.s32.totalorder %s80, %s81
      %p93 = scmp.eq.s32.totalorder %s29, 1
      %p94 = por %p92, %p93
      %p96 = scmp.ne.s32.totalorder %s81, %s95
      %p97 = scmp.eq.s32.totalorder %s29, 0
      %p98 = por %p96, %p97
      %s100 = sadd.s32 %s99, 1
      %p103 = scmp.eq.s32.totalorder %s23, 1
      %p104 = scmp.ne.s32.totalorder %s99, %s101
      %p105 = scmp.eq.s32.totalorder %s23, 0
      %p106 = por %p104, %p105
      %p107 = scmp.ne.s32.totalorder %s99, %s101
      %p108 = scmp.eq.s32.totalorder %s28, 1
      %p109 = por %p107, %p108
      %p110 = scmp.ne.s32.totalorder %s101, %s102
      %p111 = scmp.eq.s32.totalorder %s28, 0
      %p112 = por %p110, %p111
      %p113 = scmp.ne.s32.totalorder %s101, %s102
      %p114 = scmp.eq.s32.totalorder %s29, 1
      %p115 = por %p113, %p114
      %p117 = scmp.ne.s32.totalorder %s102, %s116
      %p118 = scmp.eq.s32.totalorder %s29, 0
      %p119 = por %p117, %p118
      %s121 = sadd.s32 %s120, 1
      %p124 = scmp.eq.s32.totalorder %s23, 1
      %p125 = scmp.ne.s32.totalorder %s120, %s122
      %p126 = scmp.eq.s32.totalorder %s23, 0
      %p127 = por %p125, %p126
      %p128 = scmp.ne.s32.totalorder %s120, %s122
      %p129 = scmp.eq.s32.totalorder %s28, 1
      %p130 = por %p128, %p129
      %p131 = scmp.ne.s32.totalorder %s122, %s123
      %p132 = scmp.eq.s32.totalorder %s28, 0
      %p133 = por %p131, %p132
      %p134 = scmp.ne.s32.totalorder %s122, %s123
      %p135 = scmp.eq.s32.totalorder %s29, 1
      %p136 = por %p134, %p135
      %p138 = scmp.ne.s32.totalorder %s123, %s137
      %p139 = scmp.eq.s32.totalorder %s29, 0
      %p140 = por %p138, %p139
      %s142 = sadd.s32 %s141, 1
      %p145 = scmp.eq.s32.totalorder %s23, 1
      %p146 = scmp.ne.s32.totalorder %s141, %s143
      %p147 = scmp.eq.s32.totalorder %s23, 0
      %p148 = por %p146, %p147
      %p149 = scmp.ne.s32.totalorder %s141, %s143
      %p150 = scmp.eq.s32.totalorder %s28, 1
      %p151 = por %p149, %p150
      %p152 = scmp.ne.s32.totalorder %s143, %s144
      %p153 = scmp.eq.s32.totalorder %s28, 0
      %p154 = por %p152, %p153
      %p155 = scmp.ne.s32.totalorder %s143, %s144
      %p156 = scmp.eq.s32.totalorder %s29, 1
      %p157 = por %p155, %p156
      %p159 = scmp.ne.s32.totalorder %s144, %s158
      %p160 = scmp.eq.s32.totalorder %s29, 0
      %p161 = por %p159, %p160
      %s163 = sadd.s32 %s162, 1
      %p166 = scmp.eq.s32.totalorder %s23, 1
      %p167 = scmp.ne.s32.totalorder %s162, %s164
      %p168 = scmp.eq.s32.totalorder %s23, 0
      %p169 = por %p167, %p168
      %p170 = scmp.ne.s32.totalorder %s162, %s164
      %p171 = scmp.eq.s32.totalorder %s28, 1
      %p172 = por %p170, %p171
      %p173 = scmp.ne.s32.totalorder %s164, %s165
      %p174 = scmp.eq.s32.totalorder %s28, 0
      %p175 = por %p173, %p174
      %p176 = scmp.ne.s32.totalorder %s164, %s165
      %p177 = scmp.eq.s32.totalorder %s29, 1
      %p178 = por %p176, %p177
      %p180 = scmp.ne.s32.totalorder %s165, %s179
      %p181 = scmp.eq.s32.totalorder %s29, 0
      %p182 = por %p180, %p181
      %s184 = sadd.s32 %s183, 1
      %p187 = scmp.eq.s32.totalorder %s23, 1
      %p188 = scmp.ne.s32.totalorder %s183, %s185
      %p189 = scmp.eq.s32.totalorder %s23, 0
      %p190 = por %p188, %p189
      %p191 = scmp.ne.s32.totalorder %s183, %s185
      %p192 = scmp.eq.s32.totalorder %s28, 1
      %p193 = por %p191, %p192
      %p194 = scmp.ne.s32.totalorder %s185, %s186
      %p195 = scmp.eq.s32.totalorder %s28, 0
      %p196 = por %p194, %p195
      %p197 = scmp.ne.s32.totalorder %s185, %s186
      %p198 = scmp.eq.s32.totalorder %s29, 1
      %p199 = por %p197, %p198
      %p201 = scmp.ne.s32.totalorder %s186, %s200
      %p202 = scmp.eq.s32.totalorder %s29, 0
      %p203 = por %p201, %p202
      %s205 = sadd.s32 %s204, 1
      %p208 = scmp.eq.s32.totalorder %s23, 1
      %p209 = scmp.ne.s32.totalorder %s204, %s206
      %p210 = scmp.eq.s32.totalorder %s23, 0
      %p211 = por %p209, %p210
      %p212 = scmp.ne.s32.totalorder %s204, %s206
      %p213 = scmp.eq.s32.totalorder %s28, 1
      %p214 = por %p212, %p213
      %p215 = scmp.ne.s32.totalorder %s206, %s207
      %p216 = scmp.eq.s32.totalorder %s28, 0
      %p217 = por %p215, %p216
      %p218 = scmp.ne.s32.totalorder %s206, %s207
      %p219 = scmp.eq.s32.totalorder %s29, 1
      %p220 = por %p218, %p219
      %p222 = scmp.ne.s32.totalorder %s207, %s221
      %p223 = scmp.eq.s32.totalorder %s29, 0
      %p224 = por %p222, %p223
      %s225 = ssub.s32 %s23, %s30
      %p226 = scmp.eq.s32.totalorder %s225, 0
      %s228 = sadd.s32 %s227, 1
      %s229 = scalar_select %p226, %s227, %s228
      %p232 = pneg %p226
      %p233 = scmp.eq.s32.totalorder %s23, 1
      %p234 = por %p232, %p233
      %p235 = scmp.ne.s32.totalorder %s227, %s230
      %p236 = scmp.eq.s32.totalorder %s23, 0
      %p237 = por %p235, %p236
      %p238 = scmp.ne.s32.totalorder %s227, %s230
      %p239 = scmp.eq.s32.totalorder %s28, 1
      %p240 = por %p238, %p239
      %p241 = scmp.ne.s32.totalorder %s230, %s231
      %p242 = scmp.eq.s32.totalorder %s28, 0
      %p243 = por %p241, %p242
      %p244 = scmp.ne.s32.totalorder %s230, %s231
      %p245 = scmp.eq.s32.totalorder %s29, 1
      %p246 = por %p244, %p245
      %p248 = scmp.ne.s32.totalorder %s231, %s247
      %p249 = scmp.eq.s32.totalorder %s29, 0
      %p250 = por %p248, %p249
      %p251 = scmp.le.s32.totalorder 1, %s23
      %p252 = scmp.lt.s32.totalorder %s23, 3
      %p253 = pnand %p251, %p252
      %p254 = pneg %p253
      // Predicated region
      $region9: #{tpu_custom_call.1} parent=5 // pred_check
        _
      $region10: #{tpu_custom_call.1} parent=5 // pred_check_branch
        %256 = sbr.rel (%p253) target = $region12
      $region11: #{tpu_custom_call.1} parent=5 // pred_region
        %s257 = ssub.s32 %s23, 1
        // Predicated region
        $region13: #{tpu_custom_call.1} parent=11 // pred_check
          %p258 = pneg %p70
        $region14: #{tpu_custom_call.1} parent=11 // pred_check_branch
          %260 = sbr.rel (%p258) target = $region16
        $region15: #{tpu_custom_call.1} parent=11 // pred_region
          %s262 = ssub.s32 3456, 3456
          %263 = vsyncadd [#allocation7], %s262
          %s264 = sshll.u32 [#allocation6], 4
          %s265 = int_to_ptr.vmem [resolvable:$true] %s264
          %270 = dma.hbm_to_vmem [thread:$0]  %s1, 3456, %s265, [#allocation7], 64, 64, 4
        $region16: #{tpu_custom_call.1} parent=11 // pred_fallthru
          _
        // Predicated region
        $region17: #{tpu_custom_call.1} parent=11 // pred_check
          %p271 = pneg %p91
        $region18: #{tpu_custom_call.1} parent=11 // pred_check_branch
          %273 = sbr.rel (%p271) target = $region20
        $region19: #{tpu_custom_call.1} parent=11 // pred_region
          _
        $region20: #{tpu_custom_call.1} parent=11 // pred_fallthru
          _
        // Predicated region
        $region21: #{tpu_custom_call.1} parent=11 // pred_check
          %p274 = pneg %p112
        $region22: #{tpu_custom_call.1} parent=11 // pred_check_branch
          %276 = sbr.rel (%p274) target = $region24
        $region23: #{tpu_custom_call.1} parent=11 // pred_region
          %s278 = ssub.s32 6144, 6144
          %279 = vsyncadd [#allocation7], %s278
          %s280 = sshll.u32 [#allocation8], 4
          %s281 = int_to_ptr.vmem [resolvable:$true] %s280
          %286 = dma.hbm_to_vmem [thread:$0]  %s3, 6144, %s281, [#allocation7], 128, 128, 8
        $region24: #{tpu_custom_call.1} parent=11 // pred_fallthru
          _
        // Predicated region
        $region25: #{tpu_custom_call.1} parent=11 // pred_check
          %p287 = pneg %p133
        $region26: #{tpu_custom_call.1} parent=11 // pred_check_branch
          %289 = sbr.rel (%p287) target = $region28
        $region27: #{tpu_custom_call.1} parent=11 // pred_region
          _
        $region28: #{tpu_custom_call.1} parent=11 // pred_fallthru
          _
        // Predicated region
        $region29: #{tpu_custom_call.1} parent=11 // pred_check
          %p290 = pneg %p154
        $region30: #{tpu_custom_call.1} parent=11 // pred_check_branch
          %292 = sbr.rel (%p290) target = $region32
        $region31: #{tpu_custom_call.1} parent=11 // pred_region
          %s294 = ssub.s32 6144, 6144
          %295 = vsyncadd [#allocation10], %s294
          %s296 = sshll.u32 [#allocation9], 4
          %s297 = int_to_ptr.vmem [resolvable:$true] %s296
          %302 = dma.hbm_to_vmem [thread:$0]  %s5, 6144, %s297, [#allocation10], 384, 384, 24
        $region32: #{tpu_custom_call.1} parent=11 // pred_fallthru
          _
        // Predicated region
        $region33: #{tpu_custom_call.1} parent=11 // pred_check
          %p303 = pneg %p175
        $region34: #{tpu_custom_call.1} parent=11 // pred_check_branch
          %305 = sbr.rel (%p303) target = $region36
        $region35: #{tpu_custom_call.1} parent=11 // pred_region
          _
        $region36: #{tpu_custom_call.1} parent=11 // pred_fallthru
          _
        // Predicated region
        $region37: #{tpu_custom_call.1} parent=11 // pred_check
          %p306 = pneg %p196
        $region38: #{tpu_custom_call.1} parent=11 // pred_check_branch
          %308 = sbr.rel (%p306) target = $region40
        $region39: #{tpu_custom_call.1} parent=11 // pred_region
          %s310 = ssub.s32 3072, 3072
          %311 = vsyncadd [#allocation10], %s310
          %s312 = sshll.u32 [#allocation11], 4
          %s313 = int_to_ptr.vmem [resolvable:$true] %s312
          %318 = dma.hbm_to_vmem [thread:$0]  %s7, 3072, %s313, [#allocation10], 64, 64, 4
        $region40: #{tpu_custom_call.1} parent=11 // pred_fallthru
          _
        // Predicated region
        $region41: #{tpu_custom_call.1} parent=11 // pred_check
          %p319 = pneg %p217
        $region42: #{tpu_custom_call.1} parent=11 // pred_check_branch
          %321 = sbr.rel (%p319) target = $region44
        $region43: #{tpu_custom_call.1} parent=11 // pred_region
          _
        $region44: #{tpu_custom_call.1} parent=11 // pred_fallthru
          _
      $region12: #{tpu_custom_call.1} parent=5 // pred_fallthru
        _
      %p322 = scmp.lt.s32.totalorder %s23, 2
      // Predicated region
      $region45: #{tpu_custom_call.1} parent=5 // pred_check
        %p323 = pneg %p322
      $region46: #{tpu_custom_call.1} parent=5 // pred_check_branch
        %325 = sbr.rel (%p323) target = $region48
      $region47: #{tpu_custom_call.1} parent=5 // pred_region
        // Predicated region
        $region49: #{tpu_custom_call.1} parent=47 // pred_check
          %p326 = pneg %p43
        $region50: #{tpu_custom_call.1} parent=47 // pred_check_branch
          %328 = sbr.rel (%p326) target = $region52
        $region51: #{tpu_custom_call.1} parent=47 // pred_region
          %s329 = sand.u32 %s33, 1
          %s330 = scalar_lea.sflag [#allocation4], %s329
          %s331 = sand.u32 %s33, 1
          %s332 = smul.addr %s331, 256
          %s333 = scalar_lea.vmem [#allocation3], %s332
          %s335 = ssub.s32 4096, 4096
          %336 = vsyncadd %s330, %s335
          %s337 = smul.addr %s23, 32
          %s338 = smul.addr %s337, 128
          %s339 = scalar_lea.hbm %s0, %s338
          %s340 = sshll.u32 %s333, 4
          %s341 = int_to_ptr.vmem [resolvable:$true] %s340
          %346 = dma.hbm_to_vmem [thread:$0]  %s339, 4096, %s341, %s330, 128, 128, 8
        $region52: #{tpu_custom_call.1} parent=47 // pred_fallthru
          _
      $region48: #{tpu_custom_call.1} parent=5 // pred_fallthru
        _
      %p347 = scmp.le.s32.totalorder 1, %s23
      %p348 = scmp.lt.s32.totalorder %s23, 3
      %p349 = pnand %p347, %p348
      %p350 = pneg %p349
      // Predicated region
      $region53: #{tpu_custom_call.1} parent=5 // pred_check
        _
      $region54: #{tpu_custom_call.1} parent=5 // pred_check_branch
        %352 = sbr.rel (%p349) target = $region56
      $region55: #{tpu_custom_call.1} parent=5 // pred_region
        %s353 = ssub.s32 %s23, 1
        %s354 = sand.u32 %s36, 1
        %s355 = scalar_lea.sflag [#allocation4], %s354
        %s356 = sand.u32 %s36, 1
        %s357 = smul.addr %s356, 256
        %s358 = scalar_lea.vmem [#allocation3], %s357
        // Predicated region
        $region57: #{tpu_custom_call.1} parent=55 // pred_check
          %p359 = pneg %p49
        $region58: #{tpu_custom_call.1} parent=55 // pred_check_branch
          %361 = sbr.rel (%p359) target = $region60
        $region59: #{tpu_custom_call.1} parent=55 // pred_region
          %362 = dma.done %s355, 4096
        $region60: #{tpu_custom_call.1} parent=55 // pred_fallthru
          _
        // Predicated region
        $region61: #{tpu_custom_call.1} parent=55 // pred_check
          %p363 = pneg %p70
        $region62: #{tpu_custom_call.1} parent=55 // pred_check_branch
          %365 = sbr.rel (%p363) target = $region64
        $region63: #{tpu_custom_call.1} parent=55 // pred_region
          %366 = dma.done [#allocation7], 3456
        $region64: #{tpu_custom_call.1} parent=55 // pred_fallthru
          _
        // Predicated region
        $region65: #{tpu_custom_call.1} parent=55 // pred_check
          %p367 = pneg %p112
        $region66: #{tpu_custom_call.1} parent=55 // pred_check_branch
          %369 = sbr.rel (%p367) target = $region68
        $region67: #{tpu_custom_call.1} parent=55 // pred_region
          %370 = dma.done [#allocation7], 6144
        $region68: #{tpu_custom_call.1} parent=55 // pred_fallthru
          _
        // Predicated region
        $region69: #{tpu_custom_call.1} parent=55 // pred_check
          %p371 = pneg %p154
        $region70: #{tpu_custom_call.1} parent=55 // pred_check_branch
          %373 = sbr.rel (%p371) target = $region72
        $region71: #{tpu_custom_call.1} parent=55 // pred_region
          %374 = dma.done [#allocation10], 6144
        $region72: #{tpu_custom_call.1} parent=55 // pred_fallthru
          _
        // Predicated region
        $region73: #{tpu_custom_call.1} parent=55 // pred_check
          %p375 = pneg %p196
        $region74: #{tpu_custom_call.1} parent=55 // pred_check_branch
          %377 = sbr.rel (%p375) target = $region76
        $region75: #{tpu_custom_call.1} parent=55 // pred_region
          %378 = dma.done [#allocation10], 3072
        $region76: #{tpu_custom_call.1} parent=55 // pred_fallthru
          _
        %s379 = sand.u32 %s36, 1
        %s380 = scalar_lea.sflag [#allocation4], %s379
        %s381 = sand.u32 %s36, 1
        %s382 = smul.addr %s381, 256
        %s383 = scalar_lea.vmem [#allocation3], %s382
        %p384 = pneg %p49
        %p385 = pneg %p46
        %p386 = pneg %p70
        %p387 = pneg %p67
        %p388 = pneg %p91
        %p389 = pneg %p88
        %p390 = pneg %p112
        %p391 = pneg %p109
        %p392 = pneg %p133
        %p393 = pneg %p130
        %p394 = pneg %p154
        %p395 = pneg %p151
        %p396 = pneg %p175
        %p397 = pneg %p172
        %p398 = pneg %p196
        %p399 = pneg %p193
        %p400 = pneg %p217
        %p401 = pneg %p214
        %p402 = pneg %p243
        %p403 = pneg %p240
        %s404 = sand.u32 %s230, 1
        %s405 = scalar_lea.sflag [#allocation5], %s404
        %s406 = sand.u32 %s230, 1
        %s407 = smul.addr %s406, 256
        %s408 = scalar_lea.vmem [#allocation12], %s407
        %vm410 = vcmask 130048
        %411 = vst.msk [vmem:[#allocation2] sm:$0xff] %vm410, 0.0
        %412 = vst.msk [vmem:[#allocation2 + $0x8] sm:$0xff] %vm410, 0.0
        %413 = vst.msk [vmem:[#allocation2 + $0x10] sm:$0xff] %vm410, 0.0
        %vm414 = vcmask 123904
        %415 = vst.msk [vmem:[#allocation2 + $0x18] sm:$0x3] %vm414, 0.0
        %416 = vst.msk [vmem:[#allocation2 + $0x20] sm:$0xff] %vm410, 0.0
        %417 = vst.msk [vmem:[#allocation2 + $0x28] sm:$0xff] %vm410, 0.0
        %418 = vst.msk [vmem:[#allocation2 + $0x30] sm:$0xff] %vm410, 0.0
        %419 = vst.msk [vmem:[#allocation2 + $0x38] sm:$0x3] %vm414, 0.0
        %420 = vst.msk [vmem:[#allocation2 + $0x40] sm:$0xff] %vm410, 0.0
        %421 = vst.msk [vmem:[#allocation2 + $0x48] sm:$0xff] %vm410, 0.0
        %422 = vst.msk [vmem:[#allocation2 + $0x50] sm:$0xff] %vm410, 0.0
        %423 = vst.msk [vmem:[#allocation2 + $0x58] sm:$0x3] %vm414, 0.0
        %424 = vst.msk [vmem:[#allocation2 + $0x60] sm:$0xff] %vm410, 0.0
        %425 = vst.msk [vmem:[#allocation2 + $0x68] sm:$0xff] %vm410, 0.0
        %426 = vst.msk [vmem:[#allocation2 + $0x70] sm:$0xff] %vm410, 0.0
        %427 = vst.msk [vmem:[#allocation2 + $0x78] sm:$0x3] %vm414, 0.0
        %428 = vst.msk [vmem:[#allocation2 + $0x80] sm:$0xff] %vm410, 0.0
        %429 = vst.msk [vmem:[#allocation2 + $0x88] sm:$0xff] %vm410, 0.0
        %430 = vst.msk [vmem:[#allocation2 + $0x90] sm:$0xff] %vm410, 0.0
        %431 = vst.msk [vmem:[#allocation2 + $0x98] sm:$0x3] %vm414, 0.0
        %432 = vst.msk [vmem:[#allocation2 + $0xa0] sm:$0xff] %vm410, 0.0
        %433 = vst.msk [vmem:[#allocation2 + $0xa8] sm:$0xff] %vm410, 0.0
        %434 = vst.msk [vmem:[#allocation2 + $0xb0] sm:$0xff] %vm410, 0.0
        %435 = vst.msk [vmem:[#allocation2 + $0xb8] sm:$0x3] %vm414, 0.0
        %436 = vst.msk [vmem:[#allocation2 + $0xc0] sm:$0xff] %vm410, 0.0
        %437 = vst.msk [vmem:[#allocation2 + $0xc8] sm:$0xff] %vm410, 0.0
        %438 = vst.msk [vmem:[#allocation2 + $0xd0] sm:$0xff] %vm410, 0.0
        %439 = vst.msk [vmem:[#allocation2 + $0xd8] sm:$0x3] %vm414, 0.0
        %440 = vst.msk [vmem:[#allocation2 + $0xe0] sm:$0xff] %vm410, 0.0
        %441 = vst.msk [vmem:[#allocation2 + $0xe8] sm:$0xff] %vm410, 0.0
        %442 = vst.msk [vmem:[#allocation2 + $0xf0] sm:$0xff] %vm410, 0.0
        %443 = vst.msk [vmem:[#allocation2 + $0xf8] sm:$0x3] %vm414, 0.0
        %444 = vst.msk [vmem:[#allocation2 + $0x100] sm:$0xff] %vm410, 0.0
        %445 = vst.msk [vmem:[#allocation2 + $0x108] sm:$0xff] %vm410, 0.0
        %446 = vst.msk [vmem:[#allocation2 + $0x110] sm:$0xff] %vm410, 0.0
        %447 = vst.msk [vmem:[#allocation2 + $0x118] sm:$0x3] %vm414, 0.0
        %448 = vst.msk [vmem:[#allocation2 + $0x120] sm:$0xff] %vm410, 0.0
        %449 = vst.msk [vmem:[#allocation2 + $0x128] sm:$0xff] %vm410, 0.0
        %450 = vst.msk [vmem:[#allocation2 + $0x130] sm:$0xff] %vm410, 0.0
        %451 = vst.msk [vmem:[#allocation2 + $0x138] sm:$0x3] %vm414, 0.0
        %452 = vst.msk [vmem:[#allocation2 + $0x140] sm:$0xff] %vm410, 0.0
        %453 = vst.msk [vmem:[#allocation2 + $0x148] sm:$0xff] %vm410, 0.0
        %454 = vst.msk [vmem:[#allocation2 + $0x150] sm:$0xff] %vm410, 0.0
        %455 = vst.msk [vmem:[#allocation2 + $0x158] sm:$0x3] %vm414, 0.0
        %456 = vst.msk [vmem:[#allocation2 + $0x160] sm:$0xff] %vm410, 0.0
        %457 = vst.msk [vmem:[#allocation2 + $0x168] sm:$0xff] %vm410, 0.0
        %458 = vst.msk [vmem:[#allocation2 + $0x170] sm:$0xff] %vm410, 0.0
        %459 = vst.msk [vmem:[#allocation2 + $0x178] sm:$0x3] %vm414, 0.0
        %460 = vst.msk [vmem:[#allocation2 + $0x180] sm:$0xff] %vm410, 0.0
        %461 = vst.msk [vmem:[#allocation2 + $0x188] sm:$0xff] %vm410, 0.0
        %462 = vst.msk [vmem:[#allocation2 + $0x190] sm:$0xff] %vm410, 0.0
        %463 = vst.msk [vmem:[#allocation2 + $0x198] sm:$0x3] %vm414, 0.0
        %464 = vst.msk [vmem:[#allocation2 + $0x1a0] sm:$0xff] %vm410, 0.0
        %465 = vst.msk [vmem:[#allocation2 + $0x1a8] sm:$0xff] %vm410, 0.0
        %466 = vst.msk [vmem:[#allocation2 + $0x1b0] sm:$0xff] %vm410, 0.0
        %467 = vst.msk [vmem:[#allocation2 + $0x1b8] sm:$0x3] %vm414, 0.0
        %468 = vst.msk [vmem:[#allocation2 + $0x1c0] sm:$0xff] %vm410, 0.0
        %469 = vst.msk [vmem:[#allocation2 + $0x1c8] sm:$0xff] %vm410, 0.0
        %470 = vst.msk [vmem:[#allocation2 + $0x1d0] sm:$0xff] %vm410, 0.0
        %471 = vst.msk [vmem:[#allocation2 + $0x1d8] sm:$0x3] %vm414, 0.0
        %472 = vst.msk [vmem:[#allocation2 + $0x1e0] sm:$0xff] %vm410, 0.0
        %473 = vst.msk [vmem:[#allocation2 + $0x1e8] sm:$0xff] %vm410, 0.0
        %474 = vst.msk [vmem:[#allocation2 + $0x1f0] sm:$0xff] %vm410, 0.0
        %475 = vst.msk [vmem:[#allocation2 + $0x1f8] sm:$0x3] %vm414, 0.0
        %476 = vst.msk [vmem:[#allocation2 + $0x200] sm:$0xff] %vm410, 0.0
        %477 = vst.msk [vmem:[#allocation2 + $0x208] sm:$0xff] %vm410, 0.0
        %478 = vst.msk [vmem:[#allocation2 + $0x210] sm:$0xff] %vm410, 0.0
        %479 = vst.msk [vmem:[#allocation2 + $0x218] sm:$0x3] %vm414, 0.0
        %480 = vst.msk [vmem:[#allocation2 + $0x220] sm:$0xff] %vm410, 0.0
        %481 = vst.msk [vmem:[#allocation2 + $0x228] sm:$0xff] %vm410, 0.0
        %482 = vst.msk [vmem:[#allocation2 + $0x230] sm:$0xff] %vm410, 0.0
        %483 = vst.msk [vmem:[#allocation2 + $0x238] sm:$0x3] %vm414, 0.0
        %484 = vst.msk [vmem:[#allocation2 + $0x240] sm:$0xff] %vm410, 0.0
        %485 = vst.msk [vmem:[#allocation2 + $0x248] sm:$0xff] %vm410, 0.0
        %486 = vst.msk [vmem:[#allocation2 + $0x250] sm:$0xff] %vm410, 0.0
        %487 = vst.msk [vmem:[#allocation2 + $0x258] sm:$0x3] %vm414, 0.0
        %488 = vst.msk [vmem:[#allocation2 + $0x260] sm:$0xff] %vm410, 0.0
        %489 = vst.msk [vmem:[#allocation2 + $0x268] sm:$0xff] %vm410, 0.0
        %490 = vst.msk [vmem:[#allocation2 + $0x270] sm:$0xff] %vm410, 0.0
        %491 = vst.msk [vmem:[#allocation2 + $0x278] sm:$0x3] %vm414, 0.0
        %492 = vst.msk [vmem:[#allocation2 + $0x280] sm:$0xff] %vm410, 0.0
        %493 = vst.msk [vmem:[#allocation2 + $0x288] sm:$0xff] %vm410, 0.0
        %494 = vst.msk [vmem:[#allocation2 + $0x290] sm:$0xff] %vm410, 0.0
        %495 = vst.msk [vmem:[#allocation2 + $0x298] sm:$0x3] %vm414, 0.0
        %496 = vst.msk [vmem:[#allocation2 + $0x2a0] sm:$0xff] %vm410, 0.0
        %497 = vst.msk [vmem:[#allocation2 + $0x2a8] sm:$0xff] %vm410, 0.0
        %498 = vst.msk [vmem:[#allocation2 + $0x2b0] sm:$0xff] %vm410, 0.0
        %499 = vst.msk [vmem:[#allocation2 + $0x2b8] sm:$0x3] %vm414, 0.0
        %500 = vst.msk [vmem:[#allocation2 + $0x2c0] sm:$0xff] %vm410, 0.0
        %501 = vst.msk [vmem:[#allocation2 + $0x2c8] sm:$0xff] %vm410, 0.0
        %502 = vst.msk [vmem:[#allocation2 + $0x2d0] sm:$0xff] %vm410, 0.0
        %503 = vst.msk [vmem:[#allocation2 + $0x2d8] sm:$0x3] %vm414, 0.0
        %504 = vst.msk [vmem:[#allocation2 + $0x2e0] sm:$0xff] %vm410, 0.0
        %505 = vst.msk [vmem:[#allocation2 + $0x2e8] sm:$0xff] %vm410, 0.0
        %506 = vst.msk [vmem:[#allocation2 + $0x2f0] sm:$0xff] %vm410, 0.0
        %507 = vst.msk [vmem:[#allocation2 + $0x2f8] sm:$0x3] %vm414, 0.0
        %508 = vst.msk [vmem:[#allocation2 + $0x300] sm:$0xff] %vm410, 0.0
        %509 = vst.msk [vmem:[#allocation2 + $0x308] sm:$0xff] %vm410, 0.0
        %510 = vst.msk [vmem:[#allocation2 + $0x310] sm:$0xff] %vm410, 0.0
        %511 = vst.msk [vmem:[#allocation2 + $0x318] sm:$0x3] %vm414, 0.0
        %512 = vst.msk [vmem:[#allocation2 + $0x320] sm:$0xff] %vm410, 0.0
        %513 = vst.msk [vmem:[#allocation2 + $0x328] sm:$0xff] %vm410, 0.0
        %514 = vst.msk [vmem:[#allocation2 + $0x330] sm:$0xff] %vm410, 0.0
        %515 = vst.msk [vmem:[#allocation2 + $0x338] sm:$0x3] %vm414, 0.0
        %v516 = vld [vmem:[%s358] sm:$0xff]
        %v517 = vld [vmem:[%s358 + $0x8] sm:$0xff]
        %v518 = vld [vmem:[%s358 + $0x10] sm:$0xff]
        %v519 = vld [vmem:[%s358 + $0x18] sm:$0xff]
        %v520 = vld [vmem:[%s358 + $0x20] sm:$0xff]
        %v521 = vld [vmem:[%s358 + $0x28] sm:$0xff]
        %v522 = vld [vmem:[%s358 + $0x30] sm:$0xff]
        %v523 = vld [vmem:[%s358 + $0x38] sm:$0xff]
        %v524 = vld [vmem:[%s358 + $0x40] sm:$0xff]
        %v525 = vld [vmem:[%s358 + $0x48] sm:$0xff]
        %v526 = vld [vmem:[%s358 + $0x50] sm:$0xff]
        %v527 = vld [vmem:[%s358 + $0x58] sm:$0xff]
        %v528 = vld [vmem:[%s358 + $0x60] sm:$0xff]
        %v529 = vld [vmem:[%s358 + $0x68] sm:$0xff]
        %v530 = vld [vmem:[%s358 + $0x70] sm:$0xff]
        %v531 = vld [vmem:[%s358 + $0x78] sm:$0xff]
        %v532 = vld [vmem:[%s358 + $0x80] sm:$0xff]
        %v533 = vld [vmem:[%s358 + $0x88] sm:$0xff]
        %v534 = vld [vmem:[%s358 + $0x90] sm:$0xff]
        %v535 = vld [vmem:[%s358 + $0x98] sm:$0xff]
        %v536 = vld [vmem:[%s358 + $0xa0] sm:$0xff]
        %v537 = vld [vmem:[%s358 + $0xa8] sm:$0xff]
        %v538 = vld [vmem:[%s358 + $0xb0] sm:$0xff]
        %v539 = vld [vmem:[%s358 + $0xb8] sm:$0xff]
        %v540 = vld [vmem:[%s358 + $0xc0] sm:$0xff]
        %v541 = vld [vmem:[%s358 + $0xc8] sm:$0xff]
        %v542 = vld [vmem:[%s358 + $0xd0] sm:$0xff]
        %v543 = vld [vmem:[%s358 + $0xd8] sm:$0xff]
        %v544 = vld [vmem:[%s358 + $0xe0] sm:$0xff]
        %v545 = vld [vmem:[%s358 + $0xe8] sm:$0xff]
        %v546 = vld [vmem:[%s358 + $0xf0] sm:$0xff]
        %v547 = vld [vmem:[%s358 + $0xf8] sm:$0xff]
        %s548 = scalar_lea.vmem [#allocation2], 160
        %549 = vst.msk [vmem:[%s548 + $0x5] sm:$0xff] %vm410, %v516
        %550 = vst.msk [vmem:[%s548 + $0xd] sm:$0xff] %vm410, %v517
        %551 = vst.msk [vmem:[%s548 + $0x25] sm:$0xff] %vm410, %v518
        %552 = vst.msk [vmem:[%s548 + $0x2d] sm:$0xff] %vm410, %v519
        %553 = vst.msk [vmem:[%s548 + $0x45] sm:$0xff] %vm410, %v520
        %554 = vst.msk [vmem:[%s548 + $0x4d] sm:$0xff] %vm410, %v521
        %555 = vst.msk [vmem:[%s548 + $0x65] sm:$0xff] %vm410, %v522
        %556 = vst.msk [vmem:[%s548 + $0x6d] sm:$0xff] %vm410, %v523
        %557 = vst.msk [vmem:[%s548 + $0x85] sm:$0xff] %vm410, %v524
        %558 = vst.msk [vmem:[%s548 + $0x8d] sm:$0xff] %vm410, %v525
        %559 = vst.msk [vmem:[%s548 + $0xa5] sm:$0xff] %vm410, %v526
        %560 = vst.msk [vmem:[%s548 + $0xad] sm:$0xff] %vm410, %v527
        %561 = vst.msk [vmem:[%s548 + $0xc5] sm:$0xff] %vm410, %v528
        %562 = vst.msk [vmem:[%s548 + $0xcd] sm:$0xff] %vm410, %v529
        %563 = vst.msk [vmem:[%s548 + $0xe5] sm:$0xff] %vm410, %v530
        %564 = vst.msk [vmem:[%s548 + $0xed] sm:$0xff] %vm410, %v531
        %565 = vst.msk [vmem:[%s548 + $0x105] sm:$0xff] %vm410, %v532
        %566 = vst.msk [vmem:[%s548 + $0x10d] sm:$0xff] %vm410, %v533
        %567 = vst.msk [vmem:[%s548 + $0x125] sm:$0xff] %vm410, %v534
        %568 = vst.msk [vmem:[%s548 + $0x12d] sm:$0xff] %vm410, %v535
        %569 = vst.msk [vmem:[%s548 + $0x145] sm:$0xff] %vm410, %v536
        %570 = vst.msk [vmem:[%s548 + $0x14d] sm:$0xff] %vm410, %v537
        %571 = vst.msk [vmem:[%s548 + $0x165] sm:$0xff] %vm410, %v538
        %572 = vst.msk [vmem:[%s548 + $0x16d] sm:$0xff] %vm410, %v539
        %573 = vst.msk [vmem:[%s548 + $0x185] sm:$0xff] %vm410, %v540
        %574 = vst.msk [vmem:[%s548 + $0x18d] sm:$0xff] %vm410, %v541
        %575 = vst.msk [vmem:[%s548 + $0x1a5] sm:$0xff] %vm410, %v542
        %576 = vst.msk [vmem:[%s548 + $0x1ad] sm:$0xff] %vm410, %v543
        %577 = vst.msk [vmem:[%s548 + $0x1c5] sm:$0xff] %vm410, %v544
        %578 = vst.msk [vmem:[%s548 + $0x1cd] sm:$0xff] %vm410, %v545
        %579 = vst.msk [vmem:[%s548 + $0x1e5] sm:$0xff] %vm410, %v546
        %580 = vst.msk [vmem:[%s548 + $0x1ed] sm:$0xff] %vm410, %v547
        %v581 = vld [vmem:[#allocation2] sm:$0xff]
        %v582 = vld [vmem:[#allocation2 + $0x8] sm:$0xff]
        %v583 = vld [vmem:[#allocation2 + $0x10] sm:$0xff]
        %v584 = vld [vmem:[#allocation2 + $0x18] sm:$0x3]
        %v585 = vld [vmem:[#allocation2 + $0x20] sm:$0xff]
        %v586 = vld [vmem:[#allocation2 + $0x28] sm:$0xff]
        %v587 = vld [vmem:[#allocation2 + $0x30] sm:$0xff]
        %v588 = vld [vmem:[#allocation2 + $0x38] sm:$0x3]
        %v589 = vld [vmem:[#allocation2 + $0x40] sm:$0xff]
        %v590 = vld [vmem:[#allocation2 + $0x48] sm:$0xff]
        %v591 = vld [vmem:[#allocation2 + $0x50] sm:$0xff]
        %v592 = vld [vmem:[#allocation2 + $0x58] sm:$0x3]
        %v593 = vld [vmem:[#allocation2 + $0x60] sm:$0xff]
        %v594 = vld [vmem:[#allocation2 + $0x68] sm:$0xff]
        %v595 = vld [vmem:[#allocation2 + $0x70] sm:$0xff]
        %v596 = vld [vmem:[#allocation2 + $0x78] sm:$0x3]
        %v597 = vld [vmem:[#allocation2 + $0x80] sm:$0xff]
        %v598 = vld [vmem:[#allocation2 + $0x88] sm:$0xff]
        %v599 = vld [vmem:[#allocation2 + $0x90] sm:$0xff]
        %v600 = vld [vmem:[#allocation2 + $0x98] sm:$0x3]
        %v601 = vld [vmem:[#allocation2 + $0xa0] sm:$0xff]
        %v602 = vld [vmem:[#allocation2 + $0xa8] sm:$0xff]
        %v603 = vld [vmem:[#allocation2 + $0xb0] sm:$0xff]
        %v604 = vld [vmem:[#allocation2 + $0xb8] sm:$0x3]
        %v605 = vld [vmem:[#allocation2 + $0xc0] sm:$0xff]
        %v606 = vld [vmem:[#allocation2 + $0xc8] sm:$0xff]
        %v607 = vld [vmem:[#allocation2 + $0xd0] sm:$0xff]
        %v608 = vld [vmem:[#allocation2 + $0xd8] sm:$0x3]
        %v609 = vld [vmem:[#allocation2 + $0xe0] sm:$0xff]
        %v610 = vld [vmem:[#allocation2 + $0xe8] sm:$0xff]
        %v611 = vld [vmem:[#allocation2 + $0xf0] sm:$0xff]
        %v612 = vld [vmem:[#allocation2 + $0xf8] sm:$0x3]
        %v613 = vld [vmem:[#allocation2 + $0x100] sm:$0xff]
        %v614 = vld [vmem:[#allocation2 + $0x108] sm:$0xff]
        %v615 = vld [vmem:[#allocation2 + $0x110] sm:$0xff]
        %v616 = vld [vmem:[#allocation2 + $0x118] sm:$0x3]
        %v617 = vld [vmem:[#allocation2 + $0x120] sm:$0xff]
        %v618 = vld [vmem:[#allocation2 + $0x128] sm:$0xff]
        %v619 = vld [vmem:[#allocation2 + $0x130] sm:$0xff]
        %v620 = vld [vmem:[#allocation2 + $0x138] sm:$0x3]
        %v621 = vld [vmem:[#allocation2 + $0x140] sm:$0xff]
        %v622 = vld [vmem:[#allocation2 + $0x148] sm:$0xff]
        %v623 = vld [vmem:[#allocation2 + $0x150] sm:$0xff]
        %v624 = vld [vmem:[#allocation2 + $0x158] sm:$0x3]
        %v625 = vld [vmem:[#allocation2 + $0x160] sm:$0xff]
        %v626 = vld [vmem:[#allocation2 + $0x168] sm:$0xff]
        %v627 = vld [vmem:[#allocation2 + $0x170] sm:$0xff]
        %v628 = vld [vmem:[#allocation2 + $0x178] sm:$0x3]
        %v629 = vld [vmem:[#allocation2 + $0x180] sm:$0xff]
        %v630 = vld [vmem:[#allocation2 + $0x188] sm:$0xff]
        %v631 = vld [vmem:[#allocation2 + $0x190] sm:$0xff]
        %v632 = vld [vmem:[#allocation2 + $0x198] sm:$0x3]
        %v633 = vld [vmem:[#allocation2 + $0x1a0] sm:$0xff]
        %v634 = vld [vmem:[#allocation2 + $0x1a8] sm:$0xff]
        %v635 = vld [vmem:[#allocation2 + $0x1b0] sm:$0xff]
        %v636 = vld [vmem:[#allocation2 + $0x1b8] sm:$0x3]
        %v637 = vld [vmem:[#allocation2 + $0x1c0] sm:$0xff]
        %v638 = vld [vmem:[#allocation2 + $0x1c8] sm:$0xff]
        %v639 = vld [vmem:[#allocation2 + $0x1d0] sm:$0xff]
        %v640 = vld [vmem:[#allocation2 + $0x1d8] sm:$0x3]
        %v641 = vld [vmem:[#allocation2 + $0x1e0] sm:$0xff]
        %v642 = vld [vmem:[#allocation2 + $0x1e8] sm:$0xff]
        %v643 = vld [vmem:[#allocation2 + $0x1f0] sm:$0xff]
        %v644 = vld [vmem:[#allocation2 + $0x1f8] sm:$0x3]
        %v645 = vld [vmem:[#allocation2 + $0x200] sm:$0xff]
        %v646 = vld [vmem:[#allocation2 + $0x208] sm:$0xff]
        %v647 = vld [vmem:[#allocation2 + $0x210] sm:$0xff]
        %v648 = vld [vmem:[#allocation2 + $0x218] sm:$0x3]
        %v649 = vld [vmem:[#allocation2 + $0x220] sm:$0xff]
        %v650 = vld [vmem:[#allocation2 + $0x228] sm:$0xff]
        %v651 = vld [vmem:[#allocation2 + $0x230] sm:$0xff]
        %v652 = vld [vmem:[#allocation2 + $0x238] sm:$0x3]
        %v653 = vld [vmem:[#allocation2 + $0x240] sm:$0xff]
        %v654 = vld [vmem:[#allocation2 + $0x248] sm:$0xff]
        %v655 = vld [vmem:[#allocation2 + $0x250] sm:$0xff]
        %v656 = vld [vmem:[#allocation2 + $0x258] sm:$0x3]
        %v657 = vld [vmem:[#allocation2 + $0x260] sm:$0xff]
        %v658 = vld [vmem:[#allocation2 + $0x268] sm:$0xff]
        %v659 = vld [vmem:[#allocation2 + $0x270] sm:$0xff]
        %v660 = vld [vmem:[#allocation2 + $0x278] sm:$0x3]
        %v661 = vld [vmem:[#allocation2 + $0x280] sm:$0xff]
        %v662 = vld [vmem:[#allocation2 + $0x288] sm:$0xff]
        %v663 = vld [vmem:[#allocation2 + $0x290] sm:$0xff]
        %v664 = vld [vmem:[#allocation2 + $0x298] sm:$0x3]
        %v665 = vld [vmem:[#allocation2 + $0x2a0] sm:$0xff]
        %v666 = vld [vmem:[#allocation2 + $0x2a8] sm:$0xff]
        %v667 = vld [vmem:[#allocation2 + $0x2b0] sm:$0xff]
        %v668 = vld [vmem:[#allocation2 + $0x2b8] sm:$0x3]
        %v669 = vld [vmem:[#allocation2 + $0x2c0] sm:$0xff]
        %v670 = vld [vmem:[#allocation2 + $0x2c8] sm:$0xff]
        %v671 = vld [vmem:[#allocation2 + $0x2d0] sm:$0xff]
        %v672 = vld [vmem:[#allocation2 + $0x2d8] sm:$0x3]
        %v673 = vld [vmem:[#allocation2 + $0x2e0] sm:$0xff]
        %v674 = vld [vmem:[#allocation2 + $0x2e8] sm:$0xff]
        %v675 = vld [vmem:[#allocation2 + $0x2f0] sm:$0xff]
        %v676 = vld [vmem:[#allocation2 + $0x2f8] sm:$0x3]
        %v677 = vld [vmem:[#allocation2 + $0x300] sm:$0xff]
        %v678 = vld [vmem:[#allocation2 + $0x308] sm:$0xff]
        %v679 = vld [vmem:[#allocation2 + $0x310] sm:$0xff]
        %v680 = vld [vmem:[#allocation2 + $0x318] sm:$0x3]
        %v681 = vld [vmem:[#allocation2 + $0x320] sm:$0xff]
        %v682 = vld [vmem:[#allocation2 + $0x328] sm:$0xff]
        %v683 = vld [vmem:[#allocation2 + $0x330] sm:$0xff]
        %v684 = vld [vmem:[#allocation2 + $0x338] sm:$0x3]
        %v685 = vld [vmem:[%s2] sm:$0x7]
        %vm734 = vcmask 1043456
        %v735 = vrot.slane %v597, 4
        %v736 = vrot.slane %v598, 4
        %v737 = vsel %vm734, %v735, %v736
        %v738 = vrot.slane %v599, 4
        %v739 = vsel %vm734, %v736, %v738
        %v740 = vrot.slane %v601, 4
        %v741 = vrot.slane %v602, 4
        %v742 = vsel %vm734, %v740, %v741
        %v743 = vrot.slane %v603, 4
        %v744 = vsel %vm734, %v741, %v743
        %v745 = vrot.slane %v605, 4
        %v746 = vrot.slane %v606, 4
        %v747 = vsel %vm734, %v745, %v746
        %v748 = vrot.slane %v607, 4
        %v749 = vsel %vm734, %v746, %v748
        %v750 = vrot.slane %v609, 4
        %v751 = vrot.slane %v610, 4
        %v752 = vsel %vm734, %v750, %v751
        %v753 = vrot.slane %v611, 4
        %v754 = vsel %vm734, %v751, %v753
        %v755 = vrot.slane %v613, 4
        %v756 = vrot.slane %v614, 4
        %v757 = vsel %vm734, %v755, %v756
        %v758 = vrot.slane %v615, 4
        %v759 = vsel %vm734, %v756, %v758
        %v760 = vrot.slane %v617, 4
        %v761 = vrot.slane %v618, 4
        %v762 = vsel %vm734, %v760, %v761
        %v763 = vrot.slane %v619, 4
        %v764 = vsel %vm734, %v761, %v763
        %v765 = vrot.slane %v621, 4
        %v766 = vrot.slane %v622, 4
        %v767 = vsel %vm734, %v765, %v766
        %v768 = vrot.slane %v623, 4
        %v769 = vsel %vm734, %v766, %v768
        %v770 = vrot.slane %v625, 4
        %v771 = vrot.slane %v626, 4
        %v772 = vsel %vm734, %v770, %v771
        %v773 = vrot.slane %v627, 4
        %v774 = vsel %vm734, %v771, %v773
        %v775 = vrot.slane %v629, 4
        %v776 = vrot.slane %v630, 4
        %v777 = vsel %vm734, %v775, %v776
        %v778 = vrot.slane %v631, 4
        %v779 = vsel %vm734, %v776, %v778
        %v780 = vrot.slane %v633, 4
        %v781 = vrot.slane %v634, 4
        %v782 = vsel %vm734, %v780, %v781
        %v783 = vrot.slane %v635, 4
        %v784 = vsel %vm734, %v781, %v783
        %v785 = vrot.slane %v637, 4
        %v786 = vrot.slane %v638, 4
        %v787 = vsel %vm734, %v785, %v786
        %v788 = vrot.slane %v639, 4
        %v789 = vsel %vm734, %v786, %v788
        %v790 = vrot.slane %v641, 4
        %v791 = vrot.slane %v642, 4
        %v792 = vsel %vm734, %v790, %v791
        %v793 = vrot.slane %v643, 4
        %v794 = vsel %vm734, %v791, %v793
        %v795 = vrot.slane %v645, 4
        %v796 = vrot.slane %v646, 4
        %v797 = vsel %vm734, %v795, %v796
        %v798 = vrot.slane %v647, 4
        %v799 = vsel %vm734, %v796, %v798
        %v800 = vrot.slane %v649, 4
        %v801 = vrot.slane %v650, 4
        %v802 = vsel %vm734, %v800, %v801
        %v803 = vrot.slane %v651, 4
        %v804 = vsel %vm734, %v801, %v803
        %v805 = vrot.slane %v653, 4
        %v806 = vrot.slane %v654, 4
        %v807 = vsel %vm734, %v805, %v806
        %v808 = vrot.slane %v655, 4
        %v809 = vsel %vm734, %v806, %v808
        %v810 = vrot.slane %v657, 4
        %v811 = vrot.slane %v658, 4
        %v812 = vsel %vm734, %v810, %v811
        %v813 = vrot.slane %v659, 4
        %v814 = vsel %vm734, %v811, %v813
        %v847 = vpack.c.bf16 %v739, %v737
        %v848 = vpack.c.bf16 %v744, %v742
        %v849 = vpack.c.bf16 %v749, %v747
        %v850 = vpack.c.bf16 %v754, %v752
        %v851 = vpack.c.bf16 %v759, %v757
        %v852 = vpack.c.bf16 %v764, %v762
        %v853 = vpack.c.bf16 %v769, %v767
        %v854 = vpack.c.bf16 %v774, %v772
        %v855 = vpack.c.bf16 %v779, %v777
        %v856 = vpack.c.bf16 %v784, %v782
        %v857 = vpack.c.bf16 %v789, %v787
        %v858 = vpack.c.bf16 %v794, %v792
        %v859 = vpack.c.bf16 %v799, %v797
        %v860 = vpack.c.bf16 %v804, %v802
        %v861 = vpack.c.bf16 %v809, %v807
        %v862 = vpack.c.bf16 %v814, %v812
        %vm863 = vcmask 1042432
        %v864 = vrot.slane %v597, 5
        %v865 = vrot.slane %v598, 5
        %v866 = vsel %vm863, %v864, %v865
        %v867 = vrot.slane %v599, 5
        %v868 = vsel %vm863, %v865, %v867
        %v869 = vrot.slane %v601, 5
        %v870 = vrot.slane %v602, 5
        %v871 = vsel %vm863, %v869, %v870
        %v872 = vrot.slane %v603, 5
        %v873 = vsel %vm863, %v870, %v872
        %v874 = vrot.slane %v605, 5
        %v875 = vrot.slane %v606, 5
        %v876 = vsel %vm863, %v874, %v875
        %v877 = vrot.slane %v607, 5
        %v878 = vsel %vm863, %v875, %v877
        %v879 = vrot.slane %v609, 5
        %v880 = vrot.slane %v610, 5
        %v881 = vsel %vm863, %v879, %v880
        %v882 = vrot.slane %v611, 5
        %v883 = vsel %vm863, %v880, %v882
        %v884 = vrot.slane %v613, 5
        %v885 = vrot.slane %v614, 5
        %v886 = vsel %vm863, %v884, %v885
        %v887 = vrot.slane %v615, 5
        %v888 = vsel %vm863, %v885, %v887
        %v889 = vrot.slane %v617, 5
        %v890 = vrot.slane %v618, 5
        %v891 = vsel %vm863, %v889, %v890
        %v892 = vrot.slane %v619, 5
        %v893 = vsel %vm863, %v890, %v892
        %v894 = vrot.slane %v621, 5
        %v895 = vrot.slane %v622, 5
        %v896 = vsel %vm863, %v894, %v895
        %v897 = vrot.slane %v623, 5
        %v898 = vsel %vm863, %v895, %v897
        %v899 = vrot.slane %v625, 5
        %v900 = vrot.slane %v626, 5
        %v901 = vsel %vm863, %v899, %v900
        %v902 = vrot.slane %v627, 5
        %v903 = vsel %vm863, %v900, %v902
        %v904 = vrot.slane %v629, 5
        %v905 = vrot.slane %v630, 5
        %v906 = vsel %vm863, %v904, %v905
        %v907 = vrot.slane %v631, 5
        %v908 = vsel %vm863, %v905, %v907
        %v909 = vrot.slane %v633, 5
        %v910 = vrot.slane %v634, 5
        %v911 = vsel %vm863, %v909, %v910
        %v912 = vrot.slane %v635, 5
        %v913 = vsel %vm863, %v910, %v912
        %v914 = vrot.slane %v637, 5
        %v915 = vrot.slane %v638, 5
        %v916 = vsel %vm863, %v914, %v915
        %v917 = vrot.slane %v639, 5
        %v918 = vsel %vm863, %v915, %v917
        %v919 = vrot.slane %v641, 5
        %v920 = vrot.slane %v642, 5
        %v921 = vsel %vm863, %v919, %v920
        %v922 = vrot.slane %v643, 5
        %v923 = vsel %vm863, %v920, %v922
        %v924 = vrot.slane %v645, 5
        %v925 = vrot.slane %v646, 5
        %v926 = vsel %vm863, %v924, %v925
        %v927 = vrot.slane %v647, 5
        %v928 = vsel %vm863, %v925, %v927
        %v929 = vrot.slane %v649, 5
        %v930 = vrot.slane %v650, 5
        %v931 = vsel %vm863, %v929, %v930
        %v932 = vrot.slane %v651, 5
        %v933 = vsel %vm863, %v930, %v932
        %v934 = vrot.slane %v653, 5
        %v935 = vrot.slane %v654, 5
        %v936 = vsel %vm863, %v934, %v935
        %v937 = vrot.slane %v655, 5
        %v938 = vsel %vm863, %v935, %v937
        %v939 = vrot.slane %v657, 5
        %v940 = vrot.slane %v658, 5
        %v941 = vsel %vm863, %v939, %v940
        %v942 = vrot.slane %v659, 5
        %v943 = vsel %vm863, %v940, %v942
        %v976 = vpack.c.bf16 %v868, %v866
        %v977 = vpack.c.bf16 %v873, %v871
        %v978 = vpack.c.bf16 %v878, %v876
        %v979 = vpack.c.bf16 %v883, %v881
        %v980 = vpack.c.bf16 %v888, %v886
        %v981 = vpack.c.bf16 %v893, %v891
        %v982 = vpack.c.bf16 %v898, %v896
        %v983 = vpack.c.bf16 %v903, %v901
        %v984 = vpack.c.bf16 %v908, %v906
        %v985 = vpack.c.bf16 %v913, %v911
        %v986 = vpack.c.bf16 %v918, %v916
        %v987 = vpack.c.bf16 %v923, %v921
        %v988 = vpack.c.bf16 %v928, %v926
        %v989 = vpack.c.bf16 %v933, %v931
        %v990 = vpack.c.bf16 %v938, %v936
        %v991 = vpack.c.bf16 %v943, %v941
        %vm992 = vcmask 1041408
        %v993 = vrot.slane %v597, 6
        %v994 = vrot.slane %v598, 6
        %v995 = vsel %vm992, %v993, %v994
        %v996 = vrot.slane %v599, 6
        %v997 = vsel %vm992, %v994, %v996
        %v998 = vrot.slane %v601, 6
        %v999 = vrot.slane %v602, 6
        %v1000 = vsel %vm992, %v998, %v999
        %v1001 = vrot.slane %v603, 6
        %v1002 = vsel %vm992, %v999, %v1001
        %v1003 = vrot.slane %v605, 6
        %v1004 = vrot.slane %v606, 6
        %v1005 = vsel %vm992, %v1003, %v1004
        %v1006 = vrot.slane %v607, 6
        %v1007 = vsel %vm992, %v1004, %v1006
        %v1008 = vrot.slane %v609, 6
        %v1009 = vrot.slane %v610, 6
        %v1010 = vsel %vm992, %v1008, %v1009
        %v1011 = vrot.slane %v611, 6
        %v1012 = vsel %vm992, %v1009, %v1011
        %v1013 = vrot.slane %v613, 6
        %v1014 = vrot.slane %v614, 6
        %v1015 = vsel %vm992, %v1013, %v1014
        %v1016 = vrot.slane %v615, 6
        %v1017 = vsel %vm992, %v1014, %v1016
        %v1018 = vrot.slane %v617, 6
        %v1019 = vrot.slane %v618, 6
        %v1020 = vsel %vm992, %v1018, %v1019
        %v1021 = vrot.slane %v619, 6
        %v1022 = vsel %vm992, %v1019, %v1021
        %v1023 = vrot.slane %v621, 6
        %v1024 = vrot.slane %v622, 6
        %v1025 = vsel %vm992, %v1023, %v1024
        %v1026 = vrot.slane %v623, 6
        %v1027 = vsel %vm992, %v1024, %v1026
        %v1028 = vrot.slane %v625, 6
        %v1029 = vrot.slane %v626, 6
        %v1030 = vsel %vm992, %v1028, %v1029
        %v1031 = vrot.slane %v627, 6
        %v1032 = vsel %vm992, %v1029, %v1031
        %v1033 = vrot.slane %v629, 6
        %v1034 = vrot.slane %v630, 6
        %v1035 = vsel %vm992, %v1033, %v1034
        %v1036 = vrot.slane %v631, 6
        %v1037 = vsel %vm992, %v1034, %v1036
        %v1038 = vrot.slane %v633, 6
        %v1039 = vrot.slane %v634, 6
        %v1040 = vsel %vm992, %v1038, %v1039
        %v1041 = vrot.slane %v635, 6
        %v1042 = vsel %vm992, %v1039, %v1041
        %v1043 = vrot.slane %v637, 6
        %v1044 = vrot.slane %v638, 6
        %v1045 = vsel %vm992, %v1043, %v1044
        %v1046 = vrot.slane %v639, 6
        %v1047 = vsel %vm992, %v1044, %v1046
        %v1048 = vrot.slane %v641, 6
        %v1049 = vrot.slane %v642, 6
        %v1050 = vsel %vm992, %v1048, %v1049
        %v1051 = vrot.slane %v643, 6
        %v1052 = vsel %vm992, %v1049, %v1051
        %v1053 = vrot.slane %v645, 6
        %v1054 = vrot.slane %v646, 6
        %v1055 = vsel %vm992, %v1053, %v1054
        %v1056 = vrot.slane %v647, 6
        %v1057 = vsel %vm992, %v1054, %v1056
        %v1058 = vrot.slane %v649, 6
        %v1059 = vrot.slane %v650, 6
        %v1060 = vsel %vm992, %v1058, %v1059
        %v1061 = vrot.slane %v651, 6
        %v1062 = vsel %vm992, %v1059, %v1061
        %v1063 = vrot.slane %v653, 6
        %v1064 = vrot.slane %v654, 6
        %v1065 = vsel %vm992, %v1063, %v1064
        %v1066 = vrot.slane %v655, 6
        %v1067 = vsel %vm992, %v1064, %v1066
        %v1068 = vrot.slane %v657, 6
        %v1069 = vrot.slane %v658, 6
        %v1070 = vsel %vm992, %v1068, %v1069
        %v1071 = vrot.slane %v659, 6
        %v1072 = vsel %vm992, %v1069, %v1071
        %v1105 = vpack.c.bf16 %v997, %v995
        %v1106 = vpack.c.bf16 %v1002, %v1000
        %v1107 = vpack.c.bf16 %v1007, %v1005
        %v1108 = vpack.c.bf16 %v1012, %v1010
        %v1109 = vpack.c.bf16 %v1017, %v1015
        %v1110 = vpack.c.bf16 %v1022, %v1020
        %v1111 = vpack.c.bf16 %v1027, %v1025
        %v1112 = vpack.c.bf16 %v1032, %v1030
        %v1113 = vpack.c.bf16 %v1037, %v1035
        %v1114 = vpack.c.bf16 %v1042, %v1040
        %v1115 = vpack.c.bf16 %v1047, %v1045
        %v1116 = vpack.c.bf16 %v1052, %v1050
        %v1117 = vpack.c.bf16 %v1057, %v1055
        %v1118 = vpack.c.bf16 %v1062, %v1060
        %v1119 = vpack.c.bf16 %v1067, %v1065
        %v1120 = vpack.c.bf16 %v1072, %v1070
        %v1124 = vrot.slane %v661, 4
        %v1125 = vrot.slane %v662, 4
        %v1126 = vsel %vm734, %v1124, %v1125
        %v1127 = vrot.slane %v663, 4
        %v1128 = vsel %vm734, %v1125, %v1127
        %v1131 = vpack.c.bf16 %v1128, %v1126
        %v1132 = vrot.slane %v661, 5
        %v1133 = vrot.slane %v662, 5
        %v1134 = vsel %vm863, %v1132, %v1133
        %v1135 = vrot.slane %v663, 5
        %v1136 = vsel %vm863, %v1133, %v1135
        %v1139 = vpack.c.bf16 %v1136, %v1134
        %v1140 = vrot.slane %v661, 6
        %v1141 = vrot.slane %v662, 6
        %v1142 = vsel %vm992, %v1140, %v1141
        %v1143 = vrot.slane %v663, 6
        %v1144 = vsel %vm992, %v1141, %v1143
        %v1147 = vpack.c.bf16 %v1144, %v1142
        %v1151 = vrot.slane %v665, 4
        %v1152 = vrot.slane %v666, 4
        %v1153 = vsel %vm734, %v1151, %v1152
        %v1154 = vrot.slane %v667, 4
        %v1155 = vsel %vm734, %v1152, %v1154
        %v1158 = vpack.c.bf16 %v1155, %v1153
        %v1159 = vrot.slane %v665, 5
        %v1160 = vrot.slane %v666, 5
        %v1161 = vsel %vm863, %v1159, %v1160
        %v1162 = vrot.slane %v667, 5
        %v1163 = vsel %vm863, %v1160, %v1162
        %v1166 = vpack.c.bf16 %v1163, %v1161
        %v1167 = vrot.slane %v665, 6
        %v1168 = vrot.slane %v666, 6
        %v1169 = vsel %vm992, %v1167, %v1168
        %v1170 = vrot.slane %v667, 6
        %v1171 = vsel %vm992, %v1168, %v1170
        %v1174 = vpack.c.bf16 %v1171, %v1169
        %1191 = vrot.lane.b32.xlu0 %v976, 16
        %v1192 = vpop.permute.xlu0 %1191
        %1193 = vrot.lane.b32.xlu0 %v977, 16
        %v1194 = vpop.permute.xlu0 %1193
        %1195 = vrot.lane.b32.xlu0 %v978, 16
        %v1196 = vpop.permute.xlu0 %1195
        %1197 = vrot.lane.b32.xlu0 %v979, 16
        %v1198 = vpop.permute.xlu0 %1197
        %1199 = vrot.lane.b32.xlu0 %v980, 16
        %v1200 = vpop.permute.xlu0 %1199
        %1201 = vrot.lane.b32.xlu0 %v981, 16
        %v1202 = vpop.permute.xlu0 %1201
        %1203 = vrot.lane.b32.xlu0 %v982, 16
        %v1204 = vpop.permute.xlu0 %1203
        %1205 = vrot.lane.b32.xlu0 %v983, 16
        %v1206 = vpop.permute.xlu0 %1205
        %1207 = vrot.lane.b32.xlu0 %v984, 16
        %v1208 = vpop.permute.xlu0 %1207
        %1209 = vrot.lane.b32.xlu0 %v985, 16
        %v1210 = vpop.permute.xlu0 %1209
        %1211 = vrot.lane.b32.xlu0 %v986, 16
        %v1212 = vpop.permute.xlu0 %1211
        %1213 = vrot.lane.b32.xlu0 %v987, 16
        %v1214 = vpop.permute.xlu0 %1213
        %1215 = vrot.lane.b32.xlu0 %v988, 16
        %v1216 = vpop.permute.xlu0 %1215
        %1217 = vrot.lane.b32.xlu0 %v989, 16
        %v1218 = vpop.permute.xlu0 %1217
        %1219 = vrot.lane.b32.xlu0 %v990, 16
        %v1220 = vpop.permute.xlu0 %1219
        %1221 = vrot.lane.b32.xlu0 %v991, 16
        %v1222 = vpop.permute.xlu0 %1221
        %1239 = vrot.lane.b32.xlu0 %v1105, 32
        %v1240 = vpop.permute.xlu0 %1239
        %1241 = vrot.lane.b32.xlu0 %v1106, 32
        %v1242 = vpop.permute.xlu0 %1241
        %1243 = vrot.lane.b32.xlu0 %v1107, 32
        %v1244 = vpop.permute.xlu0 %1243
        %1245 = vrot.lane.b32.xlu0 %v1108, 32
        %v1246 = vpop.permute.xlu0 %1245
        %1247 = vrot.lane.b32.xlu0 %v1109, 32
        %v1248 = vpop.permute.xlu0 %1247
        %1249 = vrot.lane.b32.xlu0 %v1110, 32
        %v1250 = vpop.permute.xlu0 %1249
        %1251 = vrot.lane.b32.xlu0 %v1111, 32
        %v1252 = vpop.permute.xlu0 %1251
        %1253 = vrot.lane.b32.xlu0 %v1112, 32
        %v1254 = vpop.permute.xlu0 %1253
        %1255 = vrot.lane.b32.xlu0 %v1113, 32
        %v1256 = vpop.permute.xlu0 %1255
        %1257 = vrot.lane.b32.xlu0 %v1114, 32
        %v1258 = vpop.permute.xlu0 %1257
        %1259 = vrot.lane.b32.xlu0 %v1115, 32
        %v1260 = vpop.permute.xlu0 %1259
        %1261 = vrot.lane.b32.xlu0 %v1116, 32
        %v1262 = vpop.permute.xlu0 %1261
        %1263 = vrot.lane.b32.xlu0 %v1117, 32
        %v1264 = vpop.permute.xlu0 %1263
        %1265 = vrot.lane.b32.xlu0 %v1118, 32
        %v1266 = vpop.permute.xlu0 %1265
        %1267 = vrot.lane.b32.xlu0 %v1119, 32
        %v1268 = vpop.permute.xlu0 %1267
        %1269 = vrot.lane.b32.xlu0 %v1120, 32
        %v1270 = vpop.permute.xlu0 %1269
        %1287 = vrot.lane.b32.xlu0 %v848, 48
        %v1288 = vpop.permute.xlu0 %1287
        %1289 = vrot.lane.b32.xlu0 %v849, 48
        %v1290 = vpop.permute.xlu0 %1289
        %1291 = vrot.lane.b32.xlu0 %v850, 48
        %v1292 = vpop.permute.xlu0 %1291
        %1293 = vrot.lane.b32.xlu0 %v851, 48
        %v1294 = vpop.permute.xlu0 %1293
        %1295 = vrot.lane.b32.xlu0 %v852, 48
        %v1296 = vpop.permute.xlu0 %1295
        %1297 = vrot.lane.b32.xlu0 %v853, 48
        %v1298 = vpop.permute.xlu0 %1297
        %1299 = vrot.lane.b32.xlu0 %v854, 48
        %v1300 = vpop.permute.xlu0 %1299
        %1301 = vrot.lane.b32.xlu0 %v855, 48
        %v1302 = vpop.permute.xlu0 %1301
        %1303 = vrot.lane.b32.xlu0 %v856, 48
        %v1304 = vpop.permute.xlu0 %1303
        %1305 = vrot.lane.b32.xlu0 %v857, 48
        %v1306 = vpop.permute.xlu0 %1305
        %1307 = vrot.lane.b32.xlu0 %v858, 48
        %v1308 = vpop.permute.xlu0 %1307
        %1309 = vrot.lane.b32.xlu0 %v859, 48
        %v1310 = vpop.permute.xlu0 %1309
        %1311 = vrot.lane.b32.xlu0 %v860, 48
        %v1312 = vpop.permute.xlu0 %1311
        %1313 = vrot.lane.b32.xlu0 %v861, 48
        %v1314 = vpop.permute.xlu0 %1313
        %1315 = vrot.lane.b32.xlu0 %v862, 48
        %v1316 = vpop.permute.xlu0 %1315
        %1317 = vrot.lane.b32.xlu0 %v1131, 48
        %v1318 = vpop.permute.xlu0 %1317
        %1320 = vrot.lane.b32.xlu0 %v977, 64
        %v1321 = vpop.permute.xlu0 %1320
        %1322 = vrot.lane.b32.xlu0 %v978, 64
        %v1323 = vpop.permute.xlu0 %1322
        %1324 = vrot.lane.b32.xlu0 %v979, 64
        %v1325 = vpop.permute.xlu0 %1324
        %1326 = vrot.lane.b32.xlu0 %v980, 64
        %v1327 = vpop.permute.xlu0 %1326
        %1328 = vrot.lane.b32.xlu0 %v981, 64
        %v1329 = vpop.permute.xlu0 %1328
        %1330 = vrot.lane.b32.xlu0 %v982, 64
        %v1331 = vpop.permute.xlu0 %1330
        %1332 = vrot.lane.b32.xlu0 %v983, 64
        %v1333 = vpop.permute.xlu0 %1332
        %1334 = vrot.lane.b32.xlu0 %v984, 64
        %v1335 = vpop.permute.xlu0 %1334
        %1336 = vrot.lane.b32.xlu0 %v985, 64
        %v1337 = vpop.permute.xlu0 %1336
        %1338 = vrot.lane.b32.xlu0 %v986, 64
        %v1339 = vpop.permute.xlu0 %1338
        %1340 = vrot.lane.b32.xlu0 %v987, 64
        %v1341 = vpop.permute.xlu0 %1340
        %1342 = vrot.lane.b32.xlu0 %v988, 64
        %v1343 = vpop.permute.xlu0 %1342
        %1344 = vrot.lane.b32.xlu0 %v989, 64
        %v1345 = vpop.permute.xlu0 %1344
        %1346 = vrot.lane.b32.xlu0 %v990, 64
        %v1347 = vpop.permute.xlu0 %1346
        %1348 = vrot.lane.b32.xlu0 %v991, 64
        %v1349 = vpop.permute.xlu0 %1348
        %1350 = vrot.lane.b32.xlu0 %v1139, 64
        %v1351 = vpop.permute.xlu0 %1350
        %1353 = vrot.lane.b32.xlu0 %v1106, 80
        %v1354 = vpop.permute.xlu0 %1353
        %1355 = vrot.lane.b32.xlu0 %v1107, 80
        %v1356 = vpop.permute.xlu0 %1355
        %1357 = vrot.lane.b32.xlu0 %v1108, 80
        %v1358 = vpop.permute.xlu0 %1357
        %1359 = vrot.lane.b32.xlu0 %v1109, 80
        %v1360 = vpop.permute.xlu0 %1359
        %1361 = vrot.lane.b32.xlu0 %v1110, 80
        %v1362 = vpop.permute.xlu0 %1361
        %1363 = vrot.lane.b32.xlu0 %v1111, 80
        %v1364 = vpop.permute.xlu0 %1363
        %1365 = vrot.lane.b32.xlu0 %v1112, 80
        %v1366 = vpop.permute.xlu0 %1365
        %1367 = vrot.lane.b32.xlu0 %v1113, 80
        %v1368 = vpop.permute.xlu0 %1367
        %1369 = vrot.lane.b32.xlu0 %v1114, 80
        %v1370 = vpop.permute.xlu0 %1369
        %1371 = vrot.lane.b32.xlu0 %v1115, 80
        %v1372 = vpop.permute.xlu0 %1371
        %1373 = vrot.lane.b32.xlu0 %v1116, 80
        %v1374 = vpop.permute.xlu0 %1373
        %1375 = vrot.lane.b32.xlu0 %v1117, 80
        %v1376 = vpop.permute.xlu0 %1375
        %1377 = vrot.lane.b32.xlu0 %v1118, 80
        %v1378 = vpop.permute.xlu0 %1377
        %1379 = vrot.lane.b32.xlu0 %v1119, 80
        %v1380 = vpop.permute.xlu0 %1379
        %1381 = vrot.lane.b32.xlu0 %v1120, 80
        %v1382 = vpop.permute.xlu0 %1381
        %1383 = vrot.lane.b32.xlu0 %v1147, 80
        %v1384 = vpop.permute.xlu0 %1383
        %1386 = vrot.lane.b32.xlu0 %v849, 96
        %v1387 = vpop.permute.xlu0 %1386
        %1388 = vrot.lane.b32.xlu0 %v850, 96
        %v1389 = vpop.permute.xlu0 %1388
        %1390 = vrot.lane.b32.xlu0 %v851, 96
        %v1391 = vpop.permute.xlu0 %1390
        %1392 = vrot.lane.b32.xlu0 %v852, 96
        %v1393 = vpop.permute.xlu0 %1392
        %1394 = vrot.lane.b32.xlu0 %v853, 96
        %v1395 = vpop.permute.xlu0 %1394
        %1396 = vrot.lane.b32.xlu0 %v854, 96
        %v1397 = vpop.permute.xlu0 %1396
        %1398 = vrot.lane.b32.xlu0 %v855, 96
        %v1399 = vpop.permute.xlu0 %1398
        %1400 = vrot.lane.b32.xlu0 %v856, 96
        %v1401 = vpop.permute.xlu0 %1400
        %1402 = vrot.lane.b32.xlu0 %v857, 96
        %v1403 = vpop.permute.xlu0 %1402
        %1404 = vrot.lane.b32.xlu0 %v858, 96
        %v1405 = vpop.permute.xlu0 %1404
        %1406 = vrot.lane.b32.xlu0 %v859, 96
        %v1407 = vpop.permute.xlu0 %1406
        %1408 = vrot.lane.b32.xlu0 %v860, 96
        %v1409 = vpop.permute.xlu0 %1408
        %1410 = vrot.lane.b32.xlu0 %v861, 96
        %v1411 = vpop.permute.xlu0 %1410
        %1412 = vrot.lane.b32.xlu0 %v862, 96
        %v1413 = vpop.permute.xlu0 %1412
        %1414 = vrot.lane.b32.xlu0 %v1131, 96
        %v1415 = vpop.permute.xlu0 %1414
        %1416 = vrot.lane.b32.xlu0 %v1158, 96
        %v1417 = vpop.permute.xlu0 %1416
        %1419 = vrot.lane.b32.xlu0 %v978, 112
        %v1420 = vpop.permute.xlu0 %1419
        %1421 = vrot.lane.b32.xlu0 %v979, 112
        %v1422 = vpop.permute.xlu0 %1421
        %1423 = vrot.lane.b32.xlu0 %v980, 112
        %v1424 = vpop.permute.xlu0 %1423
        %1425 = vrot.lane.b32.xlu0 %v981, 112
        %v1426 = vpop.permute.xlu0 %1425
        %1427 = vrot.lane.b32.xlu0 %v982, 112
        %v1428 = vpop.permute.xlu0 %1427
        %1429 = vrot.lane.b32.xlu0 %v983, 112
        %v1430 = vpop.permute.xlu0 %1429
        %1431 = vrot.lane.b32.xlu0 %v984, 112
        %v1432 = vpop.permute.xlu0 %1431
        %1433 = vrot.lane.b32.xlu0 %v985, 112
        %v1434 = vpop.permute.xlu0 %1433
        %1435 = vrot.lane.b32.xlu0 %v986, 112
        %v1436 = vpop.permute.xlu0 %1435
        %1437 = vrot.lane.b32.xlu0 %v987, 112
        %v1438 = vpop.permute.xlu0 %1437
        %1439 = vrot.lane.b32.xlu0 %v988, 112
        %v1440 = vpop.permute.xlu0 %1439
        %1441 = vrot.lane.b32.xlu0 %v989, 112
        %v1442 = vpop.permute.xlu0 %1441
        %1443 = vrot.lane.b32.xlu0 %v990, 112
        %v1444 = vpop.permute.xlu0 %1443
        %1445 = vrot.lane.b32.xlu0 %v991, 112
        %v1446 = vpop.permute.xlu0 %1445
        %1447 = vrot.lane.b32.xlu0 %v1139, 112
        %v1448 = vpop.permute.xlu0 %1447
        %1449 = vrot.lane.b32.xlu0 %v1166, 112
        %v1450 = vpop.permute.xlu0 %1449
        %v1453 = vsel %vm410, %v847, %v1192
        %v1456 = vsel %vm410, %v848, %v1194
        %v1459 = vsel %vm410, %v849, %v1196
        %v1462 = vsel %vm410, %v850, %v1198
        %v1465 = vsel %vm410, %v851, %v1200
        %v1468 = vsel %vm410, %v852, %v1202
        %v1471 = vsel %vm410, %v853, %v1204
        %v1474 = vsel %vm410, %v854, %v1206
        %v1477 = vsel %vm410, %v855, %v1208
        %v1480 = vsel %vm410, %v856, %v1210
        %v1483 = vsel %vm410, %v857, %v1212
        %v1486 = vsel %vm410, %v858, %v1214
        %v1489 = vsel %vm410, %v859, %v1216
        %v1492 = vsel %vm410, %v860, %v1218
        %v1495 = vsel %vm410, %v861, %v1220
        %v1498 = vsel %vm410, %v862, %v1222
        %vm1499 = vcmask 261120
        %v1501 = vsel %vm1499, %v1453, %v1240
        %v1503 = vsel %vm1499, %v1456, %v1242
        %v1505 = vsel %vm1499, %v1459, %v1244
        %v1507 = vsel %vm1499, %v1462, %v1246
        %v1509 = vsel %vm1499, %v1465, %v1248
        %v1511 = vsel %vm1499, %v1468, %v1250
        %v1513 = vsel %vm1499, %v1471, %v1252
        %v1515 = vsel %vm1499, %v1474, %v1254
        %v1517 = vsel %vm1499, %v1477, %v1256
        %v1519 = vsel %vm1499, %v1480, %v1258
        %v1521 = vsel %vm1499, %v1483, %v1260
        %v1523 = vsel %vm1499, %v1486, %v1262
        %v1525 = vsel %vm1499, %v1489, %v1264
        %v1527 = vsel %vm1499, %v1492, %v1266
        %v1529 = vsel %vm1499, %v1495, %v1268
        %v1531 = vsel %vm1499, %v1498, %v1270
        %vm1532 = vcmask 392192
        %v1534 = vsel %vm1532, %v1501, %v1288
        %v1536 = vsel %vm1532, %v1503, %v1290
        %v1538 = vsel %vm1532, %v1505, %v1292
        %v1540 = vsel %vm1532, %v1507, %v1294
        %v1542 = vsel %vm1532, %v1509, %v1296
        %v1544 = vsel %vm1532, %v1511, %v1298
        %v1546 = vsel %vm1532, %v1513, %v1300
        %v1548 = vsel %vm1532, %v1515, %v1302
        %v1550 = vsel %vm1532, %v1517, %v1304
        %v1552 = vsel %vm1532, %v1519, %v1306
        %v1554 = vsel %vm1532, %v1521, %v1308
        %v1556 = vsel %vm1532, %v1523, %v1310
        %v1558 = vsel %vm1532, %v1525, %v1312
        %v1560 = vsel %vm1532, %v1527, %v1314
        %v1562 = vsel %vm1532, %v1529, %v1316
        %v1564 = vsel %vm1532, %v1531, %v1318
        %vm1565 = vcmask 523264
        %v1567 = vsel %vm1565, %v1534, %v1321
        %v1569 = vsel %vm1565, %v1536, %v1323
        %v1571 = vsel %vm1565, %v1538, %v1325
        %v1573 = vsel %vm1565, %v1540, %v1327
        %v1575 = vsel %vm1565, %v1542, %v1329
        %v1577 = vsel %vm1565, %v1544, %v1331
        %v1579 = vsel %vm1565, %v1546, %v1333
        %v1581 = vsel %vm1565, %v1548, %v1335
        %v1583 = vsel %vm1565, %v1550, %v1337
        %v1585 = vsel %vm1565, %v1552, %v1339
        %v1587 = vsel %vm1565, %v1554, %v1341
        %v1589 = vsel %vm1565, %v1556, %v1343
        %v1591 = vsel %vm1565, %v1558, %v1345
        %v1593 = vsel %vm1565, %v1560, %v1347
        %v1595 = vsel %vm1565, %v1562, %v1349
        %v1597 = vsel %vm1565, %v1564, %v1351
        %vm1598 = vcmask 654336
        %v1600 = vsel %vm1598, %v1567, %v1354
        %v1602 = vsel %vm1598, %v1569, %v1356
        %v1604 = vsel %vm1598, %v1571, %v1358
        %v1606 = vsel %vm1598, %v1573, %v1360
        %v1608 = vsel %vm1598, %v1575, %v1362
        %v1610 = vsel %vm1598, %v1577, %v1364
        %v1612 = vsel %vm1598, %v1579, %v1366
        %v1614 = vsel %vm1598, %v1581, %v1368
        %v1616 = vsel %vm1598, %v1583, %v1370
        %v1618 = vsel %vm1598, %v1585, %v1372
        %v1620 = vsel %vm1598, %v1587, %v1374
        %v1622 = vsel %vm1598, %v1589, %v1376
        %v1624 = vsel %vm1598, %v1591, %v1378
        %v1626 = vsel %vm1598, %v1593, %v1380
        %v1628 = vsel %vm1598, %v1595, %v1382
        %v1630 = vsel %vm1598, %v1597, %v1384
        %vm1631 = vcmask 785408
        %v1633 = vsel %vm1631, %v1600, %v1387
        %v1635 = vsel %vm1631, %v1602, %v1389
        %v1637 = vsel %vm1631, %v1604, %v1391
        %v1639 = vsel %vm1631, %v1606, %v1393
        %v1641 = vsel %vm1631, %v1608, %v1395
        %v1643 = vsel %vm1631, %v1610, %v1397
        %v1645 = vsel %vm1631, %v1612, %v1399
        %v1647 = vsel %vm1631, %v1614, %v1401
        %v1649 = vsel %vm1631, %v1616, %v1403
        %v1651 = vsel %vm1631, %v1618, %v1405
        %v1653 = vsel %vm1631, %v1620, %v1407
        %v1655 = vsel %vm1631, %v1622, %v1409
        %v1657 = vsel %vm1631, %v1624, %v1411
        %v1659 = vsel %vm1631, %v1626, %v1413
        %v1661 = vsel %vm1631, %v1628, %v1415
        %v1663 = vsel %vm1631, %v1630, %v1417
        %vm1664 = vcmask 916480
        %v1666 = vsel %vm1664, %v1633, %v1420
        %v1669 = vsel %vm1664, %v1635, %v1422
        %v1672 = vsel %vm1664, %v1637, %v1424
        %v1675 = vsel %vm1664, %v1639, %v1426
        %v1678 = vsel %vm1664, %v1641, %v1428
        %v1681 = vsel %vm1664, %v1643, %v1430
        %v1684 = vsel %vm1664, %v1645, %v1432
        %v1687 = vsel %vm1664, %v1647, %v1434
        %v1690 = vsel %vm1664, %v1649, %v1436
        %v1693 = vsel %vm1664, %v1651, %v1438
        %v1696 = vsel %vm1664, %v1653, %v1440
        %v1699 = vsel %vm1664, %v1655, %v1442
        %v1702 = vsel %vm1664, %v1657, %v1444
        %v1705 = vsel %vm1664, %v1659, %v1446
        %v1708 = vsel %vm1664, %v1661, %v1448
        %v1711 = vsel %vm1664, %v1663, %v1450
        %v1713 = vld [vmem:[#allocation6] sm:$0xf]
        %v1714 = vld [vmem:[#allocation6 + $0x4] sm:$0xf]
        %v1715 = vld [vmem:[#allocation6 + $0x8] sm:$0xf]
        %v1716 = vld [vmem:[#allocation6 + $0xc] sm:$0xf]
        %v1717 = vld [vmem:[#allocation6 + $0x10] sm:$0xf]
        %v1718 = vld [vmem:[#allocation6 + $0x14] sm:$0xf]
        %v1719 = vld [vmem:[#allocation6 + $0x18] sm:$0xf]
        %v1720 = vld [vmem:[#allocation6 + $0x1c] sm:$0xf]
        %v1721 = vld [vmem:[#allocation6 + $0x20] sm:$0xf]
        %v1722 = vld [vmem:[#allocation6 + $0x24] sm:$0xf]
        %v1723 = vld [vmem:[#allocation6 + $0x28] sm:$0xf]
        %v1724 = vld [vmem:[#allocation6 + $0x2c] sm:$0xf]
        %v1725 = vld [vmem:[#allocation6 + $0x30] sm:$0xf]
        %v1726 = vld [vmem:[#allocation6 + $0x34] sm:$0xf]
        %v1727 = vld [vmem:[#allocation6 + $0x38] sm:$0xf]
        %v1728 = vld [vmem:[#allocation6 + $0x3c] sm:$0xf]
        %v1729 = vld [vmem:[#allocation6 + $0x40] sm:$0xf]
        %v1730 = vld [vmem:[#allocation6 + $0x44] sm:$0xf]
        %v1731 = vlaneseq
        %v1732 = vshrl.u32 %v1731, 7
        %v1733 = vsub.s32 0, %v1732
        %v1734 = vrot.slane %v685, %v1733
        %v1753 = vunpack.c.l.b16 %v1713
        %v1754 = vunpack.c.l.b16 %v1714
        %v1755 = vunpack.c.l.b16 %v1715
        %v1756 = vunpack.c.l.b16 %v1716
        %v1757 = vunpack.c.l.b16 %v1717
        %v1758 = vunpack.c.l.b16 %v1718
        %v1759 = vunpack.c.l.b16 %v1719
        %v1760 = vunpack.c.l.b16 %v1720
        %v1761 = vunpack.c.l.b16 %v1721
        %v1762 = vunpack.c.l.b16 %v1722
        %v1763 = vunpack.c.l.b16 %v1723
        %v1764 = vunpack.c.l.b16 %v1724
        %v1765 = vunpack.c.l.b16 %v1725
        %v1766 = vunpack.c.l.b16 %v1726
        %v1767 = vunpack.c.l.b16 %v1727
        %v1768 = vunpack.c.l.b16 %v1728
        %v1769 = vunpack.c.l.b16 %v1729
        %v1770 = vunpack.c.l.b16 %v1730
        %v1771 = vpack.c.b16 %v1754, %v1753
        %v1772 = vpack.c.b16 %v1756, %v1755
        %v1773 = vpack.c.b16 %v1758, %v1757
        %v1774 = vpack.c.b16 %v1760, %v1759
        %v1775 = vpack.c.b16 %v1762, %v1761
        %v1776 = vpack.c.b16 %v1764, %v1763
        %v1777 = vpack.c.b16 %v1766, %v1765
        %v1778 = vpack.c.b16 %v1768, %v1767
        %v1779 = vpack.c.b16 %v1770, %v1769
        %v1790 = vsel %vm410, %v1107, 0
        %v1793 = vsel %vm410, %v1108, 0
        %v1796 = vsel %vm410, %v1109, 0
        %v1799 = vsel %vm410, %v1110, 0
        %v1802 = vsel %vm410, %v1111, 0
        %v1805 = vsel %vm410, %v1112, 0
        %v1808 = vsel %vm410, %v1113, 0
        %v1811 = vsel %vm410, %v1114, 0
        %v1814 = vsel %vm410, %v1115, 0
        %v1817 = vsel %vm410, %v1116, 0
        %v1820 = vsel %vm410, %v1117, 0
        %v1823 = vsel %vm410, %v1118, 0
        %v1826 = vsel %vm410, %v1119, 0
        %v1829 = vsel %vm410, %v1120, 0
        %v1832 = vsel %vm410, %v1147, 0
        %v1835 = vsel %vm410, %v1174, 0
        %1837 = vmatprep.subr.bf16.mxu0 0
        %1838 = vmatpush1.bf16.msra.mxu0 %v1771
        %1839 = vmatprep.subr.bf16.mxu0 0
        %1840 = vmatpush1.bf16.msra.mxu0 %v1772
        %1841 = vmatprep.subr.bf16.mxu0 0
        %1842 = vmatpush1.bf16.msra.mxu0 %v1773
        %1843 = vmatprep.subr.bf16.mxu0 0
        %1844 = vmatpush1.bf16.msra.mxu0 %v1774
        %1845 = vmatprep.subr.bf16.mxu0 0
        %1846 = vmatpush1.bf16.msra.mxu0 %v1775
        %1847 = vmatprep.subr.bf16.mxu0 0
        %1848 = vmatpush1.bf16.msra.mxu0 %v1776
        %1849 = vmatprep.subr.bf16.mxu0 0
        %1850 = vmatpush1.bf16.msra.mxu0 %v1777
        %1851 = vmatprep.subr.bf16.mxu0 0
        %1852 = vmatpush1.bf16.msra.mxu0 %v1778
        %1853 = vmatprep.subr.bf16.mxu0 0
        %1854 = vmatpush1.bf16.msra.mxu0 %v1779
        %1855 = vmatprep.subr.bf16.mxu0 0
        %1856 = vmatpush1.bf16.msra.mxu0 0
        %1857 = vmatprep.subr.bf16.mxu0 0
        %1858 = vmatpush1.bf16.msra.mxu0 0
        %1859 = vmatprep.subr.bf16.mxu0 0
        %1860 = vmatpush1.bf16.msra.mxu0 0
        %1861 = vmatprep.subr.bf16.mxu0 0
        %1862 = vmatpush1.bf16.msra.mxu0 0
        %1863 = vmatprep.subr.bf16.mxu0 0
        %1864 = vmatpush1.bf16.msra.mxu0 0
        %1865 = vmatprep.subr.bf16.mxu0 0
        %1866 = vmatpush1.bf16.msra.mxu0 0
        %1867 = vmatprep.subr.bf16.mxu0 0
        %1868 = vmatpush1.bf16.msra.mxu0 0
        %1869 = vmatprep.mubr.bf16.mxu0 %v1790
        %1870 = vmatmul.mubr.bf16.gmra.mrb[0].mxu0 %v1666
        %v1871 = vpop.f32.mrb[0].mxu0
        %v1872 = vadd.f32 %v1734, %v1871
        %v1873 = vpop.f32.mrb[0].mxu0
        %v1874 = vpop.f32.mrb[0].mxu0
        %v1875 = vadd.f32 %v1734, %v1874
        %v1876 = vpop.f32.mrb[0].mxu0
        %1877 = vmatprep.mubr.bf16.mxu0 %v1793
        %1878 = vmatmul.mubr.bf16.gmra.mrb[0].mxu0 %v1669
        %v1879 = vpop.f32.mrb[0].mxu0
        %v1880 = vadd.f32 %v1734, %v1879
        %v1881 = vpop.f32.mrb[0].mxu0
        %v1882 = vpop.f32.mrb[0].mxu0
        %v1883 = vadd.f32 %v1734, %v1882
        %v1884 = vpop.f32.mrb[0].mxu0
        %1885 = vmatprep.mubr.bf16.mxu0 %v1796
        %1886 = vmatmul.mubr.bf16.gmra.mrb[0].mxu0 %v1672
        %v1887 = vpop.f32.mrb[0].mxu0
        %v1888 = vadd.f32 %v1734, %v1887
        %v1889 = vpop.f32.mrb[0].mxu0
        %v1890 = vpop.f32.mrb[0].mxu0
        %v1891 = vadd.f32 %v1734, %v1890
        %v1892 = vpop.f32.mrb[0].mxu0
        %1893 = vmatprep.mubr.bf16.mxu0 %v1799
        %1894 = vmatmul.mubr.bf16.gmra.mrb[0].mxu0 %v1675
        %v1895 = vpop.f32.mrb[0].mxu0
        %v1896 = vadd.f32 %v1734, %v1895
        %v1897 = vpop.f32.mrb[0].mxu0
        %v1898 = vpop.f32.mrb[0].mxu0
        %v1899 = vadd.f32 %v1734, %v1898
        %v1900 = vpop.f32.mrb[0].mxu0
        %1901 = vmatprep.mubr.bf16.mxu0 %v1802
        %1902 = vmatmul.mubr.bf16.gmra.mrb[0].mxu0 %v1678
        %v1903 = vpop.f32.mrb[0].mxu0
        %v1904 = vadd.f32 %v1734, %v1903
        %v1905 = vpop.f32.mrb[0].mxu0
        %v1906 = vpop.f32.mrb[0].mxu0
        %v1907 = vadd.f32 %v1734, %v1906
        %v1908 = vpop.f32.mrb[0].mxu0
        %1909 = vmatprep.mubr.bf16.mxu0 %v1805
        %1910 = vmatmul.mubr.bf16.gmra.mrb[0].mxu0 %v1681
        %v1911 = vpop.f32.mrb[0].mxu0
        %v1912 = vadd.f32 %v1734, %v1911
        %v1913 = vpop.f32.mrb[0].mxu0
        %v1914 = vpop.f32.mrb[0].mxu0
        %v1915 = vadd.f32 %v1734, %v1914
        %v1916 = vpop.f32.mrb[0].mxu0
        %1917 = vmatprep.mubr.bf16.mxu0 %v1808
        %1918 = vmatmul.mubr.bf16.gmra.mrb[0].mxu0 %v1684
        %v1919 = vpop.f32.mrb[0].mxu0
        %v1920 = vadd.f32 %v1734, %v1919
        %v1921 = vpop.f32.mrb[0].mxu0
        %v1922 = vpop.f32.mrb[0].mxu0
        %v1923 = vadd.f32 %v1734, %v1922
        %v1924 = vpop.f32.mrb[0].mxu0
        %1925 = vmatprep.mubr.bf16.mxu0 %v1811
        %1926 = vmatmul.mubr.bf16.gmra.mrb[0].mxu0 %v1687
        %v1927 = vpop.f32.mrb[0].mxu0
        %v1928 = vadd.f32 %v1734, %v1927
        %v1929 = vpop.f32.mrb[0].mxu0
        %v1930 = vpop.f32.mrb[0].mxu0
        %v1931 = vadd.f32 %v1734, %v1930
        %v1932 = vpop.f32.mrb[0].mxu0
        %1933 = vmatprep.mubr.bf16.mxu0 %v1814
        %1934 = vmatmul.mubr.bf16.gmra.mrb[0].mxu0 %v1690
        %v1935 = vpop.f32.mrb[0].mxu0
        %v1936 = vadd.f32 %v1734, %v1935
        %v1937 = vpop.f32.mrb[0].mxu0
        %v1938 = vpop.f32.mrb[0].mxu0
        %v1939 = vadd.f32 %v1734, %v1938
        %v1940 = vpop.f32.mrb[0].mxu0
        %1941 = vmatprep.mubr.bf16.mxu0 %v1817
        %1942 = vmatmul.mubr.bf16.gmra.mrb[0].mxu0 %v1693
        %v1943 = vpop.f32.mrb[0].mxu0
        %v1944 = vadd.f32 %v1734, %v1943
        %v1945 = vpop.f32.mrb[0].mxu0
        %v1946 = vpop.f32.mrb[0].mxu0
        %v1947 = vadd.f32 %v1734, %v1946
        %v1948 = vpop.f32.mrb[0].mxu0
        %1949 = vmatprep.mubr.bf16.mxu0 %v1820
        %1950 = vmatmul.mubr.bf16.gmra.mrb[0].mxu0 %v1696
        %v1951 = vpop.f32.mrb[0].mxu0
        %v1952 = vadd.f32 %v1734, %v1951
        %v1953 = vpop.f32.mrb[0].mxu0
        %v1954 = vpop.f32.mrb[0].mxu0
        %v1955 = vadd.f32 %v1734, %v1954
        %v1956 = vpop.f32.mrb[0].mxu0
        %1957 = vmatprep.mubr.bf16.mxu0 %v1823
        %1958 = vmatmul.mubr.bf16.gmra.mrb[0].mxu0 %v1699
        %v1959 = vpop.f32.mrb[0].mxu0
        %v1960 = vadd.f32 %v1734, %v1959
        %v1961 = vpop.f32.mrb[0].mxu0
        %v1962 = vpop.f32.mrb[0].mxu0
        %v1963 = vadd.f32 %v1734, %v1962
        %v1964 = vpop.f32.mrb[0].mxu0
        %1965 = vmatprep.mubr.bf16.mxu0 %v1826
        %1966 = vmatmul.mubr.bf16.gmra.mrb[0].mxu0 %v1702
        %v1967 = vpop.f32.mrb[0].mxu0
        %v1968 = vadd.f32 %v1734, %v1967
        %v1969 = vpop.f32.mrb[0].mxu0
        %v1970 = vpop.f32.mrb[0].mxu0
        %v1971 = vadd.f32 %v1734, %v1970
        %v1972 = vpop.f32.mrb[0].mxu0
        %1973 = vmatprep.mubr.bf16.mxu0 %v1829
        %1974 = vmatmul.mubr.bf16.gmra.mrb[0].mxu0 %v1705
        %v1975 = vpop.f32.mrb[0].mxu0
        %v1976 = vadd.f32 %v1734, %v1975
        %v1977 = vpop.f32.mrb[0].mxu0
        %v1978 = vpop.f32.mrb[0].mxu0
        %v1979 = vadd.f32 %v1734, %v1978
        %v1980 = vpop.f32.mrb[0].mxu0
        %1981 = vmatprep.mubr.bf16.mxu0 %v1832
        %1982 = vmatmul.mubr.bf16.gmra.mrb[0].mxu0 %v1708
        %v1983 = vpop.f32.mrb[0].mxu0
        %v1984 = vadd.f32 %v1734, %v1983
        %v1985 = vpop.f32.mrb[0].mxu0
        %v1986 = vpop.f32.mrb[0].mxu0
        %v1987 = vadd.f32 %v1734, %v1986
        %v1988 = vpop.f32.mrb[0].mxu0
        %1989 = vmatprep.mubr.bf16.mxu0 %v1835
        %1990 = vmatmul.mubr.bf16.gmra.mrb[0].mxu0 %v1711
        %v1991 = vpop.f32.mrb[0].mxu0
        %v1992 = vadd.f32 %v1734, %v1991
        %v1993 = vpop.f32.mrb[0].mxu0
        %v1994 = vpop.f32.mrb[0].mxu0
        %v1995 = vadd.f32 %v1734, %v1994
        %v1996 = vpop.f32.mrb[0].mxu0
        %1997 = vdwg.mxu0
        %v1998 = vmax.f32 %v1872, 0.0
        %v1999 = vmax.f32 %v1875, 0.0
        %v2000 = vmax.f32 %v1880, 0.0
        %v2001 = vmax.f32 %v1883, 0.0
        %v2002 = vmax.f32 %v1888, 0.0
        %v2003 = vmax.f32 %v1891, 0.0
        %v2004 = vmax.f32 %v1896, 0.0
        %v2005 = vmax.f32 %v1899, 0.0
        %v2006 = vmax.f32 %v1904, 0.0
        %v2007 = vmax.f32 %v1907, 0.0
        %v2008 = vmax.f32 %v1912, 0.0
        %v2009 = vmax.f32 %v1915, 0.0
        %v2010 = vmax.f32 %v1920, 0.0
        %v2011 = vmax.f32 %v1923, 0.0
        %v2012 = vmax.f32 %v1928, 0.0
        %v2013 = vmax.f32 %v1931, 0.0
        %v2014 = vmax.f32 %v1936, 0.0
        %v2015 = vmax.f32 %v1939, 0.0
        %v2016 = vmax.f32 %v1944, 0.0
        %v2017 = vmax.f32 %v1947, 0.0
        %v2018 = vmax.f32 %v1952, 0.0
        %v2019 = vmax.f32 %v1955, 0.0
        %v2020 = vmax.f32 %v1960, 0.0
        %v2021 = vmax.f32 %v1963, 0.0
        %v2022 = vmax.f32 %v1968, 0.0
        %v2023 = vmax.f32 %v1971, 0.0
        %v2024 = vmax.f32 %v1976, 0.0
        %v2025 = vmax.f32 %v1979, 0.0
        %v2026 = vmax.f32 %v1984, 0.0
        %v2027 = vmax.f32 %v1987, 0.0
        %v2028 = vmax.f32 %v1992, 0.0
        %v2029 = vmax.f32 %v1995, 0.0
        %vm2036 = vcmask 1045504
        %v2037 = vrot.slane %v589, 2
        %v2038 = vrot.slane %v590, 2
        %v2039 = vsel %vm2036, %v2037, %v2038
        %v2040 = vrot.slane %v591, 2
        %v2041 = vsel %vm2036, %v2038, %v2040
        %v2042 = vrot.slane %v593, 2
        %v2043 = vrot.slane %v594, 2
        %v2044 = vsel %vm2036, %v2042, %v2043
        %v2045 = vrot.slane %v595, 2
        %v2046 = vsel %vm2036, %v2043, %v2045
        %v2047 = vrot.slane %v597, 2
        %v2048 = vrot.slane %v598, 2
        %v2049 = vsel %vm2036, %v2047, %v2048
        %v2050 = vrot.slane %v599, 2
        %v2051 = vsel %vm2036, %v2048, %v2050
        %v2052 = vrot.slane %v601, 2
        %v2053 = vrot.slane %v602, 2
        %v2054 = vsel %vm2036, %v2052, %v2053
        %v2055 = vrot.slane %v603, 2
        %v2056 = vsel %vm2036, %v2053, %v2055
        %v2057 = vrot.slane %v605, 2
        %v2058 = vrot.slane %v606, 2
        %v2059 = vsel %vm2036, %v2057, %v2058
        %v2060 = vrot.slane %v607, 2
        %v2061 = vsel %vm2036, %v2058, %v2060
        %v2062 = vrot.slane %v609, 2
        %v2063 = vrot.slane %v610, 2
        %v2064 = vsel %vm2036, %v2062, %v2063
        %v2065 = vrot.slane %v611, 2
        %v2066 = vsel %vm2036, %v2063, %v2065
        %v2067 = vrot.slane %v613, 2
        %v2068 = vrot.slane %v614, 2
        %v2069 = vsel %vm2036, %v2067, %v2068
        %v2070 = vrot.slane %v615, 2
        %v2071 = vsel %vm2036, %v2068, %v2070
        %v2072 = vrot.slane %v617, 2
        %v2073 = vrot.slane %v618, 2
        %v2074 = vsel %vm2036, %v2072, %v2073
        %v2075 = vrot.slane %v619, 2
        %v2076 = vsel %vm2036, %v2073, %v2075
        %v2077 = vrot.slane %v621, 2
        %v2078 = vrot.slane %v622, 2
        %v2079 = vsel %vm2036, %v2077, %v2078
        %v2080 = vrot.slane %v623, 2
        %v2081 = vsel %vm2036, %v2078, %v2080
        %v2082 = vrot.slane %v625, 2
        %v2083 = vrot.slane %v626, 2
        %v2084 = vsel %vm2036, %v2082, %v2083
        %v2085 = vrot.slane %v627, 2
        %v2086 = vsel %vm2036, %v2083, %v2085
        %v2087 = vrot.slane %v629, 2
        %v2088 = vrot.slane %v630, 2
        %v2089 = vsel %vm2036, %v2087, %v2088
        %v2090 = vrot.slane %v631, 2
        %v2091 = vsel %vm2036, %v2088, %v2090
        %v2092 = vrot.slane %v633, 2
        %v2093 = vrot.slane %v634, 2
        %v2094 = vsel %vm2036, %v2092, %v2093
        %v2095 = vrot.slane %v635, 2
        %v2096 = vsel %vm2036, %v2093, %v2095
        %v2097 = vrot.slane %v637, 2
        %v2098 = vrot.slane %v638, 2
        %v2099 = vsel %vm2036, %v2097, %v2098
        %v2100 = vrot.slane %v639, 2
        %v2101 = vsel %vm2036, %v2098, %v2100
        %v2102 = vrot.slane %v641, 2
        %v2103 = vrot.slane %v642, 2
        %v2104 = vsel %vm2036, %v2102, %v2103
        %v2105 = vrot.slane %v643, 2
        %v2106 = vsel %vm2036, %v2103, %v2105
        %v2107 = vrot.slane %v645, 2
        %v2108 = vrot.slane %v646, 2
        %v2109 = vsel %vm2036, %v2107, %v2108
        %v2110 = vrot.slane %v647, 2
        %v2111 = vsel %vm2036, %v2108, %v2110
        %v2112 = vrot.slane %v649, 2
        %v2113 = vrot.slane %v650, 2
        %v2114 = vsel %vm2036, %v2112, %v2113
        %v2115 = vrot.slane %v651, 2
        %v2116 = vsel %vm2036, %v2113, %v2115
        %v2149 = vpack.c.bf16 %v2041, %v2039
        %v2150 = vpack.c.bf16 %v2046, %v2044
        %v2151 = vpack.c.bf16 %v2051, %v2049
        %v2152 = vpack.c.bf16 %v2056, %v2054
        %v2153 = vpack.c.bf16 %v2061, %v2059
        %v2154 = vpack.c.bf16 %v2066, %v2064
        %v2155 = vpack.c.bf16 %v2071, %v2069
        %v2156 = vpack.c.bf16 %v2076, %v2074
        %v2157 = vpack.c.bf16 %v2081, %v2079
        %v2158 = vpack.c.bf16 %v2086, %v2084
        %v2159 = vpack.c.bf16 %v2091, %v2089
        %v2160 = vpack.c.bf16 %v2096, %v2094
        %v2161 = vpack.c.bf16 %v2101, %v2099
        %v2162 = vpack.c.bf16 %v2106, %v2104
        %v2163 = vpack.c.bf16 %v2111, %v2109
        %v2164 = vpack.c.bf16 %v2116, %v2114
        %v2165 = vrot.slane %v589, 5
        %v2166 = vrot.slane %v590, 5
        %v2167 = vsel %vm863, %v2165, %v2166
        %v2168 = vrot.slane %v591, 5
        %v2169 = vsel %vm863, %v2166, %v2168
        %v2170 = vrot.slane %v593, 5
        %v2171 = vrot.slane %v594, 5
        %v2172 = vsel %vm863, %v2170, %v2171
        %v2173 = vrot.slane %v595, 5
        %v2174 = vsel %vm863, %v2171, %v2173
        %v2179 = vpack.c.bf16 %v2169, %v2167
        %v2180 = vpack.c.bf16 %v2174, %v2172
        %v2181 = vpack.c.bf16 %v591, %v590
        %v2182 = vpack.c.bf16 %v595, %v594
        %v2183 = vpack.c.bf16 %v599, %v598
        %v2184 = vpack.c.bf16 %v603, %v602
        %v2185 = vpack.c.bf16 %v607, %v606
        %v2186 = vpack.c.bf16 %v611, %v610
        %v2187 = vpack.c.bf16 %v615, %v614
        %v2188 = vpack.c.bf16 %v619, %v618
        %v2189 = vpack.c.bf16 %v623, %v622
        %v2190 = vpack.c.bf16 %v627, %v626
        %v2191 = vpack.c.bf16 %v631, %v630
        %v2192 = vpack.c.bf16 %v635, %v634
        %v2193 = vpack.c.bf16 %v639, %v638
        %v2194 = vpack.c.bf16 %v643, %v642
        %v2195 = vpack.c.bf16 %v647, %v646
        %v2196 = vpack.c.bf16 %v651, %v650
        %v2197 = vrot.slane %v653, 2
        %v2198 = vrot.slane %v654, 2
        %v2199 = vsel %vm2036, %v2197, %v2198
        %v2200 = vrot.slane %v655, 2
        %v2201 = vsel %vm2036, %v2198, %v2200
        %v2202 = vrot.slane %v657, 2
        %v2203 = vrot.slane %v658, 2
        %v2204 = vsel %vm2036, %v2202, %v2203
        %v2205 = vrot.slane %v659, 2
        %v2206 = vsel %vm2036, %v2203, %v2205
        %v2207 = vrot.slane %v661, 2
        %v2208 = vrot.slane %v662, 2
        %v2209 = vsel %vm2036, %v2207, %v2208
        %v2210 = vrot.slane %v663, 2
        %v2211 = vsel %vm2036, %v2208, %v2210
        %v2218 = vpack.c.bf16 %v2201, %v2199
        %v2219 = vpack.c.bf16 %v2206, %v2204
        %v2220 = vpack.c.bf16 %v2211, %v2209
        %v2221 = vpack.c.bf16 %v655, %v654
        %v2222 = vpack.c.bf16 %v659, %v658
        %v2223 = vpack.c.bf16 %v663, %v662
        %v2230 = vrot.slane %v665, 2
        %v2231 = vrot.slane %v666, 2
        %v2232 = vsel %vm2036, %v2230, %v2231
        %v2233 = vrot.slane %v667, 2
        %v2234 = vsel %vm2036, %v2231, %v2233
        %v2235 = vrot.slane %v669, 2
        %v2236 = vrot.slane %v670, 2
        %v2237 = vsel %vm2036, %v2235, %v2236
        %v2238 = vrot.slane %v671, 2
        %v2239 = vsel %vm2036, %v2236, %v2238
        %v2240 = vrot.slane %v673, 2
        %v2241 = vrot.slane %v674, 2
        %v2242 = vsel %vm2036, %v2240, %v2241
        %v2243 = vrot.slane %v675, 2
        %v2244 = vsel %vm2036, %v2241, %v2243
        %v2251 = vpack.c.bf16 %v2234, %v2232
        %v2252 = vpack.c.bf16 %v2239, %v2237
        %v2253 = vpack.c.bf16 %v2244, %v2242
        %v2254 = vrot.slane %v669, 5
        %v2255 = vrot.slane %v670, 5
        %v2256 = vsel %vm863, %v2254, %v2255
        %v2257 = vrot.slane %v671, 5
        %v2258 = vsel %vm863, %v2255, %v2257
        %v2259 = vrot.slane %v673, 5
        %v2260 = vrot.slane %v674, 5
        %v2261 = vsel %vm863, %v2259, %v2260
        %v2262 = vrot.slane %v675, 5
        %v2263 = vsel %vm863, %v2260, %v2262
        %v2268 = vpack.c.bf16 %v2258, %v2256
        %v2269 = vpack.c.bf16 %v2263, %v2261
        %v2270 = vpack.c.bf16 %v667, %v666
        %v2271 = vpack.c.bf16 %v671, %v670
        %v2272 = vpack.c.bf16 %v675, %v674
        %2275 = vrot.lane.b32.xlu0 %v2179, 16
        %v2276 = vpop.permute.xlu0 %2275
        %2277 = vrot.lane.b32.xlu0 %v2180, 16
        %v2278 = vpop.permute.xlu0 %2277
        %2295 = vrot.lane.b32.xlu0 %v2181, 32
        %v2296 = vpop.permute.xlu0 %2295
        %2297 = vrot.lane.b32.xlu0 %v2182, 32
        %v2298 = vpop.permute.xlu0 %2297
        %2299 = vrot.lane.b32.xlu0 %v2183, 32
        %v2300 = vpop.permute.xlu0 %2299
        %2301 = vrot.lane.b32.xlu0 %v2184, 32
        %v2302 = vpop.permute.xlu0 %2301
        %2303 = vrot.lane.b32.xlu0 %v2185, 32
        %v2304 = vpop.permute.xlu0 %2303
        %2305 = vrot.lane.b32.xlu0 %v2186, 32
        %v2306 = vpop.permute.xlu0 %2305
        %2307 = vrot.lane.b32.xlu0 %v2187, 32
        %v2308 = vpop.permute.xlu0 %2307
        %2309 = vrot.lane.b32.xlu0 %v2188, 32
        %v2310 = vpop.permute.xlu0 %2309
        %2311 = vrot.lane.b32.xlu0 %v2189, 32
        %v2312 = vpop.permute.xlu0 %2311
        %2313 = vrot.lane.b32.xlu0 %v2190, 32
        %v2314 = vpop.permute.xlu0 %2313
        %2315 = vrot.lane.b32.xlu0 %v2191, 32
        %v2316 = vpop.permute.xlu0 %2315
        %2317 = vrot.lane.b32.xlu0 %v2192, 32
        %v2318 = vpop.permute.xlu0 %2317
        %2319 = vrot.lane.b32.xlu0 %v2193, 32
        %v2320 = vpop.permute.xlu0 %2319
        %2321 = vrot.lane.b32.xlu0 %v2194, 32
        %v2322 = vpop.permute.xlu0 %2321
        %2323 = vrot.lane.b32.xlu0 %v2195, 32
        %v2324 = vpop.permute.xlu0 %2323
        %2325 = vrot.lane.b32.xlu0 %v2196, 32
        %v2326 = vpop.permute.xlu0 %2325
        %2343 = vrot.lane.b32.xlu0 %v2152, 48
        %v2344 = vpop.permute.xlu0 %2343
        %2345 = vrot.lane.b32.xlu0 %v2153, 48
        %v2346 = vpop.permute.xlu0 %2345
        %2347 = vrot.lane.b32.xlu0 %v2154, 48
        %v2348 = vpop.permute.xlu0 %2347
        %2349 = vrot.lane.b32.xlu0 %v2155, 48
        %v2350 = vpop.permute.xlu0 %2349
        %2351 = vrot.lane.b32.xlu0 %v2156, 48
        %v2352 = vpop.permute.xlu0 %2351
        %2353 = vrot.lane.b32.xlu0 %v2157, 48
        %v2354 = vpop.permute.xlu0 %2353
        %2355 = vrot.lane.b32.xlu0 %v2158, 48
        %v2356 = vpop.permute.xlu0 %2355
        %2357 = vrot.lane.b32.xlu0 %v2159, 48
        %v2358 = vpop.permute.xlu0 %2357
        %2359 = vrot.lane.b32.xlu0 %v2160, 48
        %v2360 = vpop.permute.xlu0 %2359
        %2361 = vrot.lane.b32.xlu0 %v2161, 48
        %v2362 = vpop.permute.xlu0 %2361
        %2363 = vrot.lane.b32.xlu0 %v2162, 48
        %v2364 = vpop.permute.xlu0 %2363
        %2365 = vrot.lane.b32.xlu0 %v2163, 48
        %v2366 = vpop.permute.xlu0 %2365
        %2367 = vrot.lane.b32.xlu0 %v2164, 48
        %v2368 = vpop.permute.xlu0 %2367
        %2369 = vrot.lane.b32.xlu0 %v2218, 48
        %v2370 = vpop.permute.xlu0 %2369
        %2371 = vrot.lane.b32.xlu0 %v2219, 48
        %v2372 = vpop.permute.xlu0 %2371
        %2373 = vrot.lane.b32.xlu0 %v2220, 48
        %v2374 = vpop.permute.xlu0 %2373
        %2378 = vrot.lane.b32.xlu0 %v2184, 80
        %v2379 = vpop.permute.xlu0 %2378
        %2380 = vrot.lane.b32.xlu0 %v2185, 80
        %v2381 = vpop.permute.xlu0 %2380
        %2382 = vrot.lane.b32.xlu0 %v2186, 80
        %v2383 = vpop.permute.xlu0 %2382
        %2384 = vrot.lane.b32.xlu0 %v2187, 80
        %v2385 = vpop.permute.xlu0 %2384
        %2386 = vrot.lane.b32.xlu0 %v2188, 80
        %v2387 = vpop.permute.xlu0 %2386
        %2388 = vrot.lane.b32.xlu0 %v2189, 80
        %v2389 = vpop.permute.xlu0 %2388
        %2390 = vrot.lane.b32.xlu0 %v2190, 80
        %v2391 = vpop.permute.xlu0 %2390
        %2392 = vrot.lane.b32.xlu0 %v2191, 80
        %v2393 = vpop.permute.xlu0 %2392
        %2394 = vrot.lane.b32.xlu0 %v2192, 80
        %v2395 = vpop.permute.xlu0 %2394
        %2396 = vrot.lane.b32.xlu0 %v2193, 80
        %v2397 = vpop.permute.xlu0 %2396
        %2398 = vrot.lane.b32.xlu0 %v2194, 80
        %v2399 = vpop.permute.xlu0 %2398
        %2400 = vrot.lane.b32.xlu0 %v2195, 80
        %v2401 = vpop.permute.xlu0 %2400
        %2402 = vrot.lane.b32.xlu0 %v2196, 80
        %v2403 = vpop.permute.xlu0 %2402
        %2404 = vrot.lane.b32.xlu0 %v2221, 80
        %v2405 = vpop.permute.xlu0 %2404
        %2406 = vrot.lane.b32.xlu0 %v2222, 80
        %v2407 = vpop.permute.xlu0 %2406
        %2408 = vrot.lane.b32.xlu0 %v2223, 80
        %v2409 = vpop.permute.xlu0 %2408
        %2413 = vrot.lane.b32.xlu0 %v2155, 96
        %v2414 = vpop.permute.xlu0 %2413
        %2415 = vrot.lane.b32.xlu0 %v2156, 96
        %v2416 = vpop.permute.xlu0 %2415
        %2417 = vrot.lane.b32.xlu0 %v2157, 96
        %v2418 = vpop.permute.xlu0 %2417
        %2419 = vrot.lane.b32.xlu0 %v2158, 96
        %v2420 = vpop.permute.xlu0 %2419
        %2421 = vrot.lane.b32.xlu0 %v2159, 96
        %v2422 = vpop.permute.xlu0 %2421
        %2423 = vrot.lane.b32.xlu0 %v2160, 96
        %v2424 = vpop.permute.xlu0 %2423
        %2425 = vrot.lane.b32.xlu0 %v2161, 96
        %v2426 = vpop.permute.xlu0 %2425
        %2427 = vrot.lane.b32.xlu0 %v2162, 96
        %v2428 = vpop.permute.xlu0 %2427
        %2429 = vrot.lane.b32.xlu0 %v2163, 96
        %v2430 = vpop.permute.xlu0 %2429
        %2431 = vrot.lane.b32.xlu0 %v2164, 96
        %v2432 = vpop.permute.xlu0 %2431
        %2433 = vrot.lane.b32.xlu0 %v2218, 96
        %v2434 = vpop.permute.xlu0 %2433
        %2435 = vrot.lane.b32.xlu0 %v2219, 96
        %v2436 = vpop.permute.xlu0 %2435
        %2437 = vrot.lane.b32.xlu0 %v2220, 96
        %v2438 = vpop.permute.xlu0 %2437
        %2439 = vrot.lane.b32.xlu0 %v2251, 96
        %v2440 = vpop.permute.xlu0 %2439
        %2441 = vrot.lane.b32.xlu0 %v2252, 96
        %v2442 = vpop.permute.xlu0 %2441
        %2443 = vrot.lane.b32.xlu0 %v2253, 96
        %v2444 = vpop.permute.xlu0 %2443
        %2447 = vrot.lane.b32.xlu0 %v2268, 112
        %v2448 = vpop.permute.xlu0 %2447
        %2449 = vrot.lane.b32.xlu0 %v2269, 112
        %v2450 = vpop.permute.xlu0 %2449
        %v2453 = vsel %vm410, %v2149, %v2276
        %v2456 = vsel %vm410, %v2150, %v2278
        %v2458 = vsel %vm410, %v2151, %v1192
        %v2460 = vsel %vm410, %v2152, %v1194
        %v2462 = vsel %vm410, %v2153, %v1196
        %v2464 = vsel %vm410, %v2154, %v1198
        %v2466 = vsel %vm410, %v2155, %v1200
        %v2468 = vsel %vm410, %v2156, %v1202
        %v2470 = vsel %vm410, %v2157, %v1204
        %v2472 = vsel %vm410, %v2158, %v1206
        %v2474 = vsel %vm410, %v2159, %v1208
        %v2476 = vsel %vm410, %v2160, %v1210
        %v2478 = vsel %vm410, %v2161, %v1212
        %v2480 = vsel %vm410, %v2162, %v1214
        %v2482 = vsel %vm410, %v2163, %v1216
        %v2484 = vsel %vm410, %v2164, %v1218
        %v2486 = vsel %vm1499, %v2453, %v2296
        %v2488 = vsel %vm1499, %v2456, %v2298
        %v2490 = vsel %vm1499, %v2458, %v2300
        %v2492 = vsel %vm1499, %v2460, %v2302
        %v2494 = vsel %vm1499, %v2462, %v2304
        %v2496 = vsel %vm1499, %v2464, %v2306
        %v2498 = vsel %vm1499, %v2466, %v2308
        %v2500 = vsel %vm1499, %v2468, %v2310
        %v2502 = vsel %vm1499, %v2470, %v2312
        %v2504 = vsel %vm1499, %v2472, %v2314
        %v2506 = vsel %vm1499, %v2474, %v2316
        %v2508 = vsel %vm1499, %v2476, %v2318
        %v2510 = vsel %vm1499, %v2478, %v2320
        %v2512 = vsel %vm1499, %v2480, %v2322
        %v2514 = vsel %vm1499, %v2482, %v2324
        %v2516 = vsel %vm1499, %v2484, %v2326
        %v2518 = vsel %vm1532, %v2486, %v2344
        %v2520 = vsel %vm1532, %v2488, %v2346
        %v2522 = vsel %vm1532, %v2490, %v2348
        %v2524 = vsel %vm1532, %v2492, %v2350
        %v2526 = vsel %vm1532, %v2494, %v2352
        %v2528 = vsel %vm1532, %v2496, %v2354
        %v2530 = vsel %vm1532, %v2498, %v2356
        %v2532 = vsel %vm1532, %v2500, %v2358
        %v2534 = vsel %vm1532, %v2502, %v2360
        %v2536 = vsel %vm1532, %v2504, %v2362
        %v2538 = vsel %vm1532, %v2506, %v2364
        %v2540 = vsel %vm1532, %v2508, %v2366
        %v2542 = vsel %vm1532, %v2510, %v2368
        %v2544 = vsel %vm1532, %v2512, %v2370
        %v2546 = vsel %vm1532, %v2514, %v2372
        %v2548 = vsel %vm1532, %v2516, %v2374
        %v2549 = vsel %vm1565, %v2518, %v1321
        %v2550 = vsel %vm1565, %v2520, %v1323
        %v2551 = vsel %vm1565, %v2522, %v1325
        %v2552 = vsel %vm1565, %v2524, %v1327
        %v2553 = vsel %vm1565, %v2526, %v1329
        %v2554 = vsel %vm1565, %v2528, %v1331
        %v2555 = vsel %vm1565, %v2530, %v1333
        %v2556 = vsel %vm1565, %v2532, %v1335
        %v2557 = vsel %vm1565, %v2534, %v1337
        %v2558 = vsel %vm1565, %v2536, %v1339
        %v2559 = vsel %vm1565, %v2538, %v1341
        %v2560 = vsel %vm1565, %v2540, %v1343
        %v2561 = vsel %vm1565, %v2542, %v1345
        %v2562 = vsel %vm1565, %v2544, %v1347
        %v2563 = vsel %vm1565, %v2546, %v1349
        %v2564 = vsel %vm1565, %v2548, %v1351
        %v2566 = vsel %vm1598, %v2549, %v2379
        %v2568 = vsel %vm1598, %v2550, %v2381
        %v2570 = vsel %vm1598, %v2551, %v2383
        %v2572 = vsel %vm1598, %v2552, %v2385
        %v2574 = vsel %vm1598, %v2553, %v2387
        %v2576 = vsel %vm1598, %v2554, %v2389
        %v2578 = vsel %vm1598, %v2555, %v2391
        %v2580 = vsel %vm1598, %v2556, %v2393
        %v2582 = vsel %vm1598, %v2557, %v2395
        %v2584 = vsel %vm1598, %v2558, %v2397
        %v2586 = vsel %vm1598, %v2559, %v2399
        %v2588 = vsel %vm1598, %v2560, %v2401
        %v2590 = vsel %vm1598, %v2561, %v2403
        %v2592 = vsel %vm1598, %v2562, %v2405
        %v2594 = vsel %vm1598, %v2563, %v2407
        %v2596 = vsel %vm1598, %v2564, %v2409
        %v2598 = vsel %vm1631, %v2566, %v2414
        %v2600 = vsel %vm1631, %v2568, %v2416
        %v2602 = vsel %vm1631, %v2570, %v2418
        %v2604 = vsel %vm1631, %v2572, %v2420
        %v2606 = vsel %vm1631, %v2574, %v2422
        %v2608 = vsel %vm1631, %v2576, %v2424
        %v2610 = vsel %vm1631, %v2578, %v2426
        %v2612 = vsel %vm1631, %v2580, %v2428
        %v2614 = vsel %vm1631, %v2582, %v2430
        %v2616 = vsel %vm1631, %v2584, %v2432
        %v2618 = vsel %vm1631, %v2586, %v2434
        %v2620 = vsel %vm1631, %v2588, %v2436
        %v2622 = vsel %vm1631, %v2590, %v2438
        %v2624 = vsel %vm1631, %v2592, %v2440
        %v2626 = vsel %vm1631, %v2594, %v2442
        %v2628 = vsel %vm1631, %v2596, %v2444
        %v2629 = vsel %vm1664, %v2598, %v1424
        %v2631 = vsel %vm1664, %v2600, %v1426
        %v2633 = vsel %vm1664, %v2602, %v1428
        %v2635 = vsel %vm1664, %v2604, %v1430
        %v2637 = vsel %vm1664, %v2606, %v1432
        %v2639 = vsel %vm1664, %v2608, %v1434
        %v2641 = vsel %vm1664, %v2610, %v1436
        %v2643 = vsel %vm1664, %v2612, %v1438
        %v2645 = vsel %vm1664, %v2614, %v1440
        %v2647 = vsel %vm1664, %v2616, %v1442
        %v2649 = vsel %vm1664, %v2618, %v1444
        %v2651 = vsel %vm1664, %v2620, %v1446
        %v2653 = vsel %vm1664, %v2622, %v1448
        %v2655 = vsel %vm1664, %v2624, %v1450
        %v2658 = vsel %vm1664, %v2626, %v2448
        %v2661 = vsel %vm1664, %v2628, %v2450
        %s2663 = scalar_lea.vmem [#allocation6], 72
        %v2664 = vld [vmem:[%s2663] sm:$0xf]
        %v2665 = vld [vmem:[%s2663 + $0x4] sm:$0xf]
        %v2666 = vld [vmem:[%s2663 + $0x8] sm:$0xf]
        %v2667 = vld [vmem:[%s2663 + $0xc] sm:$0xf]
        %v2668 = vld [vmem:[%s2663 + $0x10] sm:$0xf]
        %v2669 = vld [vmem:[%s2663 + $0x14] sm:$0xf]
        %v2670 = vld [vmem:[%s2663 + $0x18] sm:$0xf]
        %v2671 = vld [vmem:[%s2663 + $0x1c] sm:$0xf]
        %v2672 = vld [vmem:[%s2663 + $0x20] sm:$0xf]
        %v2673 = vld [vmem:[%s2663 + $0x24] sm:$0xf]
        %v2674 = vld [vmem:[%s2663 + $0x28] sm:$0xf]
        %v2675 = vld [vmem:[%s2663 + $0x2c] sm:$0xf]
        %v2676 = vld [vmem:[%s2663 + $0x30] sm:$0xf]
        %v2677 = vld [vmem:[%s2663 + $0x34] sm:$0xf]
        %v2678 = vld [vmem:[%s2663 + $0x38] sm:$0xf]
        %v2679 = vld [vmem:[%s2663 + $0x3c] sm:$0xf]
        %v2680 = vld [vmem:[%s2663 + $0x40] sm:$0xf]
        %v2681 = vld [vmem:[%s2663 + $0x44] sm:$0xf]
        %v2682 = vlaneseq
        %v2683 = vshrl.u32 %v2682, 7
        %v2684 = vsub.s32 1, %v2683
        %v2685 = vrot.slane %v685, %v2684
        %v2704 = vunpack.c.l.b16 %v2664
        %v2705 = vunpack.c.l.b16 %v2665
        %v2706 = vunpack.c.l.b16 %v2666
        %v2707 = vunpack.c.l.b16 %v2667
        %v2708 = vunpack.c.l.b16 %v2668
        %v2709 = vunpack.c.l.b16 %v2669
        %v2710 = vunpack.c.l.b16 %v2670
        %v2711 = vunpack.c.l.b16 %v2671
        %v2712 = vunpack.c.l.b16 %v2672
        %v2713 = vunpack.c.l.b16 %v2673
        %v2714 = vunpack.c.l.b16 %v2674
        %v2715 = vunpack.c.l.b16 %v2675
        %v2716 = vunpack.c.l.b16 %v2676
        %v2717 = vunpack.c.l.b16 %v2677
        %v2718 = vunpack.c.l.b16 %v2678
        %v2719 = vunpack.c.l.b16 %v2679
        %v2720 = vunpack.c.l.b16 %v2680
        %v2721 = vunpack.c.l.b16 %v2681
        %v2722 = vpack.c.b16 %v2705, %v2704
        %v2723 = vpack.c.b16 %v2707, %v2706
        %v2724 = vpack.c.b16 %v2709, %v2708
        %v2725 = vpack.c.b16 %v2711, %v2710
        %v2726 = vpack.c.b16 %v2713, %v2712
        %v2727 = vpack.c.b16 %v2715, %v2714
        %v2728 = vpack.c.b16 %v2717, %v2716
        %v2729 = vpack.c.b16 %v2719, %v2718
        %v2730 = vpack.c.b16 %v2721, %v2720
        %v2741 = vsel %vm410, %v2187, 0
        %v2744 = vsel %vm410, %v2188, 0
        %v2747 = vsel %vm410, %v2189, 0
        %v2750 = vsel %vm410, %v2190, 0
        %v2753 = vsel %vm410, %v2191, 0
        %v2756 = vsel %vm410, %v2192, 0
        %v2759 = vsel %vm410, %v2193, 0
        %v2762 = vsel %vm410, %v2194, 0
        %v2765 = vsel %vm410, %v2195, 0
        %v2768 = vsel %vm410, %v2196, 0
        %v2771 = vsel %vm410, %v2221, 0
        %v2774 = vsel %vm410, %v2222, 0
        %v2777 = vsel %vm410, %v2223, 0
        %v2780 = vsel %vm410, %v2270, 0
        %v2783 = vsel %vm410, %v2271, 0
        %v2786 = vsel %vm410, %v2272, 0
        %2788 = vmatprep.subr.bf16.mxu0 0
        %2789 = vmatpush1.bf16.msra.mxu0 %v2722
        %2790 = vmatprep.subr.bf16.mxu0 0
        %2791 = vmatpush1.bf16.msra.mxu0 %v2723
        %2792 = vmatprep.subr.bf16.mxu0 0
        %2793 = vmatpush1.bf16.msra.mxu0 %v2724
        %2794 = vmatprep.subr.bf16.mxu0 0
        %2795 = vmatpush1.bf16.msra.mxu0 %v2725
        %2796 = vmatprep.subr.bf16.mxu0 0
        %2797 = vmatpush1.bf16.msra.mxu0 %v2726
        %2798 = vmatprep.subr.bf16.mxu0 0
        %2799 = vmatpush1.bf16.msra.mxu0 %v2727
        %2800 = vmatprep.subr.bf16.mxu0 0
        %2801 = vmatpush1.bf16.msra.mxu0 %v2728
        %2802 = vmatprep.subr.bf16.mxu0 0
        %2803 = vmatpush1.bf16.msra.mxu0 %v2729
        %2804 = vmatprep.subr.bf16.mxu0 0
        %2805 = vmatpush1.bf16.msra.mxu0 %v2730
        %2806 = vmatprep.subr.bf16.mxu0 0
        %2807 = vmatpush1.bf16.msra.mxu0 0
        %2808 = vmatprep.subr.bf16.mxu0 0
        %2809 = vmatpush1.bf16.msra.mxu0 0
        %2810 = vmatprep.subr.bf16.mxu0 0
        %2811 = vmatpush1.bf16.msra.mxu0 0
        %2812 = vmatprep.subr.bf16.mxu0 0
        %2813 = vmatpush1.bf16.msra.mxu0 0
        %2814 = vmatprep.subr.bf16.mxu0 0
        %2815 = vmatpush1.bf16.msra.mxu0 0
        %2816 = vmatprep.subr.bf16.mxu0 0
        %2817 = vmatpush1.bf16.msra.mxu0 0
        %2818 = vmatprep.subr.bf16.mxu0 0
        %2819 = vmatpush1.bf16.msra.mxu0 0
        %2820 = vmatprep.mubr.bf16.mxu0 %v2741
        %2821 = vmatmul.mubr.bf16.gmra.mrb[0].mxu0 %v2629
        %v2822 = vpop.f32.mrb[0].mxu0
        %v2823 = vadd.f32 %v2685, %v2822
        %v2824 = vpop.f32.mrb[0].mxu0
        %v2825 = vpop.f32.mrb[0].mxu0
        %v2826 = vadd.f32 %v2685, %v2825
        %v2827 = vpop.f32.mrb[0].mxu0
        %2828 = vmatprep.mubr.bf16.mxu0 %v2744
        %2829 = vmatmul.mubr.bf16.gmra.mrb[0].mxu0 %v2631
        %v2830 = vpop.f32.mrb[0].mxu0
        %v2831 = vadd.f32 %v2685, %v2830
        %v2832 = vpop.f32.mrb[0].mxu0
        %v2833 = vpop.f32.mrb[0].mxu0
        %v2834 = vadd.f32 %v2685, %v2833
        %v2835 = vpop.f32.mrb[0].mxu0
        %2836 = vmatprep.mubr.bf16.mxu0 %v2747
        %2837 = vmatmul.mubr.bf16.gmra.mrb[0].mxu0 %v2633
        %v2838 = vpop.f32.mrb[0].mxu0
        %v2839 = vadd.f32 %v2685, %v2838
        %v2840 = vpop.f32.mrb[0].mxu0
        %v2841 = vpop.f32.mrb[0].mxu0
        %v2842 = vadd.f32 %v2685, %v2841
        %v2843 = vpop.f32.mrb[0].mxu0
        %2844 = vmatprep.mubr.bf16.mxu0 %v2750
        %2845 = vmatmul.mubr.bf16.gmra.mrb[0].mxu0 %v2635
        %v2846 = vpop.f32.mrb[0].mxu0
        %v2847 = vadd.f32 %v2685, %v2846
        %v2848 = vpop.f32.mrb[0].mxu0
        %v2849 = vpop.f32.mrb[0].mxu0
        %v2850 = vadd.f32 %v2685, %v2849
        %v2851 = vpop.f32.mrb[0].mxu0
        %2852 = vmatprep.mubr.bf16.mxu0 %v2753
        %2853 = vmatmul.mubr.bf16.gmra.mrb[0].mxu0 %v2637
        %v2854 = vpop.f32.mrb[0].mxu0
        %v2855 = vadd.f32 %v2685, %v2854
        %v2856 = vpop.f32.mrb[0].mxu0
        %v2857 = vpop.f32.mrb[0].mxu0
        %v2858 = vadd.f32 %v2685, %v2857
        %v2859 = vpop.f32.mrb[0].mxu0
        %2860 = vmatprep.mubr.bf16.mxu0 %v2756
        %2861 = vmatmul.mubr.bf16.gmra.mrb[0].mxu0 %v2639
        %v2862 = vpop.f32.mrb[0].mxu0
        %v2863 = vadd.f32 %v2685, %v2862
        %v2864 = vpop.f32.mrb[0].mxu0
        %v2865 = vpop.f32.mrb[0].mxu0
        %v2866 = vadd.f32 %v2685, %v2865
        %v2867 = vpop.f32.mrb[0].mxu0
        %2868 = vmatprep.mubr.bf16.mxu0 %v2759
        %2869 = vmatmul.mubr.bf16.gmra.mrb[0].mxu0 %v2641
        %v2870 = vpop.f32.mrb[0].mxu0
        %v2871 = vadd.f32 %v2685, %v2870
        %v2872 = vpop.f32.mrb[0].mxu0
        %v2873 = vpop.f32.mrb[0].mxu0
        %v2874 = vadd.f32 %v2685, %v2873
        %v2875 = vpop.f32.mrb[0].mxu0
        %2876 = vmatprep.mubr.bf16.mxu0 %v2762
        %2877 = vmatmul.mubr.bf16.gmra.mrb[0].mxu0 %v2643
        %v2878 = vpop.f32.mrb[0].mxu0
        %v2879 = vadd.f32 %v2685, %v2878
        %v2880 = vpop.f32.mrb[0].mxu0
        %v2881 = vpop.f32.mrb[0].mxu0
        %v2882 = vadd.f32 %v2685, %v2881
        %v2883 = vpop.f32.mrb[0].mxu0
        %2884 = vmatprep.mubr.bf16.mxu0 %v2765
        %2885 = vmatmul.mubr.bf16.gmra.mrb[0].mxu0 %v2645
        %v2886 = vpop.f32.mrb[0].mxu0
        %v2887 = vadd.f32 %v2685, %v2886
        %v2888 = vpop.f32.mrb[0].mxu0
        %v2889 = vpop.f32.mrb[0].mxu0
        %v2890 = vadd.f32 %v2685, %v2889
        %v2891 = vpop.f32.mrb[0].mxu0
        %2892 = vmatprep.mubr.bf16.mxu0 %v2768
        %2893 = vmatmul.mubr.bf16.gmra.mrb[0].mxu0 %v2647
        %v2894 = vpop.f32.mrb[0].mxu0
        %v2895 = vadd.f32 %v2685, %v2894
        %v2896 = vpop.f32.mrb[0].mxu0
        %v2897 = vpop.f32.mrb[0].mxu0
        %v2898 = vadd.f32 %v2685, %v2897
        %v2899 = vpop.f32.mrb[0].mxu0
        %2900 = vmatprep.mubr.bf16.mxu0 %v2771
        %2901 = vmatmul.mubr.bf16.gmra.mrb[0].mxu0 %v2649
        %v2902 = vpop.f32.mrb[0].mxu0
        %v2903 = vadd.f32 %v2685, %v2902
        %v2904 = vpop.f32.mrb[0].mxu0
        %v2905 = vpop.f32.mrb[0].mxu0
        %v2906 = vadd.f32 %v2685, %v2905
        %v2907 = vpop.f32.mrb[0].mxu0
        %2908 = vmatprep.mubr.bf16.mxu0 %v2774
        %2909 = vmatmul.mubr.bf16.gmra.mrb[0].mxu0 %v2651
        %v2910 = vpop.f32.mrb[0].mxu0
        %v2911 = vadd.f32 %v2685, %v2910
        %v2912 = vpop.f32.mrb[0].mxu0
        %v2913 = vpop.f32.mrb[0].mxu0
        %v2914 = vadd.f32 %v2685, %v2913
        %v2915 = vpop.f32.mrb[0].mxu0
        %2916 = vmatprep.mubr.bf16.mxu0 %v2777
        %2917 = vmatmul.mubr.bf16.gmra.mrb[0].mxu0 %v2653
        %v2918 = vpop.f32.mrb[0].mxu0
        %v2919 = vadd.f32 %v2685, %v2918
        %v2920 = vpop.f32.mrb[0].mxu0
        %v2921 = vpop.f32.mrb[0].mxu0
        %v2922 = vadd.f32 %v2685, %v2921
        %v2923 = vpop.f32.mrb[0].mxu0
        %2924 = vmatprep.mubr.bf16.mxu0 %v2780
        %2925 = vmatmul.mubr.bf16.gmra.mrb[0].mxu0 %v2655
        %v2926 = vpop.f32.mrb[0].mxu0
        %v2927 = vadd.f32 %v2685, %v2926
        %v2928 = vpop.f32.mrb[0].mxu0
        %v2929 = vpop.f32.mrb[0].mxu0
        %v2930 = vadd.f32 %v2685, %v2929
        %v2931 = vpop.f32.mrb[0].mxu0
        %2932 = vmatprep.mubr.bf16.mxu0 %v2783
        %2933 = vmatmul.mubr.bf16.gmra.mrb[0].mxu0 %v2658
        %v2934 = vpop.f32.mrb[0].mxu0
        %v2935 = vadd.f32 %v2685, %v2934
        %v2936 = vpop.f32.mrb[0].mxu0
        %v2937 = vpop.f32.mrb[0].mxu0
        %v2938 = vadd.f32 %v2685, %v2937
        %v2939 = vpop.f32.mrb[0].mxu0
        %2940 = vmatprep.mubr.bf16.mxu0 %v2786
        %2941 = vmatmul.mubr.bf16.gmra.mrb[0].mxu0 %v2661
        %v2942 = vpop.f32.mrb[0].mxu0
        %v2943 = vadd.f32 %v2685, %v2942
        %v2944 = vpop.f32.mrb[0].mxu0
        %v2945 = vpop.f32.mrb[0].mxu0
        %v2946 = vadd.f32 %v2685, %v2945
        %v2947 = vpop.f32.mrb[0].mxu0
        %2948 = vdwg.mxu0
        %v2949 = vmax.f32 %v2823, 0.0
        %v2950 = vmax.f32 %v2826, 0.0
        %v2951 = vmax.f32 %v2831, 0.0
        %v2952 = vmax.f32 %v2834, 0.0
        %v2953 = vmax.f32 %v2839, 0.0
        %v2954 = vmax.f32 %v2842, 0.0
        %v2955 = vmax.f32 %v2847, 0.0
        %v2956 = vmax.f32 %v2850, 0.0
        %v2957 = vmax.f32 %v2855, 0.0
        %v2958 = vmax.f32 %v2858, 0.0
        %v2959 = vmax.f32 %v2863, 0.0
        %v2960 = vmax.f32 %v2866, 0.0
        %v2961 = vmax.f32 %v2871, 0.0
        %v2962 = vmax.f32 %v2874, 0.0
        %v2963 = vmax.f32 %v2879, 0.0
        %v2964 = vmax.f32 %v2882, 0.0
        %v2965 = vmax.f32 %v2887, 0.0
        %v2966 = vmax.f32 %v2890, 0.0
        %v2967 = vmax.f32 %v2895, 0.0
        %v2968 = vmax.f32 %v2898, 0.0
        %v2969 = vmax.f32 %v2903, 0.0
        %v2970 = vmax.f32 %v2906, 0.0
        %v2971 = vmax.f32 %v2911, 0.0
        %v2972 = vmax.f32 %v2914, 0.0
        %v2973 = vmax.f32 %v2919, 0.0
        %v2974 = vmax.f32 %v2922, 0.0
        %v2975 = vmax.f32 %v2927, 0.0
        %v2976 = vmax.f32 %v2930, 0.0
        %v2977 = vmax.f32 %v2935, 0.0
        %v2978 = vmax.f32 %v2938, 0.0
        %v2979 = vmax.f32 %v2943, 0.0
        %v2980 = vmax.f32 %v2946, 0.0
        %v2981 = vpack.c.bf16 %v582, %v581
        %v2982 = vpack.c.bf16 %v586, %v585
        %v2983 = vpack.c.bf16 %v590, %v589
        %v2984 = vpack.c.bf16 %v594, %v593
        %v2985 = vpack.c.bf16 %v598, %v597
        %v2986 = vpack.c.bf16 %v602, %v601
        %v2987 = vpack.c.bf16 %v606, %v605
        %v2988 = vpack.c.bf16 %v610, %v609
        %v2989 = vpack.c.bf16 %v614, %v613
        %v2990 = vpack.c.bf16 %v618, %v617
        %v2991 = vpack.c.bf16 %v622, %v621
        %v2992 = vpack.c.bf16 %v626, %v625
        %v2993 = vpack.c.bf16 %v630, %v629
        %v2994 = vpack.c.bf16 %v634, %v633
        %v2995 = vpack.c.bf16 %v638, %v637
        %v2996 = vpack.c.bf16 %v642, %v641
        %v3003 = vrot.slane %v581, 5
        %v3004 = vrot.slane %v582, 5
        %v3005 = vsel %vm863, %v3003, %v3004
        %v3006 = vrot.slane %v583, 5
        %v3007 = vsel %vm863, %v3004, %v3006
        %v3008 = vrot.slane %v585, 5
        %v3009 = vrot.slane %v586, 5
        %v3010 = vsel %vm863, %v3008, %v3009
        %v3011 = vrot.slane %v587, 5
        %v3012 = vsel %vm863, %v3009, %v3011
        %v3017 = vpack.c.bf16 %v3007, %v3005
        %v3018 = vpack.c.bf16 %v3012, %v3010
        %v3035 = vrot.slane %v582, 2
        %v3036 = vrot.slane %v583, 2
        %v3037 = vsel %vm2036, %v3035, %v3036
        %v3038 = vrot.slane %v584, 2
        %v3039 = vsel %vm2036, %v3036, %v3038
        %v3040 = vrot.slane %v586, 2
        %v3041 = vrot.slane %v587, 2
        %v3042 = vsel %vm2036, %v3040, %v3041
        %v3043 = vrot.slane %v588, 2
        %v3044 = vsel %vm2036, %v3041, %v3043
        %v3045 = vrot.slane %v592, 2
        %v3046 = vsel %vm2036, %v2040, %v3045
        %v3047 = vrot.slane %v596, 2
        %v3048 = vsel %vm2036, %v2045, %v3047
        %v3049 = vrot.slane %v600, 2
        %v3050 = vsel %vm2036, %v2050, %v3049
        %v3051 = vrot.slane %v604, 2
        %v3052 = vsel %vm2036, %v2055, %v3051
        %v3053 = vrot.slane %v608, 2
        %v3054 = vsel %vm2036, %v2060, %v3053
        %v3055 = vrot.slane %v612, 2
        %v3056 = vsel %vm2036, %v2065, %v3055
        %v3057 = vrot.slane %v616, 2
        %v3058 = vsel %vm2036, %v2070, %v3057
        %v3059 = vrot.slane %v620, 2
        %v3060 = vsel %vm2036, %v2075, %v3059
        %v3061 = vrot.slane %v624, 2
        %v3062 = vsel %vm2036, %v2080, %v3061
        %v3063 = vrot.slane %v628, 2
        %v3064 = vsel %vm2036, %v2085, %v3063
        %v3065 = vrot.slane %v632, 2
        %v3066 = vsel %vm2036, %v2090, %v3065
        %v3067 = vrot.slane %v636, 2
        %v3068 = vsel %vm2036, %v2095, %v3067
        %v3069 = vrot.slane %v640, 2
        %v3070 = vsel %vm2036, %v2100, %v3069
        %v3071 = vrot.slane %v644, 2
        %v3072 = vsel %vm2036, %v2105, %v3071
        %v3091 = vpack.c.bf16 %v3039, %v3037
        %v3092 = vpack.c.bf16 %v3044, %v3042
        %v3093 = vpack.c.bf16 %v3046, %v2041
        %v3094 = vpack.c.bf16 %v3048, %v2046
        %v3095 = vpack.c.bf16 %v3050, %v2051
        %v3096 = vpack.c.bf16 %v3052, %v2056
        %v3097 = vpack.c.bf16 %v3054, %v2061
        %v3098 = vpack.c.bf16 %v3056, %v2066
        %v3099 = vpack.c.bf16 %v3058, %v2071
        %v3100 = vpack.c.bf16 %v3060, %v2076
        %v3101 = vpack.c.bf16 %v3062, %v2081
        %v3102 = vpack.c.bf16 %v3064, %v2086
        %v3103 = vpack.c.bf16 %v3066, %v2091
        %v3104 = vpack.c.bf16 %v3068, %v2096
        %v3105 = vpack.c.bf16 %v3070, %v2101
        %v3106 = vpack.c.bf16 %v3072, %v2106
        %v3107 = vpack.c.bf16 %v646, %v645
        %v3108 = vpack.c.bf16 %v650, %v649
        %v3109 = vpack.c.bf16 %v654, %v653
        %v3110 = vpack.c.bf16 %v658, %v657
        %v3111 = vpack.c.bf16 %v662, %v661
        %v3117 = vrot.slane %v648, 2
        %v3118 = vsel %vm2036, %v2110, %v3117
        %v3119 = vrot.slane %v652, 2
        %v3120 = vsel %vm2036, %v2115, %v3119
        %v3121 = vrot.slane %v656, 2
        %v3122 = vsel %vm2036, %v2200, %v3121
        %v3123 = vrot.slane %v660, 2
        %v3124 = vsel %vm2036, %v2205, %v3123
        %v3125 = vrot.slane %v664, 2
        %v3126 = vsel %vm2036, %v2210, %v3125
        %v3132 = vpack.c.bf16 %v3118, %v2111
        %v3133 = vpack.c.bf16 %v3120, %v2116
        %v3134 = vpack.c.bf16 %v3122, %v2201
        %v3135 = vpack.c.bf16 %v3124, %v2206
        %v3136 = vpack.c.bf16 %v3126, %v2211
        %v3137 = vpack.c.bf16 %v666, %v665
        %v3138 = vpack.c.bf16 %v670, %v669
        %v3139 = vpack.c.bf16 %v674, %v673
        %v3140 = vpack.c.bf16 %v678, %v677
        %v3141 = vpack.c.bf16 %v682, %v681
        %v3148 = vrot.slane %v677, 5
        %v3149 = vrot.slane %v678, 5
        %v3150 = vsel %vm863, %v3148, %v3149
        %v3151 = vrot.slane %v679, 5
        %v3152 = vsel %vm863, %v3149, %v3151
        %v3153 = vrot.slane %v681, 5
        %v3154 = vrot.slane %v682, 5
        %v3155 = vsel %vm863, %v3153, %v3154
        %v3156 = vrot.slane %v683, 5
        %v3157 = vsel %vm863, %v3154, %v3156
        %v3162 = vpack.c.bf16 %v3152, %v3150
        %v3163 = vpack.c.bf16 %v3157, %v3155
        %v3169 = vrot.slane %v668, 2
        %v3170 = vsel %vm2036, %v2233, %v3169
        %v3171 = vrot.slane %v672, 2
        %v3172 = vsel %vm2036, %v2238, %v3171
        %v3173 = vrot.slane %v676, 2
        %v3174 = vsel %vm2036, %v2243, %v3173
        %v3175 = vrot.slane %v678, 2
        %v3176 = vrot.slane %v679, 2
        %v3177 = vsel %vm2036, %v3175, %v3176
        %v3178 = vrot.slane %v680, 2
        %v3179 = vsel %vm2036, %v3176, %v3178
        %v3180 = vrot.slane %v682, 2
        %v3181 = vrot.slane %v683, 2
        %v3182 = vsel %vm2036, %v3180, %v3181
        %v3183 = vrot.slane %v684, 2
        %v3184 = vsel %vm2036, %v3181, %v3183
        %v3192 = vpack.c.bf16 %v3170, %v2234
        %v3193 = vpack.c.bf16 %v3172, %v2239
        %v3194 = vpack.c.bf16 %v3174, %v2244
        %v3195 = vpack.c.bf16 %v3179, %v3177
        %v3196 = vpack.c.bf16 %v3184, %v3182
        %3199 = vrot.lane.b32.xlu0 %v3017, 16
        %v3200 = vpop.permute.xlu0 %3199
        %3201 = vrot.lane.b32.xlu0 %v3018, 16
        %v3202 = vpop.permute.xlu0 %3201
        %3219 = vrot.lane.b32.xlu0 %v3091, 32
        %v3220 = vpop.permute.xlu0 %3219
        %3221 = vrot.lane.b32.xlu0 %v3092, 32
        %v3222 = vpop.permute.xlu0 %3221
        %3223 = vrot.lane.b32.xlu0 %v3093, 32
        %v3224 = vpop.permute.xlu0 %3223
        %3225 = vrot.lane.b32.xlu0 %v3094, 32
        %v3226 = vpop.permute.xlu0 %3225
        %3227 = vrot.lane.b32.xlu0 %v3095, 32
        %v3228 = vpop.permute.xlu0 %3227
        %3229 = vrot.lane.b32.xlu0 %v3096, 32
        %v3230 = vpop.permute.xlu0 %3229
        %3231 = vrot.lane.b32.xlu0 %v3097, 32
        %v3232 = vpop.permute.xlu0 %3231
        %3233 = vrot.lane.b32.xlu0 %v3098, 32
        %v3234 = vpop.permute.xlu0 %3233
        %3235 = vrot.lane.b32.xlu0 %v3099, 32
        %v3236 = vpop.permute.xlu0 %3235
        %3237 = vrot.lane.b32.xlu0 %v3100, 32
        %v3238 = vpop.permute.xlu0 %3237
        %3239 = vrot.lane.b32.xlu0 %v3101, 32
        %v3240 = vpop.permute.xlu0 %3239
        %3241 = vrot.lane.b32.xlu0 %v3102, 32
        %v3242 = vpop.permute.xlu0 %3241
        %3243 = vrot.lane.b32.xlu0 %v3103, 32
        %v3244 = vpop.permute.xlu0 %3243
        %3245 = vrot.lane.b32.xlu0 %v3104, 32
        %v3246 = vpop.permute.xlu0 %3245
        %3247 = vrot.lane.b32.xlu0 %v3105, 32
        %v3248 = vpop.permute.xlu0 %3247
        %3249 = vrot.lane.b32.xlu0 %v3106, 32
        %v3250 = vpop.permute.xlu0 %3249
        %3267 = vrot.lane.b32.xlu0 %v2986, 48
        %v3268 = vpop.permute.xlu0 %3267
        %3269 = vrot.lane.b32.xlu0 %v2987, 48
        %v3270 = vpop.permute.xlu0 %3269
        %3271 = vrot.lane.b32.xlu0 %v2988, 48
        %v3272 = vpop.permute.xlu0 %3271
        %3273 = vrot.lane.b32.xlu0 %v2989, 48
        %v3274 = vpop.permute.xlu0 %3273
        %3275 = vrot.lane.b32.xlu0 %v2990, 48
        %v3276 = vpop.permute.xlu0 %3275
        %3277 = vrot.lane.b32.xlu0 %v2991, 48
        %v3278 = vpop.permute.xlu0 %3277
        %3279 = vrot.lane.b32.xlu0 %v2992, 48
        %v3280 = vpop.permute.xlu0 %3279
        %3281 = vrot.lane.b32.xlu0 %v2993, 48
        %v3282 = vpop.permute.xlu0 %3281
        %3283 = vrot.lane.b32.xlu0 %v2994, 48
        %v3284 = vpop.permute.xlu0 %3283
        %3285 = vrot.lane.b32.xlu0 %v2995, 48
        %v3286 = vpop.permute.xlu0 %3285
        %3287 = vrot.lane.b32.xlu0 %v2996, 48
        %v3288 = vpop.permute.xlu0 %3287
        %3289 = vrot.lane.b32.xlu0 %v3107, 48
        %v3290 = vpop.permute.xlu0 %3289
        %3291 = vrot.lane.b32.xlu0 %v3108, 48
        %v3292 = vpop.permute.xlu0 %3291
        %3293 = vrot.lane.b32.xlu0 %v3109, 48
        %v3294 = vpop.permute.xlu0 %3293
        %3295 = vrot.lane.b32.xlu0 %v3110, 48
        %v3296 = vpop.permute.xlu0 %3295
        %3297 = vrot.lane.b32.xlu0 %v3111, 48
        %v3298 = vpop.permute.xlu0 %3297
        %3304 = vrot.lane.b32.xlu0 %v3096, 80
        %v3305 = vpop.permute.xlu0 %3304
        %3306 = vrot.lane.b32.xlu0 %v3097, 80
        %v3307 = vpop.permute.xlu0 %3306
        %3308 = vrot.lane.b32.xlu0 %v3098, 80
        %v3309 = vpop.permute.xlu0 %3308
        %3310 = vrot.lane.b32.xlu0 %v3099, 80
        %v3311 = vpop.permute.xlu0 %3310
        %3312 = vrot.lane.b32.xlu0 %v3100, 80
        %v3313 = vpop.permute.xlu0 %3312
        %3314 = vrot.lane.b32.xlu0 %v3101, 80
        %v3315 = vpop.permute.xlu0 %3314
        %3316 = vrot.lane.b32.xlu0 %v3102, 80
        %v3317 = vpop.permute.xlu0 %3316
        %3318 = vrot.lane.b32.xlu0 %v3103, 80
        %v3319 = vpop.permute.xlu0 %3318
        %3320 = vrot.lane.b32.xlu0 %v3104, 80
        %v3321 = vpop.permute.xlu0 %3320
        %3322 = vrot.lane.b32.xlu0 %v3105, 80
        %v3323 = vpop.permute.xlu0 %3322
        %3324 = vrot.lane.b32.xlu0 %v3106, 80
        %v3325 = vpop.permute.xlu0 %3324
        %3326 = vrot.lane.b32.xlu0 %v3132, 80
        %v3327 = vpop.permute.xlu0 %3326
        %3328 = vrot.lane.b32.xlu0 %v3133, 80
        %v3329 = vpop.permute.xlu0 %3328
        %3330 = vrot.lane.b32.xlu0 %v3134, 80
        %v3331 = vpop.permute.xlu0 %3330
        %3332 = vrot.lane.b32.xlu0 %v3135, 80
        %v3333 = vpop.permute.xlu0 %3332
        %3334 = vrot.lane.b32.xlu0 %v3136, 80
        %v3335 = vpop.permute.xlu0 %3334
        %3341 = vrot.lane.b32.xlu0 %v2991, 96
        %v3342 = vpop.permute.xlu0 %3341
        %3343 = vrot.lane.b32.xlu0 %v2992, 96
        %v3344 = vpop.permute.xlu0 %3343
        %3345 = vrot.lane.b32.xlu0 %v2993, 96
        %v3346 = vpop.permute.xlu0 %3345
        %3347 = vrot.lane.b32.xlu0 %v2994, 96
        %v3348 = vpop.permute.xlu0 %3347
        %3349 = vrot.lane.b32.xlu0 %v2995, 96
        %v3350 = vpop.permute.xlu0 %3349
        %3351 = vrot.lane.b32.xlu0 %v2996, 96
        %v3352 = vpop.permute.xlu0 %3351
        %3353 = vrot.lane.b32.xlu0 %v3107, 96
        %v3354 = vpop.permute.xlu0 %3353
        %3355 = vrot.lane.b32.xlu0 %v3108, 96
        %v3356 = vpop.permute.xlu0 %3355
        %3357 = vrot.lane.b32.xlu0 %v3109, 96
        %v3358 = vpop.permute.xlu0 %3357
        %3359 = vrot.lane.b32.xlu0 %v3110, 96
        %v3360 = vpop.permute.xlu0 %3359
        %3361 = vrot.lane.b32.xlu0 %v3111, 96
        %v3362 = vpop.permute.xlu0 %3361
        %3363 = vrot.lane.b32.xlu0 %v3137, 96
        %v3364 = vpop.permute.xlu0 %3363
        %3365 = vrot.lane.b32.xlu0 %v3138, 96
        %v3366 = vpop.permute.xlu0 %3365
        %3367 = vrot.lane.b32.xlu0 %v3139, 96
        %v3368 = vpop.permute.xlu0 %3367
        %3369 = vrot.lane.b32.xlu0 %v3140, 96
        %v3370 = vpop.permute.xlu0 %3369
        %3371 = vrot.lane.b32.xlu0 %v3141, 96
        %v3372 = vpop.permute.xlu0 %3371
        %3375 = vrot.lane.b32.xlu0 %v3162, 112
        %v3376 = vpop.permute.xlu0 %3375
        %3377 = vrot.lane.b32.xlu0 %v3163, 112
        %v3378 = vpop.permute.xlu0 %3377
        %v3381 = vsel %vm410, %v2981, %v3200
        %v3384 = vsel %vm410, %v2982, %v3202
        %v3386 = vsel %vm410, %v2983, %v2276
        %v3388 = vsel %vm410, %v2984, %v2278
        %v3390 = vsel %vm410, %v2985, %v1192
        %v3392 = vsel %vm410, %v2986, %v1194
        %v3394 = vsel %vm410, %v2987, %v1196
        %v3396 = vsel %vm410, %v2988, %v1198
        %v3398 = vsel %vm410, %v2989, %v1200
        %v3400 = vsel %vm410, %v2990, %v1202
        %v3402 = vsel %vm410, %v2991, %v1204
        %v3404 = vsel %vm410, %v2992, %v1206
        %v3406 = vsel %vm410, %v2993, %v1208
        %v3408 = vsel %vm410, %v2994, %v1210
        %v3410 = vsel %vm410, %v2995, %v1212
        %v3412 = vsel %vm410, %v2996, %v1214
        %v3414 = vsel %vm1499, %v3381, %v3220
        %v3416 = vsel %vm1499, %v3384, %v3222
        %v3418 = vsel %vm1499, %v3386, %v3224
        %v3420 = vsel %vm1499, %v3388, %v3226
        %v3422 = vsel %vm1499, %v3390, %v3228
        %v3424 = vsel %vm1499, %v3392, %v3230
        %v3426 = vsel %vm1499, %v3394, %v3232
        %v3428 = vsel %vm1499, %v3396, %v3234
        %v3430 = vsel %vm1499, %v3398, %v3236
        %v3432 = vsel %vm1499, %v3400, %v3238
        %v3434 = vsel %vm1499, %v3402, %v3240
        %v3436 = vsel %vm1499, %v3404, %v3242
        %v3438 = vsel %vm1499, %v3406, %v3244
        %v3440 = vsel %vm1499, %v3408, %v3246
        %v3442 = vsel %vm1499, %v3410, %v3248
        %v3444 = vsel %vm1499, %v3412, %v3250
        %v3446 = vsel %vm1532, %v3414, %v3268
        %v3448 = vsel %vm1532, %v3416, %v3270
        %v3450 = vsel %vm1532, %v3418, %v3272
        %v3452 = vsel %vm1532, %v3420, %v3274
        %v3454 = vsel %vm1532, %v3422, %v3276
        %v3456 = vsel %vm1532, %v3424, %v3278
        %v3458 = vsel %vm1532, %v3426, %v3280
        %v3460 = vsel %vm1532, %v3428, %v3282
        %v3462 = vsel %vm1532, %v3430, %v3284
        %v3464 = vsel %vm1532, %v3432, %v3286
        %v3466 = vsel %vm1532, %v3434, %v3288
        %v3468 = vsel %vm1532, %v3436, %v3290
        %v3470 = vsel %vm1532, %v3438, %v3292
        %v3472 = vsel %vm1532, %v3440, %v3294
        %v3474 = vsel %vm1532, %v3442, %v3296
        %v3476 = vsel %vm1532, %v3444, %v3298
        %v3477 = vsel %vm1565, %v3446, %v1321
        %v3478 = vsel %vm1565, %v3448, %v1323
        %v3479 = vsel %vm1565, %v3450, %v1325
        %v3480 = vsel %vm1565, %v3452, %v1327
        %v3481 = vsel %vm1565, %v3454, %v1329
        %v3482 = vsel %vm1565, %v3456, %v1331
        %v3483 = vsel %vm1565, %v3458, %v1333
        %v3484 = vsel %vm1565, %v3460, %v1335
        %v3485 = vsel %vm1565, %v3462, %v1337
        %v3486 = vsel %vm1565, %v3464, %v1339
        %v3487 = vsel %vm1565, %v3466, %v1341
        %v3488 = vsel %vm1565, %v3468, %v1343
        %v3489 = vsel %vm1565, %v3470, %v1345
        %v3490 = vsel %vm1565, %v3472, %v1347
        %v3491 = vsel %vm1565, %v3474, %v1349
        %v3492 = vsel %vm1565, %v3476, %v1351
        %v3494 = vsel %vm1598, %v3477, %v3305
        %v3496 = vsel %vm1598, %v3478, %v3307
        %v3498 = vsel %vm1598, %v3479, %v3309
        %v3500 = vsel %vm1598, %v3480, %v3311
        %v3502 = vsel %vm1598, %v3481, %v3313
        %v3504 = vsel %vm1598, %v3482, %v3315
        %v3506 = vsel %vm1598, %v3483, %v3317
        %v3508 = vsel %vm1598, %v3484, %v3319
        %v3510 = vsel %vm1598, %v3485, %v3321
        %v3512 = vsel %vm1598, %v3486, %v3323
        %v3514 = vsel %vm1598, %v3487, %v3325
        %v3516 = vsel %vm1598, %v3488, %v3327
        %v3518 = vsel %vm1598, %v3489, %v3329
        %v3520 = vsel %vm1598, %v3490, %v3331
        %v3522 = vsel %vm1598, %v3491, %v3333
        %v3524 = vsel %vm1598, %v3492, %v3335
        %v3526 = vsel %vm1631, %v3494, %v3342
        %v3528 = vsel %vm1631, %v3496, %v3344
        %v3530 = vsel %vm1631, %v3498, %v3346
        %v3532 = vsel %vm1631, %v3500, %v3348
        %v3534 = vsel %vm1631, %v3502, %v3350
        %v3536 = vsel %vm1631, %v3504, %v3352
        %v3538 = vsel %vm1631, %v3506, %v3354
        %v3540 = vsel %vm1631, %v3508, %v3356
        %v3542 = vsel %vm1631, %v3510, %v3358
        %v3544 = vsel %vm1631, %v3512, %v3360
        %v3546 = vsel %vm1631, %v3514, %v3362
        %v3548 = vsel %vm1631, %v3516, %v3364
        %v3550 = vsel %vm1631, %v3518, %v3366
        %v3552 = vsel %vm1631, %v3520, %v3368
        %v3554 = vsel %vm1631, %v3522, %v3370
        %v3556 = vsel %vm1631, %v3524, %v3372
        %v3557 = vsel %vm1664, %v3526, %v1428
        %v3559 = vsel %vm1664, %v3528, %v1430
        %v3561 = vsel %vm1664, %v3530, %v1432
        %v3563 = vsel %vm1664, %v3532, %v1434
        %v3565 = vsel %vm1664, %v3534, %v1436
        %v3567 = vsel %vm1664, %v3536, %v1438
        %v3569 = vsel %vm1664, %v3538, %v1440
        %v3571 = vsel %vm1664, %v3540, %v1442
        %v3573 = vsel %vm1664, %v3542, %v1444
        %v3575 = vsel %vm1664, %v3544, %v1446
        %v3577 = vsel %vm1664, %v3546, %v1448
        %v3579 = vsel %vm1664, %v3548, %v1450
        %v3581 = vsel %vm1664, %v3550, %v2448
        %v3583 = vsel %vm1664, %v3552, %v2450
        %v3586 = vsel %vm1664, %v3554, %v3376
        %v3589 = vsel %vm1664, %v3556, %v3378
        %s3591 = scalar_lea.vmem [#allocation6], 144
        %v3592 = vld [vmem:[%s3591] sm:$0xf]
        %v3593 = vld [vmem:[%s3591 + $0x4] sm:$0xf]
        %v3594 = vld [vmem:[%s3591 + $0x8] sm:$0xf]
        %v3595 = vld [vmem:[%s3591 + $0xc] sm:$0xf]
        %v3596 = vld [vmem:[%s3591 + $0x10] sm:$0xf]
        %v3597 = vld [vmem:[%s3591 + $0x14] sm:$0xf]
        %v3598 = vld [vmem:[%s3591 + $0x18] sm:$0xf]
        %v3599 = vld [vmem:[%s3591 + $0x1c] sm:$0xf]
        %v3600 = vld [vmem:[%s3591 + $0x20] sm:$0xf]
        %v3601 = vld [vmem:[%s3591 + $0x24] sm:$0xf]
        %v3602 = vld [vmem:[%s3591 + $0x28] sm:$0xf]
        %v3603 = vld [vmem:[%s3591 + $0x2c] sm:$0xf]
        %v3604 = vld [vmem:[%s3591 + $0x30] sm:$0xf]
        %v3605 = vld [vmem:[%s3591 + $0x34] sm:$0xf]
        %v3606 = vld [vmem:[%s3591 + $0x38] sm:$0xf]
        %v3607 = vld [vmem:[%s3591 + $0x3c] sm:$0xf]
        %v3608 = vld [vmem:[%s3591 + $0x40] sm:$0xf]
        %v3609 = vld [vmem:[%s3591 + $0x44] sm:$0xf]
        %v3610 = vlaneseq
        %v3611 = vshrl.u32 %v3610, 7
        %v3612 = vsub.s32 2, %v3611
        %v3613 = vrot.slane %v685, %v3612
        %v3632 = vunpack.c.l.b16 %v3592
        %v3633 = vunpack.c.l.b16 %v3593
        %v3634 = vunpack.c.l.b16 %v3594
        %v3635 = vunpack.c.l.b16 %v3595
        %v3636 = vunpack.c.l.b16 %v3596
        %v3637 = vunpack.c.l.b16 %v3597
        %v3638 = vunpack.c.l.b16 %v3598
        %v3639 = vunpack.c.l.b16 %v3599
        %v3640 = vunpack.c.l.b16 %v3600
        %v3641 = vunpack.c.l.b16 %v3601
        %v3642 = vunpack.c.l.b16 %v3602
        %v3643 = vunpack.c.l.b16 %v3603
        %v3644 = vunpack.c.l.b16 %v3604
        %v3645 = vunpack.c.l.b16 %v3605
        %v3646 = vunpack.c.l.b16 %v3606
        %v3647 = vunpack.c.l.b16 %v3607
        %v3648 = vunpack.c.l.b16 %v3608
        %v3649 = vunpack.c.l.b16 %v3609
        %v3650 = vpack.c.b16 %v3633, %v3632
        %v3651 = vpack.c.b16 %v3635, %v3634
        %v3652 = vpack.c.b16 %v3637, %v3636
        %v3653 = vpack.c.b16 %v3639, %v3638
        %v3654 = vpack.c.b16 %v3641, %v3640
        %v3655 = vpack.c.b16 %v3643, %v3642
        %v3656 = vpack.c.b16 %v3645, %v3644
        %v3657 = vpack.c.b16 %v3647, %v3646
        %v3658 = vpack.c.b16 %v3649, %v3648
        %v3669 = vsel %vm410, %v3101, 0
        %v3672 = vsel %vm410, %v3102, 0
        %v3675 = vsel %vm410, %v3103, 0
        %v3678 = vsel %vm410, %v3104, 0
        %v3681 = vsel %vm410, %v3105, 0
        %v3684 = vsel %vm410, %v3106, 0
        %v3687 = vsel %vm410, %v3132, 0
        %v3690 = vsel %vm410, %v3133, 0
        %v3693 = vsel %vm410, %v3134, 0
        %v3696 = vsel %vm410, %v3135, 0
        %v3699 = vsel %vm410, %v3136, 0
        %v3702 = vsel %vm410, %v3192, 0
        %v3705 = vsel %vm410, %v3193, 0
        %v3708 = vsel %vm410, %v3194, 0
        %v3711 = vsel %vm410, %v3195, 0
        %v3714 = vsel %vm410, %v3196, 0
        %3716 = vmatprep.subr.bf16.mxu0 0
        %3717 = vmatpush1.bf16.msra.mxu0 %v3650
        %3718 = vmatprep.subr.bf16.mxu0 0
        %3719 = vmatpush1.bf16.msra.mxu0 %v3651
        %3720 = vmatprep.subr.bf16.mxu0 0
        %3721 = vmatpush1.bf16.msra.mxu0 %v3652
        %3722 = vmatprep.subr.bf16.mxu0 0
        %3723 = vmatpush1.bf16.msra.mxu0 %v3653
        %3724 = vmatprep.subr.bf16.mxu0 0
        %3725 = vmatpush1.bf16.msra.mxu0 %v3654
        %3726 = vmatprep.subr.bf16.mxu0 0
        %3727 = vmatpush1.bf16.msra.mxu0 %v3655
        %3728 = vmatprep.subr.bf16.mxu0 0
        %3729 = vmatpush1.bf16.msra.mxu0 %v3656
        %3730 = vmatprep.subr.bf16.mxu0 0
        %3731 = vmatpush1.bf16.msra.mxu0 %v3657
        %3732 = vmatprep.subr.bf16.mxu0 0
        %3733 = vmatpush1.bf16.msra.mxu0 %v3658
        %3734 = vmatprep.subr.bf16.mxu0 0
        %3735 = vmatpush1.bf16.msra.mxu0 0
        %3736 = vmatprep.subr.bf16.mxu0 0
        %3737 = vmatpush1.bf16.msra.mxu0 0
        %3738 = vmatprep.subr.bf16.mxu0 0
        %3739 = vmatpush1.bf16.msra.mxu0 0
        %3740 = vmatprep.subr.bf16.mxu0 0
        %3741 = vmatpush1.bf16.msra.mxu0 0
        %3742 = vmatprep.subr.bf16.mxu0 0
        %3743 = vmatpush1.bf16.msra.mxu0 0
        %3744 = vmatprep.subr.bf16.mxu0 0
        %3745 = vmatpush1.bf16.msra.mxu0 0
        %3746 = vmatprep.subr.bf16.mxu0 0
        %3747 = vmatpush1.bf16.msra.mxu0 0
        %3748 = vmatprep.mubr.bf16.mxu0 %v3669
        %3749 = vmatmul.mubr.bf16.gmra.mrb[0].mxu0 %v3557
        %v3750 = vpop.f32.mrb[0].mxu0
        %v3751 = vadd.f32 %v3613, %v3750
        %v3752 = vpop.f32.mrb[0].mxu0
        %v3753 = vpop.f32.mrb[0].mxu0
        %v3754 = vadd.f32 %v3613, %v3753
        %v3755 = vpop.f32.mrb[0].mxu0
        %3756 = vmatprep.mubr.bf16.mxu0 %v3672
        %3757 = vmatmul.mubr.bf16.gmra.mrb[0].mxu0 %v3559
        %v3758 = vpop.f32.mrb[0].mxu0
        %v3759 = vadd.f32 %v3613, %v3758
        %v3760 = vpop.f32.mrb[0].mxu0
        %v3761 = vpop.f32.mrb[0].mxu0
        %v3762 = vadd.f32 %v3613, %v3761
        %v3763 = vpop.f32.mrb[0].mxu0
        %3764 = vmatprep.mubr.bf16.mxu0 %v3675
        %3765 = vmatmul.mubr.bf16.gmra.mrb[0].mxu0 %v3561
        %v3766 = vpop.f32.mrb[0].mxu0
        %v3767 = vadd.f32 %v3613, %v3766
        %v3768 = vpop.f32.mrb[0].mxu0
        %v3769 = vpop.f32.mrb[0].mxu0
        %v3770 = vadd.f32 %v3613, %v3769
        %v3771 = vpop.f32.mrb[0].mxu0
        %3772 = vmatprep.mubr.bf16.mxu0 %v3678
        %3773 = vmatmul.mubr.bf16.gmra.mrb[0].mxu0 %v3563
        %v3774 = vpop.f32.mrb[0].mxu0
        %v3775 = vadd.f32 %v3613, %v3774
        %v3776 = vpop.f32.mrb[0].mxu0
        %v3777 = vpop.f32.mrb[0].mxu0
        %v3778 = vadd.f32 %v3613, %v3777
        %v3779 = vpop.f32.mrb[0].mxu0
        %3780 = vmatprep.mubr.bf16.mxu0 %v3681
        %3781 = vmatmul.mubr.bf16.gmra.mrb[0].mxu0 %v3565
        %v3782 = vpop.f32.mrb[0].mxu0
        %v3783 = vadd.f32 %v3613, %v3782
        %v3784 = vpop.f32.mrb[0].mxu0
        %v3785 = vpop.f32.mrb[0].mxu0
        %v3786 = vadd.f32 %v3613, %v3785
        %v3787 = vpop.f32.mrb[0].mxu0
        %3788 = vmatprep.mubr.bf16.mxu0 %v3684
        %3789 = vmatmul.mubr.bf16.gmra.mrb[0].mxu0 %v3567
        %v3790 = vpop.f32.mrb[0].mxu0
        %v3791 = vadd.f32 %v3613, %v3790
        %v3792 = vpop.f32.mrb[0].mxu0
        %v3793 = vpop.f32.mrb[0].mxu0
        %v3794 = vadd.f32 %v3613, %v3793
        %v3795 = vpop.f32.mrb[0].mxu0
        %3796 = vmatprep.mubr.bf16.mxu0 %v3687
        %3797 = vmatmul.mubr.bf16.gmra.mrb[0].mxu0 %v3569
        %v3798 = vpop.f32.mrb[0].mxu0
        %v3799 = vadd.f32 %v3613, %v3798
        %v3800 = vpop.f32.mrb[0].mxu0
        %v3801 = vpop.f32.mrb[0].mxu0
        %v3802 = vadd.f32 %v3613, %v3801
        %v3803 = vpop.f32.mrb[0].mxu0
        %3804 = vmatprep.mubr.bf16.mxu0 %v3690
        %3805 = vmatmul.mubr.bf16.gmra.mrb[0].mxu0 %v3571
        %v3806 = vpop.f32.mrb[0].mxu0
        %v3807 = vadd.f32 %v3613, %v3806
        %v3808 = vpop.f32.mrb[0].mxu0
        %v3809 = vpop.f32.mrb[0].mxu0
        %v3810 = vadd.f32 %v3613, %v3809
        %v3811 = vpop.f32.mrb[0].mxu0
        %3812 = vmatprep.mubr.bf16.mxu0 %v3693
        %3813 = vmatmul.mubr.bf16.gmra.mrb[0].mxu0 %v3573
        %v3814 = vpop.f32.mrb[0].mxu0
        %v3815 = vadd.f32 %v3613, %v3814
        %v3816 = vpop.f32.mrb[0].mxu0
        %v3817 = vpop.f32.mrb[0].mxu0
        %v3818 = vadd.f32 %v3613, %v3817
        %v3819 = vpop.f32.mrb[0].mxu0
        %3820 = vmatprep.mubr.bf16.mxu0 %v3696
        %3821 = vmatmul.mubr.bf16.gmra.mrb[0].mxu0 %v3575
        %v3822 = vpop.f32.mrb[0].mxu0
        %v3823 = vadd.f32 %v3613, %v3822
        %v3824 = vpop.f32.mrb[0].mxu0
        %v3825 = vpop.f32.mrb[0].mxu0
        %v3826 = vadd.f32 %v3613, %v3825
        %v3827 = vpop.f32.mrb[0].mxu0
        %3828 = vmatprep.mubr.bf16.mxu0 %v3699
        %3829 = vmatmul.mubr.bf16.gmra.mrb[0].mxu0 %v3577
        %v3830 = vpop.f32.mrb[0].mxu0
        %v3831 = vadd.f32 %v3613, %v3830
        %v3832 = vpop.f32.mrb[0].mxu0
        %v3833 = vpop.f32.mrb[0].mxu0
        %v3834 = vadd.f32 %v3613, %v3833
        %v3835 = vpop.f32.mrb[0].mxu0
        %3836 = vmatprep.mubr.bf16.mxu0 %v3702
        %3837 = vmatmul.mubr.bf16.gmra.mrb[0].mxu0 %v3579
        %v3838 = vpop.f32.mrb[0].mxu0
        %v3839 = vadd.f32 %v3613, %v3838
        %v3840 = vpop.f32.mrb[0].mxu0
        %v3841 = vpop.f32.mrb[0].mxu0
        %v3842 = vadd.f32 %v3613, %v3841
        %v3843 = vpop.f32.mrb[0].mxu0
        %3844 = vmatprep.mubr.bf16.mxu0 %v3705
        %3845 = vmatmul.mubr.bf16.gmra.mrb[0].mxu0 %v3581
        %v3846 = vpop.f32.mrb[0].mxu0
        %v3847 = vadd.f32 %v3613, %v3846
        %v3848 = vpop.f32.mrb[0].mxu0
        %v3849 = vpop.f32.mrb[0].mxu0
        %v3850 = vadd.f32 %v3613, %v3849
        %v3851 = vpop.f32.mrb[0].mxu0
        %3852 = vmatprep.mubr.bf16.mxu0 %v3708
        %3853 = vmatmul.mubr.bf16.gmra.mrb[0].mxu0 %v3583
        %v3854 = vpop.f32.mrb[0].mxu0
        %v3855 = vadd.f32 %v3613, %v3854
        %v3856 = vpop.f32.mrb[0].mxu0
        %v3857 = vpop.f32.mrb[0].mxu0
        %v3858 = vadd.f32 %v3613, %v3857
        %v3859 = vpop.f32.mrb[0].mxu0
        %3860 = vmatprep.mubr.bf16.mxu0 %v3711
        %3861 = vmatmul.mubr.bf16.gmra.mrb[0].mxu0 %v3586
        %v3862 = vpop.f32.mrb[0].mxu0
        %v3863 = vadd.f32 %v3613, %v3862
        %v3864 = vpop.f32.mrb[0].mxu0
        %v3865 = vpop.f32.mrb[0].mxu0
        %v3866 = vadd.f32 %v3613, %v3865
        %v3867 = vpop.f32.mrb[0].mxu0
        %3868 = vmatprep.mubr.bf16.mxu0 %v3714
        %3869 = vmatmul.mubr.bf16.gmra.mrb[0].mxu0 %v3589
        %v3870 = vpop.f32.mrb[0].mxu0
        %v3871 = vadd.f32 %v3613, %v3870
        %v3872 = vpop.f32.mrb[0].mxu0
        %v3873 = vpop.f32.mrb[0].mxu0
        %v3874 = vadd.f32 %v3613, %v3873
        %v3875 = vpop.f32.mrb[0].mxu0
        %3876 = vdwg.mxu0
        %v3877 = vmax.f32 %v3751, 0.0
        %v3878 = vmax.f32 %v3754, 0.0
        %v3879 = vmax.f32 %v3759, 0.0
        %v3880 = vmax.f32 %v3762, 0.0
        %v3881 = vmax.f32 %v3767, 0.0
        %v3882 = vmax.f32 %v3770, 0.0
        %v3883 = vmax.f32 %v3775, 0.0
        %v3884 = vmax.f32 %v3778, 0.0
        %v3885 = vmax.f32 %v3783, 0.0
        %v3886 = vmax.f32 %v3786, 0.0
        %v3887 = vmax.f32 %v3791, 0.0
        %v3888 = vmax.f32 %v3794, 0.0
        %v3889 = vmax.f32 %v3799, 0.0
        %v3890 = vmax.f32 %v3802, 0.0
        %v3891 = vmax.f32 %v3807, 0.0
        %v3892 = vmax.f32 %v3810, 0.0
        %v3893 = vmax.f32 %v3815, 0.0
        %v3894 = vmax.f32 %v3818, 0.0
        %v3895 = vmax.f32 %v3823, 0.0
        %v3896 = vmax.f32 %v3826, 0.0
        %v3897 = vmax.f32 %v3831, 0.0
        %v3898 = vmax.f32 %v3834, 0.0
        %v3899 = vmax.f32 %v3839, 0.0
        %v3900 = vmax.f32 %v3842, 0.0
        %v3901 = vmax.f32 %v3847, 0.0
        %v3902 = vmax.f32 %v3850, 0.0
        %v3903 = vmax.f32 %v3855, 0.0
        %v3904 = vmax.f32 %v3858, 0.0
        %v3905 = vmax.f32 %v3863, 0.0
        %v3906 = vmax.f32 %v3866, 0.0
        %v3907 = vmax.f32 %v3871, 0.0
        %v3908 = vmax.f32 %v3874, 0.0
        %v3909 = vadd.f32 %v1998, %v1999
        %v3910 = vadd.f32 %v3909, %v2000
        %v3911 = vadd.f32 %v3910, %v2001
        %v3912 = vadd.f32 %v3911, %v2002
        %v3913 = vadd.f32 %v3912, %v2003
        %v3914 = vadd.f32 %v3913, %v2004
        %v3915 = vadd.f32 %v3914, %v2005
        %v3916 = vadd.f32 %v3915, %v2006
        %v3917 = vadd.f32 %v3916, %v2007
        %v3918 = vadd.f32 %v3917, %v2008
        %v3919 = vadd.f32 %v3918, %v2009
        %v3920 = vadd.f32 %v3919, %v2010
        %v3921 = vadd.f32 %v3920, %v2011
        %v3922 = vadd.f32 %v3921, %v2012
        %v3923 = vadd.f32 %v3922, %v2013
        %v3924 = vadd.f32 %v3923, %v2014
        %v3925 = vadd.f32 %v3924, %v2015
        %v3926 = vadd.f32 %v3925, %v2016
        %v3927 = vadd.f32 %v3926, %v2017
        %v3928 = vadd.f32 %v3927, %v2018
        %v3929 = vadd.f32 %v3928, %v2019
        %v3930 = vadd.f32 %v3929, %v2020
        %v3931 = vadd.f32 %v3930, %v2021
        %v3932 = vadd.f32 %v3931, %v2022
        %v3933 = vadd.f32 %v3932, %v2023
        %v3934 = vadd.f32 %v3933, %v2024
        %v3935 = vadd.f32 %v3934, %v2025
        %v3936 = vadd.f32 %v3935, %v2026
        %v3937 = vadd.f32 %v3936, %v2027
        %v3938 = vadd.f32 %v3937, %v2028
        %v3939 = vadd.f32 %v3938, %v2029
        %v3940 = vrot.slane %v3939, 4
        %v3941 = vadd.f32 %v3939, %v3940
        %v3942 = vrot.slane %v3941, 2
        %v3943 = vadd.f32 %v3941, %v3942
        %v3944 = vrot.slane %v3943, 1
        %v3945 = vadd.f32 %v3943, %v3944
        %v3946 = vadd.f32 %v2949, %v2950
        %v3947 = vadd.f32 %v3946, %v2951
        %v3948 = vadd.f32 %v3947, %v2952
        %v3949 = vadd.f32 %v3948, %v2953
        %v3950 = vadd.f32 %v3949, %v2954
        %v3951 = vadd.f32 %v3950, %v2955
        %v3952 = vadd.f32 %v3951, %v2956
        %v3953 = vadd.f32 %v3952, %v2957
        %v3954 = vadd.f32 %v3953, %v2958
        %v3955 = vadd.f32 %v3954, %v2959
        %v3956 = vadd.f32 %v3955, %v2960
        %v3957 = vadd.f32 %v3956, %v2961
        %v3958 = vadd.f32 %v3957, %v2962
        %v3959 = vadd.f32 %v3958, %v2963
        %v3960 = vadd.f32 %v3959, %v2964
        %v3961 = vadd.f32 %v3960, %v2965
        %v3962 = vadd.f32 %v3961, %v2966
        %v3963 = vadd.f32 %v3962, %v2967
        %v3964 = vadd.f32 %v3963, %v2968
        %v3965 = vadd.f32 %v3964, %v2969
        %v3966 = vadd.f32 %v3965, %v2970
        %v3967 = vadd.f32 %v3966, %v2971
        %v3968 = vadd.f32 %v3967, %v2972
        %v3969 = vadd.f32 %v3968, %v2973
        %v3970 = vadd.f32 %v3969, %v2974
        %v3971 = vadd.f32 %v3970, %v2975
        %v3972 = vadd.f32 %v3971, %v2976
        %v3973 = vadd.f32 %v3972, %v2977
        %v3974 = vadd.f32 %v3973, %v2978
        %v3975 = vadd.f32 %v3974, %v2979
        %v3976 = vadd.f32 %v3975, %v2980
        %v3977 = vrot.slane %v3976, 4
        %v3978 = vadd.f32 %v3976, %v3977
        %v3979 = vrot.slane %v3978, 2
        %v3980 = vadd.f32 %v3978, %v3979
        %v3981 = vrot.slane %v3980, 1
        %v3982 = vadd.f32 %v3980, %v3981
        %v3983 = vadd.f32 %v3877, %v3878
        %v3984 = vadd.f32 %v3983, %v3879
        %v3985 = vadd.f32 %v3984, %v3880
        %v3986 = vadd.f32 %v3985, %v3881
        %v3987 = vadd.f32 %v3986, %v3882
        %v3988 = vadd.f32 %v3987, %v3883
        %v3989 = vadd.f32 %v3988, %v3884
        %v3990 = vadd.f32 %v3989, %v3885
        %v3991 = vadd.f32 %v3990, %v3886
        %v3992 = vadd.f32 %v3991, %v3887
        %v3993 = vadd.f32 %v3992, %v3888
        %v3994 = vadd.f32 %v3993, %v3889
        %v3995 = vadd.f32 %v3994, %v3890
        %v3996 = vadd.f32 %v3995, %v3891
        %v3997 = vadd.f32 %v3996, %v3892
        %v3998 = vadd.f32 %v3997, %v3893
        %v3999 = vadd.f32 %v3998, %v3894
        %v4000 = vadd.f32 %v3999, %v3895
        %v4001 = vadd.f32 %v4000, %v3896
        %v4002 = vadd.f32 %v4001, %v3897
        %v4003 = vadd.f32 %v4002, %v3898
        %v4004 = vadd.f32 %v4003, %v3899
        %v4005 = vadd.f32 %v4004, %v3900
        %v4006 = vadd.f32 %v4005, %v3901
        %v4007 = vadd.f32 %v4006, %v3902
        %v4008 = vadd.f32 %v4007, %v3903
        %v4009 = vadd.f32 %v4008, %v3904
        %v4010 = vadd.f32 %v4009, %v3905
        %v4011 = vadd.f32 %v4010, %v3906
        %v4012 = vadd.f32 %v4011, %v3907
        %v4013 = vadd.f32 %v4012, %v3908
        %v4014 = vrot.slane %v4013, 4
        %v4015 = vadd.f32 %v4013, %v4014
        %v4016 = vrot.slane %v4015, 2
        %v4017 = vadd.f32 %v4015, %v4016
        %v4018 = vrot.slane %v4017, 1
        %v4019 = vadd.f32 %v4017, %v4018
        %v4020 = vrcp.pop 256.0
        %v4021 = vmul.f32 %v3945, %v4020
        %v4022 = vmul.f32 %v3982, %v4020
        %v4023 = vmul.f32 %v4019, %v4020
        %v4024 = vld [vmem:[#allocation8] sm:$0xff]
        %v4025 = vld [vmem:[#allocation8 + $0x8] sm:$0xff]
        %v4026 = vld [vmem:[#allocation8 + $0x10] sm:$0xff]
        %v4027 = vld [vmem:[#allocation8 + $0x18] sm:$0xff]
        %v4028 = vld [vmem:[#allocation8 + $0x20] sm:$0xff]
        %v4029 = vld [vmem:[#allocation8 + $0x28] sm:$0xff]
        %v4030 = vld [vmem:[#allocation8 + $0x30] sm:$0xff]
        %v4031 = vld [vmem:[#allocation8 + $0x38] sm:$0xff]
        %v4032 = vld [vmem:[#allocation8 + $0x40] sm:$0xff]
        %v4033 = vld [vmem:[#allocation8 + $0x48] sm:$0xff]
        %v4034 = vld [vmem:[#allocation8 + $0x50] sm:$0xff]
        %v4035 = vld [vmem:[#allocation8 + $0x58] sm:$0xff]
        %v4036 = vld [vmem:[#allocation8 + $0x60] sm:$0xff]
        %v4037 = vld [vmem:[#allocation8 + $0x68] sm:$0xff]
        %v4038 = vld [vmem:[#allocation8 + $0x70] sm:$0xff]
        %v4039 = vld [vmem:[#allocation8 + $0x78] sm:$0xff]
        %v4040 = vld [vmem:[#allocation8 + $0x80] sm:$0xff]
        %v4041 = vld [vmem:[#allocation8 + $0x88] sm:$0xff]
        %v4042 = vld [vmem:[#allocation8 + $0x90] sm:$0xff]
        %v4043 = vld [vmem:[#allocation8 + $0x98] sm:$0xff]
        %v4044 = vld [vmem:[#allocation8 + $0xa0] sm:$0xff]
        %v4045 = vld [vmem:[#allocation8 + $0xa8] sm:$0xff]
        %v4046 = vld [vmem:[#allocation8 + $0xb0] sm:$0xff]
        %v4047 = vld [vmem:[#allocation8 + $0xb8] sm:$0xff]
        %v4048 = vld [vmem:[#allocation8 + $0xc0] sm:$0xff]
        %v4049 = vld [vmem:[#allocation8 + $0xc8] sm:$0xff]
        %v4050 = vld [vmem:[#allocation8 + $0xd0] sm:$0xff]
        %v4051 = vld [vmem:[#allocation8 + $0xd8] sm:$0xff]
        %v4052 = vld [vmem:[#allocation8 + $0xe0] sm:$0xff]
        %v4053 = vld [vmem:[#allocation8 + $0xe8] sm:$0xff]
        %v4054 = vld [vmem:[#allocation8 + $0xf0] sm:$0xff]
        %v4055 = vld [vmem:[#allocation8 + $0xf8] sm:$0xff]
        %v4056 = vld [vmem:[#allocation8 + $0x100] sm:$0xff]
        %v4057 = vld [vmem:[#allocation8 + $0x108] sm:$0xff]
        %v4058 = vld [vmem:[#allocation8 + $0x110] sm:$0xff]
        %v4059 = vld [vmem:[#allocation8 + $0x118] sm:$0xff]
        %v4060 = vld [vmem:[#allocation8 + $0x120] sm:$0xff]
        %v4061 = vld [vmem:[#allocation8 + $0x128] sm:$0xff]
        %v4062 = vld [vmem:[#allocation8 + $0x130] sm:$0xff]
        %v4063 = vld [vmem:[#allocation8 + $0x138] sm:$0xff]
        %v4064 = vld [vmem:[#allocation8 + $0x140] sm:$0xff]
        %v4065 = vld [vmem:[#allocation8 + $0x148] sm:$0xff]
        %v4066 = vld [vmem:[#allocation8 + $0x150] sm:$0xff]
        %v4067 = vld [vmem:[#allocation8 + $0x158] sm:$0xff]
        %v4068 = vld [vmem:[#allocation8 + $0x160] sm:$0xff]
        %v4069 = vld [vmem:[#allocation8 + $0x168] sm:$0xff]
        %v4070 = vld [vmem:[#allocation8 + $0x170] sm:$0xff]
        %v4071 = vld [vmem:[#allocation8 + $0x178] sm:$0xff]
        %v4072 = vld [vmem:[%s4] sm:$0x1]
        %4073 = vmatprep.subr.mxu0 0.0
        %4074 = vmatpush1.msra.mxu0 %v4024
        %4075 = vmatprep.subr.mxu0 0.0
        %4076 = vmatpush1.msra.mxu0 %v4025
        %4077 = vmatprep.subr.mxu0 0.0
        %4078 = vmatpush1.msra.mxu0 %v4026
        %4079 = vmatprep.subr.mxu0 0.0
        %4080 = vmatpush1.msra.mxu0 %v4027
        %4081 = vmatprep.subr.mxu0 0.0
        %4082 = vmatpush1.msra.mxu0 %v4028
        %4083 = vmatprep.subr.mxu0 0.0
        %4084 = vmatpush1.msra.mxu0 %v4029
        %4085 = vmatprep.subr.mxu0 0.0
        %4086 = vmatpush1.msra.mxu0 %v4030
        %4087 = vmatprep.subr.mxu0 0.0
        %4088 = vmatpush1.msra.mxu0 %v4031
        %4089 = vmatprep.subr.mxu0 0.0
        %4090 = vmatpush1.msra.mxu0 %v4032
        %4091 = vmatprep.subr.mxu0 0.0
        %4092 = vmatpush1.msra.mxu0 %v4033
        %4093 = vmatprep.subr.mxu0 0.0
        %4094 = vmatpush1.msra.mxu0 %v4034
        %4095 = vmatprep.subr.mxu0 0.0
        %4096 = vmatpush1.msra.mxu0 %v4035
        %4097 = vmatprep.subr.mxu0 0.0
        %4098 = vmatpush1.msra.mxu0 %v4036
        %4099 = vmatprep.subr.mxu0 0.0
        %4100 = vmatpush1.msra.mxu0 %v4037
        %4101 = vmatprep.subr.mxu0 0.0
        %4102 = vmatpush1.msra.mxu0 %v4038
        %4103 = vmatprep.subr.mxu0 0.0
        %4104 = vmatpush1.msra.mxu0 %v4039
        %4105 = vmatprep.subr.mxu0 0.0
        %4106 = vmatpush1.msra.mxu0 %v4040
        %4107 = vmatprep.subr.mxu0 0.0
        %4108 = vmatpush1.msra.mxu0 %v4041
        %4109 = vmatprep.subr.mxu0 0.0
        %4110 = vmatpush1.msra.mxu0 %v4042
        %4111 = vmatprep.subr.mxu0 0.0
        %4112 = vmatpush1.msra.mxu0 %v4043
        %4113 = vmatprep.subr.mxu0 0.0
        %4114 = vmatpush1.msra.mxu0 %v4044
        %4115 = vmatprep.subr.mxu0 0.0
        %4116 = vmatpush1.msra.mxu0 %v4045
        %4117 = vmatprep.subr.mxu0 0.0
        %4118 = vmatpush1.msra.mxu0 %v4046
        %4119 = vmatprep.subr.mxu0 0.0
        %4120 = vmatpush1.msra.mxu0 %v4047
        %4121 = vmatprep.subr.mxu0 0.0
        %4122 = vmatpush1.msra.mxu0 %v4048
        %4123 = vmatprep.subr.mxu0 0.0
        %4124 = vmatpush1.msra.mxu0 %v4049
        %4125 = vmatprep.subr.mxu0 0.0
        %4126 = vmatpush1.msra.mxu0 %v4050
        %4127 = vmatprep.subr.mxu0 0.0
        %4128 = vmatpush1.msra.mxu0 %v4051
        %4129 = vmatprep.subr.mxu0 0.0
        %4130 = vmatpush1.msra.mxu0 %v4052
        %4131 = vmatprep.subr.mxu0 0.0
        %4132 = vmatpush1.msra.mxu0 %v4053
        %4133 = vmatprep.subr.mxu0 0.0
        %4134 = vmatpush1.msra.mxu0 %v4054
        %4135 = vmatprep.subr.mxu0 0.0
        %4136 = vmatpush1.msra.mxu0 %v4055
        %4137 = vmatprep.mubr.f32.mxu0 %v4022
        %4138 = vmatmul.mubr.f32.gmra.mrb[0].mxu0 %v4021
        %v4139 = vpop.f32.mrb[0].mxu0
        %v4140 = vadd.f32 %v4072, %v4139
        %v4141 = vpop.f32.mrb[0].mxu0
        %4142 = vdwg.mxu0
        %4143 = vmatprep.subr.mxu0 0.0
        %4144 = vmatpush1.msra.mxu0 %v4056
        %4145 = vmatprep.subr.mxu0 0.0
        %4146 = vmatpush1.msra.mxu0 %v4057
        %4147 = vmatprep.subr.mxu0 0.0
        %4148 = vmatpush1.msra.mxu0 %v4058
        %4149 = vmatprep.subr.mxu0 0.0
        %4150 = vmatpush1.msra.mxu0 %v4059
        %4151 = vmatprep.subr.mxu0 0.0
        %4152 = vmatpush1.msra.mxu0 %v4060
        %4153 = vmatprep.subr.mxu0 0.0
        %4154 = vmatpush1.msra.mxu0 %v4061
        %4155 = vmatprep.subr.mxu0 0.0
        %4156 = vmatpush1.msra.mxu0 %v4062
        %4157 = vmatprep.subr.mxu0 0.0
        %4158 = vmatpush1.msra.mxu0 %v4063
        %4159 = vmatprep.subr.mxu0 0.0
        %4160 = vmatpush1.msra.mxu0 %v4064
        %4161 = vmatprep.subr.mxu0 0.0
        %4162 = vmatpush1.msra.mxu0 %v4065
        %4163 = vmatprep.subr.mxu0 0.0
        %4164 = vmatpush1.msra.mxu0 %v4066
        %4165 = vmatprep.subr.mxu0 0.0
        %4166 = vmatpush1.msra.mxu0 %v4067
        %4167 = vmatprep.subr.mxu0 0.0
        %4168 = vmatpush1.msra.mxu0 %v4068
        %4169 = vmatprep.subr.mxu0 0.0
        %4170 = vmatpush1.msra.mxu0 %v4069
        %4171 = vmatprep.subr.mxu0 0.0
        %4172 = vmatpush1.msra.mxu0 %v4070
        %4173 = vmatprep.subr.mxu0 0.0
        %4174 = vmatpush1.msra.mxu0 %v4071
        %4175 = vmatprep.subr.mxu0 0.0
        %4176 = vmatpush1.msra.mxu0 0.0
        %4177 = vmatprep.subr.mxu0 0.0
        %4178 = vmatpush1.msra.mxu0 0.0
        %4179 = vmatprep.subr.mxu0 0.0
        %4180 = vmatpush1.msra.mxu0 0.0
        %4181 = vmatprep.subr.mxu0 0.0
        %4182 = vmatpush1.msra.mxu0 0.0
        %4183 = vmatprep.subr.mxu0 0.0
        %4184 = vmatpush1.msra.mxu0 0.0
        %4185 = vmatprep.subr.mxu0 0.0
        %4186 = vmatpush1.msra.mxu0 0.0
        %4187 = vmatprep.subr.mxu0 0.0
        %4188 = vmatpush1.msra.mxu0 0.0
        %4189 = vmatprep.subr.mxu0 0.0
        %4190 = vmatpush1.msra.mxu0 0.0
        %4191 = vmatprep.subr.mxu0 0.0
        %4192 = vmatpush1.msra.mxu0 0.0
        %4193 = vmatprep.subr.mxu0 0.0
        %4194 = vmatpush1.msra.mxu0 0.0
        %4195 = vmatprep.subr.mxu0 0.0
        %4196 = vmatpush1.msra.mxu0 0.0
        %4197 = vmatprep.subr.mxu0 0.0
        %4198 = vmatpush1.msra.mxu0 0.0
        %4199 = vmatprep.subr.mxu0 0.0
        %4200 = vmatpush1.msra.mxu0 0.0
        %4201 = vmatprep.subr.mxu0 0.0
        %4202 = vmatpush1.msra.mxu0 0.0
        %4203 = vmatprep.subr.mxu0 0.0
        %4204 = vmatpush1.msra.mxu0 0.0
        %4205 = vmatprep.subr.mxu0 0.0
        %4206 = vmatpush1.msra.mxu0 0.0
        %4207 = vmatprep.mubr.f32.mxu0 0.0
        %4208 = vmatmul.mubr.f32.gmra.mrb[0].mxu0 %v4023
        %v4209 = vpop.f32.mrb[0].mxu0
        %v4210 = vadd.f32 %v4140, %v4209
        %v4211 = vpop.f32.mrb[0].mxu0
        %4212 = vdwg.mxu0
        %v4213 = vmax.f32 %v4210, 0.0
        %v4214 = vld [vmem:[#allocation9] sm:$0xff]
        %v4215 = vld [vmem:[#allocation9 + $0x8] sm:$0xff]
        %v4216 = vld [vmem:[#allocation9 + $0x10] sm:$0xff]
        %v4217 = vld [vmem:[#allocation9 + $0x18] sm:$0xff]
        %v4218 = vld [vmem:[#allocation9 + $0x20] sm:$0xff]
        %v4219 = vld [vmem:[#allocation9 + $0x28] sm:$0xff]
        %v4220 = vld [vmem:[#allocation9 + $0x30] sm:$0xff]
        %v4221 = vld [vmem:[#allocation9 + $0x38] sm:$0xff]
        %v4222 = vld [vmem:[#allocation9 + $0x40] sm:$0xff]
        %v4223 = vld [vmem:[#allocation9 + $0x48] sm:$0xff]
        %v4224 = vld [vmem:[#allocation9 + $0x50] sm:$0xff]
        %v4225 = vld [vmem:[#allocation9 + $0x58] sm:$0xff]
        %v4226 = vld [vmem:[#allocation9 + $0x60] sm:$0xff]
        %v4227 = vld [vmem:[#allocation9 + $0x68] sm:$0xff]
        %v4228 = vld [vmem:[#allocation9 + $0x70] sm:$0xff]
        %v4229 = vld [vmem:[#allocation9 + $0x78] sm:$0xff]
        %v4230 = vld [vmem:[#allocation9 + $0x80] sm:$0xff]
        %v4231 = vld [vmem:[#allocation9 + $0x88] sm:$0xff]
        %v4232 = vld [vmem:[#allocation9 + $0x90] sm:$0xff]
        %v4233 = vld [vmem:[#allocation9 + $0x98] sm:$0xff]
        %v4234 = vld [vmem:[#allocation9 + $0xa0] sm:$0xff]
        %v4235 = vld [vmem:[#allocation9 + $0xa8] sm:$0xff]
        %v4236 = vld [vmem:[#allocation9 + $0xb0] sm:$0xff]
        %v4237 = vld [vmem:[#allocation9 + $0xb8] sm:$0xff]
        %v4238 = vld [vmem:[#allocation9 + $0xc0] sm:$0xff]
        %v4239 = vld [vmem:[#allocation9 + $0xc8] sm:$0xff]
        %v4240 = vld [vmem:[#allocation9 + $0xd0] sm:$0xff]
        %v4241 = vld [vmem:[#allocation9 + $0xd8] sm:$0xff]
        %v4242 = vld [vmem:[#allocation9 + $0xe0] sm:$0xff]
        %v4243 = vld [vmem:[#allocation9 + $0xe8] sm:$0xff]
        %v4244 = vld [vmem:[#allocation9 + $0xf0] sm:$0xff]
        %v4245 = vld [vmem:[#allocation9 + $0xf8] sm:$0xff]
        %v4246 = vld [vmem:[#allocation9 + $0x100] sm:$0xff]
        %v4247 = vld [vmem:[#allocation9 + $0x108] sm:$0xff]
        %v4248 = vld [vmem:[#allocation9 + $0x110] sm:$0xff]
        %v4249 = vld [vmem:[#allocation9 + $0x118] sm:$0xff]
        %v4250 = vld [vmem:[#allocation9 + $0x120] sm:$0xff]
        %v4251 = vld [vmem:[#allocation9 + $0x128] sm:$0xff]
        %v4252 = vld [vmem:[#allocation9 + $0x130] sm:$0xff]
        %v4253 = vld [vmem:[#allocation9 + $0x138] sm:$0xff]
        %v4254 = vld [vmem:[#allocation9 + $0x140] sm:$0xff]
        %v4255 = vld [vmem:[#allocation9 + $0x148] sm:$0xff]
        %v4256 = vld [vmem:[#allocation9 + $0x150] sm:$0xff]
        %v4257 = vld [vmem:[#allocation9 + $0x158] sm:$0xff]
        %v4258 = vld [vmem:[#allocation9 + $0x160] sm:$0xff]
        %v4259 = vld [vmem:[#allocation9 + $0x168] sm:$0xff]
        %v4260 = vld [vmem:[#allocation9 + $0x170] sm:$0xff]
        %v4261 = vld [vmem:[#allocation9 + $0x178] sm:$0xff]
        %v4262 = vld [vmem:[%s6] sm:$0x7]
        %v4264 = vlaneseq
        %v4265 = vshrl.u32 %v4264, 7
        %v4266 = vsub.s32 0, %v4265
        %v4267 = vrot.slane %v4262, %v4266
        %v4268 = vlaneseq
        %v4269 = vshrl.u32 %v4268, 7
        %v4270 = vsub.s32 1, %v4269
        %v4271 = vrot.slane %v4262, %v4270
        %v4272 = vlaneseq
        %v4273 = vshrl.u32 %v4272, 7
        %v4274 = vsub.s32 2, %v4273
        %v4275 = vrot.slane %v4262, %v4274
        %4279 = vmatprep.subr.mxu0 %v4215
        %4280 = vmatpush1.msra.mxu0 %v4214
        %4281 = vmatprep.subr.mxu0 %v4218
        %4282 = vmatpush1.msra.mxu0 %v4217
        %4283 = vmatprep.subr.mxu0 %v4221
        %4284 = vmatpush1.msra.mxu0 %v4220
        %4285 = vmatprep.subr.mxu0 %v4224
        %4286 = vmatpush1.msra.mxu0 %v4223
        %4287 = vmatprep.subr.mxu0 %v4227
        %4288 = vmatpush1.msra.mxu0 %v4226
        %4289 = vmatprep.subr.mxu0 %v4230
        %4290 = vmatpush1.msra.mxu0 %v4229
        %4291 = vmatprep.subr.mxu0 %v4233
        %4292 = vmatpush1.msra.mxu0 %v4232
        %4293 = vmatprep.subr.mxu0 %v4236
        %4294 = vmatpush1.msra.mxu0 %v4235
        %4295 = vmatprep.subr.mxu0 %v4239
        %4296 = vmatpush1.msra.mxu0 %v4238
        %4297 = vmatprep.subr.mxu0 %v4242
        %4298 = vmatpush1.msra.mxu0 %v4241
        %4299 = vmatprep.subr.mxu0 %v4245
        %4300 = vmatpush1.msra.mxu0 %v4244
        %4301 = vmatprep.subr.mxu0 %v4248
        %4302 = vmatpush1.msra.mxu0 %v4247
        %4303 = vmatprep.subr.mxu0 %v4251
        %4304 = vmatpush1.msra.mxu0 %v4250
        %4305 = vmatprep.subr.mxu0 %v4254
        %4306 = vmatpush1.msra.mxu0 %v4253
        %4307 = vmatprep.subr.mxu0 %v4257
        %4308 = vmatpush1.msra.mxu0 %v4256
        %4309 = vmatprep.subr.mxu0 %v4260
        %4310 = vmatpush1.msra.mxu0 %v4259
        %4311 = vmatprep.subr.mxu0 0.0
        %4312 = vmatpush1.msra.mxu0 0.0
        %4313 = vmatprep.subr.mxu0 0.0
        %4314 = vmatpush1.msra.mxu0 0.0
        %4315 = vmatprep.subr.mxu0 0.0
        %4316 = vmatpush1.msra.mxu0 0.0
        %4317 = vmatprep.subr.mxu0 0.0
        %4318 = vmatpush1.msra.mxu0 0.0
        %4319 = vmatprep.subr.mxu0 0.0
        %4320 = vmatpush1.msra.mxu0 0.0
        %4321 = vmatprep.subr.mxu0 0.0
        %4322 = vmatpush1.msra.mxu0 0.0
        %4323 = vmatprep.subr.mxu0 0.0
        %4324 = vmatpush1.msra.mxu0 0.0
        %4325 = vmatprep.subr.mxu0 0.0
        %4326 = vmatpush1.msra.mxu0 0.0
        %4327 = vmatprep.subr.mxu0 0.0
        %4328 = vmatpush1.msra.mxu0 0.0
        %4329 = vmatprep.subr.mxu0 0.0
        %4330 = vmatpush1.msra.mxu0 0.0
        %4331 = vmatprep.subr.mxu0 0.0
        %4332 = vmatpush1.msra.mxu0 0.0
        %4333 = vmatprep.subr.mxu0 0.0
        %4334 = vmatpush1.msra.mxu0 0.0
        %4335 = vmatprep.subr.mxu0 0.0
        %4336 = vmatpush1.msra.mxu0 0.0
        %4337 = vmatprep.subr.mxu0 0.0
        %4338 = vmatpush1.msra.mxu0 0.0
        %4339 = vmatprep.subr.mxu0 0.0
        %4340 = vmatpush1.msra.mxu0 0.0
        %4341 = vmatprep.subr.mxu0 0.0
        %4342 = vmatpush1.msra.mxu0 0.0
        %4343 = vmatprep.mubr.f32.mxu0 0.0
        %4344 = vmatmul.mubr.f32.gmra.mrb[0].mxu0 %v4213
        %v4345 = vpop.f32.mrb[0].mxu0
        %v4346 = vadd.f32 %v4267, %v4345
        %v4347 = vpop.f32.mrb[0].mxu0
        %v4348 = vadd.f32 %v4271, %v4347
        %4349 = vdwg.mxu0
        %4350 = vmatprep.subr.mxu0 0.0
        %4351 = vmatpush1.msra.mxu0 %v4216
        %4352 = vmatprep.subr.mxu0 0.0
        %4353 = vmatpush1.msra.mxu0 %v4219
        %4354 = vmatprep.subr.mxu0 0.0
        %4355 = vmatpush1.msra.mxu0 %v4222
        %4356 = vmatprep.subr.mxu0 0.0
        %4357 = vmatpush1.msra.mxu0 %v4225
        %4358 = vmatprep.subr.mxu0 0.0
        %4359 = vmatpush1.msra.mxu0 %v4228
        %4360 = vmatprep.subr.mxu0 0.0
        %4361 = vmatpush1.msra.mxu0 %v4231
        %4362 = vmatprep.subr.mxu0 0.0
        %4363 = vmatpush1.msra.mxu0 %v4234
        %4364 = vmatprep.subr.mxu0 0.0
        %4365 = vmatpush1.msra.mxu0 %v4237
        %4366 = vmatprep.subr.mxu0 0.0
        %4367 = vmatpush1.msra.mxu0 %v4240
        %4368 = vmatprep.subr.mxu0 0.0
        %4369 = vmatpush1.msra.mxu0 %v4243
        %4370 = vmatprep.subr.mxu0 0.0
        %4371 = vmatpush1.msra.mxu0 %v4246
        %4372 = vmatprep.subr.mxu0 0.0
        %4373 = vmatpush1.msra.mxu0 %v4249
        %4374 = vmatprep.subr.mxu0 0.0
        %4375 = vmatpush1.msra.mxu0 %v4252
        %4376 = vmatprep.subr.mxu0 0.0
        %4377 = vmatpush1.msra.mxu0 %v4255
        %4378 = vmatprep.subr.mxu0 0.0
        %4379 = vmatpush1.msra.mxu0 %v4258
        %4380 = vmatprep.subr.mxu0 0.0
        %4381 = vmatpush1.msra.mxu0 %v4261
        %4382 = vmatprep.subr.mxu0 0.0
        %4383 = vmatpush1.msra.mxu0 0.0
        %4384 = vmatprep.subr.mxu0 0.0
        %4385 = vmatpush1.msra.mxu0 0.0
        %4386 = vmatprep.subr.mxu0 0.0
        %4387 = vmatpush1.msra.mxu0 0.0
        %4388 = vmatprep.subr.mxu0 0.0
        %4389 = vmatpush1.msra.mxu0 0.0
        %4390 = vmatprep.subr.mxu0 0.0
        %4391 = vmatpush1.msra.mxu0 0.0
        %4392 = vmatprep.subr.mxu0 0.0
        %4393 = vmatpush1.msra.mxu0 0.0
        %4394 = vmatprep.subr.mxu0 0.0
        %4395 = vmatpush1.msra.mxu0 0.0
        %4396 = vmatprep.subr.mxu0 0.0
        %4397 = vmatpush1.msra.mxu0 0.0
        %4398 = vmatprep.subr.mxu0 0.0
        %4399 = vmatpush1.msra.mxu0 0.0
        %4400 = vmatprep.subr.mxu0 0.0
        %4401 = vmatpush1.msra.mxu0 0.0
        %4402 = vmatprep.subr.mxu0 0.0
        %4403 = vmatpush1.msra.mxu0 0.0
        %4404 = vmatprep.subr.mxu0 0.0
        %4405 = vmatpush1.msra.mxu0 0.0
        %4406 = vmatprep.subr.mxu0 0.0
        %4407 = vmatpush1.msra.mxu0 0.0
        %4408 = vmatprep.subr.mxu0 0.0
        %4409 = vmatpush1.msra.mxu0 0.0
        %4410 = vmatprep.subr.mxu0 0.0
        %4411 = vmatpush1.msra.mxu0 0.0
        %4412 = vmatprep.subr.mxu0 0.0
        %4413 = vmatpush1.msra.mxu0 0.0
        %4414 = vmatprep.mubr.f32.mxu0 0.0
        %4415 = vmatmul.mubr.f32.gmra.mrb[0].mxu0 %v4213
        %v4416 = vpop.f32.mrb[0].mxu0
        %v4417 = vadd.f32 %v4275, %v4416
        %v4418 = vpop.f32.mrb[0].mxu0
        %4419 = vdwg.mxu0
        %v4420 = vxor.u32 %v4346, 2147483648
        %v4421 = vxor.u32 %v4348, 2147483648
        %v4422 = vxor.u32 %v4417, 2147483648
        %v4423 = vmul.f32 %v4420, 1.442695
        %v4424 = vpow.pop %v4423
        %v4425 = vmul.f32 %v4421, 1.442695
        %v4426 = vpow.pop %v4425
        %v4427 = vmul.f32 %v4422, 1.442695
        %v4428 = vpow.pop %v4427
        %v4429 = vadd.f32 %v4424, 1.0
        %v4430 = vadd.f32 %v4426, 1.0
        %v4431 = vadd.f32 %v4428, 1.0
        %v4432 = vrcp.pop %v4429
        %v4433 = vmul.f32 1.0, %v4432
        %v4434 = vrcp.pop %v4430
        %v4435 = vmul.f32 1.0, %v4434
        %v4436 = vrcp.pop %v4431
        %v4437 = vmul.f32 1.0, %v4436
        %v4438 = vld [vmem:[#allocation11] sm:$0xf]
        %v4439 = vld [vmem:[#allocation11 + $0x4] sm:$0xf]
        %v4440 = vld [vmem:[#allocation11 + $0x8] sm:$0xf]
        %v4441 = vld [vmem:[#allocation11 + $0xc] sm:$0xf]
        %v4442 = vld [vmem:[#allocation11 + $0x10] sm:$0xf]
        %v4443 = vld [vmem:[#allocation11 + $0x14] sm:$0xf]
        %v4444 = vld [vmem:[#allocation11 + $0x18] sm:$0xf]
        %v4445 = vld [vmem:[#allocation11 + $0x1c] sm:$0xf]
        %v4446 = vld [vmem:[#allocation11 + $0x20] sm:$0xf]
        %v4447 = vld [vmem:[#allocation11 + $0x24] sm:$0xf]
        %v4448 = vld [vmem:[#allocation11 + $0x28] sm:$0xf]
        %v4449 = vld [vmem:[#allocation11 + $0x2c] sm:$0xf]
        %v4450 = vld [vmem:[#allocation11 + $0x30] sm:$0xf]
        %v4451 = vld [vmem:[#allocation11 + $0x34] sm:$0xf]
        %v4452 = vld [vmem:[#allocation11 + $0x38] sm:$0xf]
        %v4453 = vld [vmem:[#allocation11 + $0x3c] sm:$0xf]
        %v4454 = vld [vmem:[#allocation11 + $0x40] sm:$0xf]
        %v4455 = vld [vmem:[#allocation11 + $0x44] sm:$0xf]
        %v4456 = vld [vmem:[#allocation11 + $0x48] sm:$0xf]
        %v4457 = vld [vmem:[#allocation11 + $0x4c] sm:$0xf]
        %v4458 = vld [vmem:[#allocation11 + $0x50] sm:$0xf]
        %v4459 = vld [vmem:[#allocation11 + $0x54] sm:$0xf]
        %v4460 = vld [vmem:[#allocation11 + $0x58] sm:$0xf]
        %v4461 = vld [vmem:[#allocation11 + $0x5c] sm:$0xf]
        %v4462 = vld [vmem:[#allocation11 + $0x60] sm:$0xf]
        %v4463 = vld [vmem:[#allocation11 + $0x64] sm:$0xf]
        %v4464 = vld [vmem:[#allocation11 + $0x68] sm:$0xf]
        %v4465 = vld [vmem:[#allocation11 + $0x6c] sm:$0xf]
        %v4466 = vld [vmem:[#allocation11 + $0x70] sm:$0xf]
        %v4467 = vld [vmem:[#allocation11 + $0x74] sm:$0xf]
        %v4468 = vld [vmem:[#allocation11 + $0x78] sm:$0xf]
        %v4469 = vld [vmem:[#allocation11 + $0x7c] sm:$0xf]
        %v4470 = vld [vmem:[#allocation11 + $0x80] sm:$0xf]
        %v4471 = vld [vmem:[#allocation11 + $0x84] sm:$0xf]
        %v4472 = vld [vmem:[#allocation11 + $0x88] sm:$0xf]
        %v4473 = vld [vmem:[#allocation11 + $0x8c] sm:$0xf]
        %v4474 = vld [vmem:[#allocation11 + $0x90] sm:$0xf]
        %v4475 = vld [vmem:[#allocation11 + $0x94] sm:$0xf]
        %v4476 = vld [vmem:[#allocation11 + $0x98] sm:$0xf]
        %v4477 = vld [vmem:[#allocation11 + $0x9c] sm:$0xf]
        %v4478 = vld [vmem:[#allocation11 + $0xa0] sm:$0xf]
        %v4479 = vld [vmem:[#allocation11 + $0xa4] sm:$0xf]
        %v4480 = vld [vmem:[#allocation11 + $0xa8] sm:$0xf]
        %v4481 = vld [vmem:[#allocation11 + $0xac] sm:$0xf]
        %v4482 = vld [vmem:[#allocation11 + $0xb0] sm:$0xf]
        %v4483 = vld [vmem:[#allocation11 + $0xb4] sm:$0xf]
        %v4484 = vld [vmem:[#allocation11 + $0xb8] sm:$0xf]
        %v4485 = vld [vmem:[#allocation11 + $0xbc] sm:$0xf]
        %v4486 = vld [vmem:[%s8] sm:$0x1]
        %v4487 = vlaneseq
        %v4488 = vshrl.u32 %v4487, 7
        %v4489 = vsub.s32 0, %v4488
        %v4490 = vrot.slane %v4433, %v4489
        %v4491 = vlaneseq
        %v4492 = vshrl.u32 %v4491, 7
        %v4493 = vsub.s32 0, %v4492
        %v4494 = vrot.slane %v4435, %v4493
        %v4495 = vlaneseq
        %v4496 = vshrl.u32 %v4495, 7
        %v4497 = vsub.s32 0, %v4496
        %v4498 = vrot.slane %v4437, %v4497
        %v4499 = vmul.f32 %v1998, %v4490
        %v4500 = vmul.f32 %v2949, %v4494
        %v4501 = vmul.f32 %v3877, %v4498
        %v4502 = vmul.f32 %v1999, %v4490
        %v4503 = vmul.f32 %v2950, %v4494
        %v4504 = vmul.f32 %v3878, %v4498
        %v4505 = vmul.f32 %v2000, %v4490
        %v4506 = vmul.f32 %v2951, %v4494
        %v4507 = vmul.f32 %v3879, %v4498
        %v4508 = vmul.f32 %v2001, %v4490
        %v4509 = vmul.f32 %v2952, %v4494
        %v4510 = vmul.f32 %v3880, %v4498
        %v4511 = vmul.f32 %v2002, %v4490
        %v4512 = vmul.f32 %v2953, %v4494
        %v4513 = vmul.f32 %v3881, %v4498
        %v4514 = vmul.f32 %v2003, %v4490
        %v4515 = vmul.f32 %v2954, %v4494
        %v4516 = vmul.f32 %v3882, %v4498
        %v4517 = vmul.f32 %v2004, %v4490
        %v4518 = vmul.f32 %v2955, %v4494
        %v4519 = vmul.f32 %v3883, %v4498
        %v4520 = vmul.f32 %v2005, %v4490
        %v4521 = vmul.f32 %v2956, %v4494
        %v4522 = vmul.f32 %v3884, %v4498
        %v4523 = vmul.f32 %v2006, %v4490
        %v4524 = vmul.f32 %v2957, %v4494
        %v4525 = vmul.f32 %v3885, %v4498
        %v4526 = vmul.f32 %v2007, %v4490
        %v4527 = vmul.f32 %v2958, %v4494
        %v4528 = vmul.f32 %v3886, %v4498
        %v4529 = vmul.f32 %v2008, %v4490
        %v4530 = vmul.f32 %v2959, %v4494
        %v4531 = vmul.f32 %v3887, %v4498
        %v4532 = vmul.f32 %v2009, %v4490
        %v4533 = vmul.f32 %v2960, %v4494
        %v4534 = vmul.f32 %v3888, %v4498
        %v4535 = vmul.f32 %v2010, %v4490
        %v4536 = vmul.f32 %v2961, %v4494
        %v4537 = vmul.f32 %v3889, %v4498
        %v4538 = vmul.f32 %v2011, %v4490
        %v4539 = vmul.f32 %v2962, %v4494
        %v4540 = vmul.f32 %v3890, %v4498
        %v4541 = vmul.f32 %v2012, %v4490
        %v4542 = vmul.f32 %v2963, %v4494
        %v4543 = vmul.f32 %v3891, %v4498
        %v4544 = vmul.f32 %v2013, %v4490
        %v4545 = vmul.f32 %v2964, %v4494
        %v4546 = vmul.f32 %v3892, %v4498
        %v4547 = vmul.f32 %v2014, %v4490
        %v4548 = vmul.f32 %v2965, %v4494
        %v4549 = vmul.f32 %v3893, %v4498
        %v4550 = vmul.f32 %v2015, %v4490
        %v4551 = vmul.f32 %v2966, %v4494
        %v4552 = vmul.f32 %v3894, %v4498
        %v4553 = vmul.f32 %v2016, %v4490
        %v4554 = vmul.f32 %v2967, %v4494
        %v4555 = vmul.f32 %v3895, %v4498
        %v4556 = vmul.f32 %v2017, %v4490
        %v4557 = vmul.f32 %v2968, %v4494
        %v4558 = vmul.f32 %v3896, %v4498
        %v4559 = vmul.f32 %v2018, %v4490
        %v4560 = vmul.f32 %v2969, %v4494
        %v4561 = vmul.f32 %v3897, %v4498
        %v4562 = vmul.f32 %v2019, %v4490
        %v4563 = vmul.f32 %v2970, %v4494
        %v4564 = vmul.f32 %v3898, %v4498
        %v4565 = vmul.f32 %v2020, %v4490
        %v4566 = vmul.f32 %v2971, %v4494
        %v4567 = vmul.f32 %v3899, %v4498
        %v4568 = vmul.f32 %v2021, %v4490
        %v4569 = vmul.f32 %v2972, %v4494
        %v4570 = vmul.f32 %v3900, %v4498
        %v4571 = vmul.f32 %v2022, %v4490
        %v4572 = vmul.f32 %v2973, %v4494
        %v4573 = vmul.f32 %v3901, %v4498
        %v4574 = vmul.f32 %v2023, %v4490
        %v4575 = vmul.f32 %v2974, %v4494
        %v4576 = vmul.f32 %v3902, %v4498
        %v4577 = vmul.f32 %v2024, %v4490
        %v4578 = vmul.f32 %v2975, %v4494
        %v4579 = vmul.f32 %v3903, %v4498
        %v4580 = vmul.f32 %v2025, %v4490
        %v4581 = vmul.f32 %v2976, %v4494
        %v4582 = vmul.f32 %v3904, %v4498
        %v4583 = vmul.f32 %v2026, %v4490
        %v4584 = vmul.f32 %v2977, %v4494
        %v4585 = vmul.f32 %v3905, %v4498
        %v4586 = vmul.f32 %v2027, %v4490
        %v4587 = vmul.f32 %v2978, %v4494
        %v4588 = vmul.f32 %v3906, %v4498
        %v4589 = vmul.f32 %v2028, %v4490
        %v4590 = vmul.f32 %v2979, %v4494
        %v4591 = vmul.f32 %v3907, %v4498
        %v4592 = vmul.f32 %v2029, %v4490
        %v4593 = vmul.f32 %v2980, %v4494
        %v4594 = vmul.f32 %v3908, %v4498
        %v4595 = vpack.c.bf16 %v4502, %v4499
        %v4596 = vpack.c.bf16 %v4503, %v4500
        %v4597 = vpack.c.bf16 %v4504, %v4501
        %v4598 = vpack.c.bf16 %v4508, %v4505
        %v4599 = vpack.c.bf16 %v4509, %v4506
        %v4600 = vpack.c.bf16 %v4510, %v4507
        %v4601 = vpack.c.bf16 %v4514, %v4511
        %v4602 = vpack.c.bf16 %v4515, %v4512
        %v4603 = vpack.c.bf16 %v4516, %v4513
        %v4604 = vpack.c.bf16 %v4520, %v4517
        %v4605 = vpack.c.bf16 %v4521, %v4518
        %v4606 = vpack.c.bf16 %v4522, %v4519
        %v4607 = vpack.c.bf16 %v4526, %v4523
        %v4608 = vpack.c.bf16 %v4527, %v4524
        %v4609 = vpack.c.bf16 %v4528, %v4525
        %v4610 = vpack.c.bf16 %v4532, %v4529
        %v4611 = vpack.c.bf16 %v4533, %v4530
        %v4612 = vpack.c.bf16 %v4534, %v4531
        %v4613 = vpack.c.bf16 %v4538, %v4535
        %v4614 = vpack.c.bf16 %v4539, %v4536
        %v4615 = vpack.c.bf16 %v4540, %v4537
        %v4616 = vpack.c.bf16 %v4544, %v4541
        %v4617 = vpack.c.bf16 %v4545, %v4542
        %v4618 = vpack.c.bf16 %v4546, %v4543
        %v4619 = vpack.c.bf16 %v4550, %v4547
        %v4620 = vpack.c.bf16 %v4551, %v4548
        %v4621 = vpack.c.bf16 %v4552, %v4549
        %v4622 = vpack.c.bf16 %v4556, %v4553
        %v4623 = vpack.c.bf16 %v4557, %v4554
        %v4624 = vpack.c.bf16 %v4558, %v4555
        %v4625 = vpack.c.bf16 %v4562, %v4559
        %v4626 = vpack.c.bf16 %v4563, %v4560
        %v4627 = vpack.c.bf16 %v4564, %v4561
        %v4628 = vpack.c.bf16 %v4568, %v4565
        %v4629 = vpack.c.bf16 %v4569, %v4566
        %v4630 = vpack.c.bf16 %v4570, %v4567
        %v4631 = vpack.c.bf16 %v4574, %v4571
        %v4632 = vpack.c.bf16 %v4575, %v4572
        %v4633 = vpack.c.bf16 %v4576, %v4573
        %v4634 = vpack.c.bf16 %v4580, %v4577
        %v4635 = vpack.c.bf16 %v4581, %v4578
        %v4636 = vpack.c.bf16 %v4582, %v4579
        %v4637 = vpack.c.bf16 %v4586, %v4583
        %v4638 = vpack.c.bf16 %v4587, %v4584
        %v4639 = vpack.c.bf16 %v4588, %v4585
        %v4640 = vpack.c.bf16 %v4592, %v4589
        %v4641 = vpack.c.bf16 %v4593, %v4590
        %v4642 = vpack.c.bf16 %v4594, %v4591
        %v4644 = vlaneseq
        %v4645 = vshrl.u32 %v4644, 7
        %v4646 = vsub.s32 0, %v4645
        %v4647 = vrot.slane %v4486, %v4646
        %v4697 = vunpack.c.l.b16 %v4438
        %v4698 = vunpack.c.l.b16 %v4439
        %v4699 = vunpack.c.l.b16 %v4440
        %v4700 = vunpack.c.l.b16 %v4441
        %v4701 = vunpack.c.l.b16 %v4442
        %v4702 = vunpack.c.l.b16 %v4443
        %v4703 = vunpack.c.l.b16 %v4444
        %v4704 = vunpack.c.l.b16 %v4445
        %v4705 = vunpack.c.l.b16 %v4446
        %v4706 = vunpack.c.l.b16 %v4447
        %v4707 = vunpack.c.l.b16 %v4448
        %v4708 = vunpack.c.l.b16 %v4449
        %v4709 = vunpack.c.l.b16 %v4450
        %v4710 = vunpack.c.l.b16 %v4451
        %v4711 = vunpack.c.l.b16 %v4452
        %v4712 = vunpack.c.l.b16 %v4453
        %v4713 = vunpack.c.l.b16 %v4454
        %v4714 = vunpack.c.l.b16 %v4455
        %v4715 = vunpack.c.l.b16 %v4456
        %v4716 = vunpack.c.l.b16 %v4457
        %v4717 = vunpack.c.l.b16 %v4458
        %v4718 = vunpack.c.l.b16 %v4459
        %v4719 = vunpack.c.l.b16 %v4460
        %v4720 = vunpack.c.l.b16 %v4461
        %v4721 = vunpack.c.l.b16 %v4462
        %v4722 = vunpack.c.l.b16 %v4463
        %v4723 = vunpack.c.l.b16 %v4464
        %v4724 = vunpack.c.l.b16 %v4465
        %v4725 = vunpack.c.l.b16 %v4466
        %v4726 = vunpack.c.l.b16 %v4467
        %v4727 = vunpack.c.l.b16 %v4468
        %v4728 = vunpack.c.l.b16 %v4469
        %v4729 = vunpack.c.l.b16 %v4470
        %v4730 = vunpack.c.l.b16 %v4471
        %v4731 = vunpack.c.l.b16 %v4472
        %v4732 = vunpack.c.l.b16 %v4473
        %v4733 = vunpack.c.l.b16 %v4474
        %v4734 = vunpack.c.l.b16 %v4475
        %v4735 = vunpack.c.l.b16 %v4476
        %v4736 = vunpack.c.l.b16 %v4477
        %v4737 = vunpack.c.l.b16 %v4478
        %v4738 = vunpack.c.l.b16 %v4479
        %v4739 = vunpack.c.l.b16 %v4480
        %v4740 = vunpack.c.l.b16 %v4481
        %v4741 = vunpack.c.l.b16 %v4482
        %v4742 = vunpack.c.l.b16 %v4483
        %v4743 = vunpack.c.l.b16 %v4484
        %v4744 = vunpack.c.l.b16 %v4485
        %v4745 = vpack.c.b16 %v4698, %v4697
        %v4746 = vpack.c.b16 %v4700, %v4699
        %v4747 = vpack.c.b16 %v4702, %v4701
        %v4748 = vpack.c.b16 %v4704, %v4703
        %v4749 = vpack.c.b16 %v4706, %v4705
        %v4750 = vpack.c.b16 %v4708, %v4707
        %v4751 = vpack.c.b16 %v4710, %v4709
        %v4752 = vpack.c.b16 %v4712, %v4711
        %v4753 = vpack.c.b16 %v4714, %v4713
        %v4754 = vpack.c.b16 %v4716, %v4715
        %v4755 = vpack.c.b16 %v4718, %v4717
        %v4756 = vpack.c.b16 %v4720, %v4719
        %v4757 = vpack.c.b16 %v4722, %v4721
        %v4758 = vpack.c.b16 %v4724, %v4723
        %v4759 = vpack.c.b16 %v4726, %v4725
        %v4760 = vpack.c.b16 %v4728, %v4727
        %v4761 = vpack.c.b16 %v4730, %v4729
        %v4762 = vpack.c.b16 %v4732, %v4731
        %v4763 = vpack.c.b16 %v4734, %v4733
        %v4764 = vpack.c.b16 %v4736, %v4735
        %v4765 = vpack.c.b16 %v4738, %v4737
        %v4766 = vpack.c.b16 %v4740, %v4739
        %v4767 = vpack.c.b16 %v4742, %v4741
        %v4768 = vpack.c.b16 %v4744, %v4743
        %4793 = vmatprep.subr.bf16.mxu0 0
        %4794 = vmatpush1.bf16.msra.mxu0 %v4745
        %4795 = vmatprep.subr.bf16.mxu0 0
        %4796 = vmatpush1.bf16.msra.mxu0 %v4746
        %4797 = vmatprep.subr.bf16.mxu0 0
        %4798 = vmatpush1.bf16.msra.mxu0 %v4747
        %4799 = vmatprep.subr.bf16.mxu0 0
        %4800 = vmatpush1.bf16.msra.mxu0 %v4748
        %4801 = vmatprep.subr.bf16.mxu0 0
        %4802 = vmatpush1.bf16.msra.mxu0 %v4749
        %4803 = vmatprep.subr.bf16.mxu0 0
        %4804 = vmatpush1.bf16.msra.mxu0 %v4750
        %4805 = vmatprep.subr.bf16.mxu0 0
        %4806 = vmatpush1.bf16.msra.mxu0 %v4751
        %4807 = vmatprep.subr.bf16.mxu0 0
        %4808 = vmatpush1.bf16.msra.mxu0 %v4752
        %4809 = vmatprep.subr.bf16.mxu0 0
        %4810 = vmatpush1.bf16.msra.mxu0 %v4753
        %4811 = vmatprep.subr.bf16.mxu0 0
        %4812 = vmatpush1.bf16.msra.mxu0 %v4754
        %4813 = vmatprep.subr.bf16.mxu0 0
        %4814 = vmatpush1.bf16.msra.mxu0 %v4755
        %4815 = vmatprep.subr.bf16.mxu0 0
        %4816 = vmatpush1.bf16.msra.mxu0 %v4756
        %4817 = vmatprep.subr.bf16.mxu0 0
        %4818 = vmatpush1.bf16.msra.mxu0 %v4757
        %4819 = vmatprep.subr.bf16.mxu0 0
        %4820 = vmatpush1.bf16.msra.mxu0 %v4758
        %4821 = vmatprep.subr.bf16.mxu0 0
        %4822 = vmatpush1.bf16.msra.mxu0 %v4759
        %4823 = vmatprep.subr.bf16.mxu0 0
        %4824 = vmatpush1.bf16.msra.mxu0 %v4760
        %4825 = vmatprep.mubr.bf16.mxu0 %v4596
        %4826 = vmatmul.mubr.bf16.gmra.mrb[0].mxu0 %v4595
        %v4827 = vpop.f32.mrb[0].mxu0
        %v4828 = vadd.f32 %v4647, %v4827
        %v4829 = vpop.f32.mrb[0].mxu0
        %v4830 = vpop.f32.mrb[0].mxu0
        %v4831 = vadd.f32 %v4647, %v4830
        %v4832 = vpop.f32.mrb[0].mxu0
        %4833 = vmatprep.mubr.bf16.mxu0 %v4599
        %4834 = vmatmul.mubr.bf16.gmra.mrb[0].mxu0 %v4598
        %v4835 = vpop.f32.mrb[0].mxu0
        %v4836 = vadd.f32 %v4647, %v4835
        %v4837 = vpop.f32.mrb[0].mxu0
        %v4838 = vpop.f32.mrb[0].mxu0
        %v4839 = vadd.f32 %v4647, %v4838
        %v4840 = vpop.f32.mrb[0].mxu0
        %4841 = vmatprep.mubr.bf16.mxu0 %v4602
        %4842 = vmatmul.mubr.bf16.gmra.mrb[0].mxu0 %v4601
        %v4843 = vpop.f32.mrb[0].mxu0
        %v4844 = vadd.f32 %v4647, %v4843
        %v4845 = vpop.f32.mrb[0].mxu0
        %v4846 = vpop.f32.mrb[0].mxu0
        %v4847 = vadd.f32 %v4647, %v4846
        %v4848 = vpop.f32.mrb[0].mxu0
        %4849 = vmatprep.mubr.bf16.mxu0 %v4605
        %4850 = vmatmul.mubr.bf16.gmra.mrb[0].mxu0 %v4604
        %v4851 = vpop.f32.mrb[0].mxu0
        %v4852 = vadd.f32 %v4647, %v4851
        %v4853 = vpop.f32.mrb[0].mxu0
        %v4854 = vpop.f32.mrb[0].mxu0
        %v4855 = vadd.f32 %v4647, %v4854
        %v4856 = vpop.f32.mrb[0].mxu0
        %4857 = vmatprep.mubr.bf16.mxu0 %v4608
        %4858 = vmatmul.mubr.bf16.gmra.mrb[0].mxu0 %v4607
        %v4859 = vpop.f32.mrb[0].mxu0
        %v4860 = vadd.f32 %v4647, %v4859
        %v4861 = vpop.f32.mrb[0].mxu0
        %v4862 = vpop.f32.mrb[0].mxu0
        %v4863 = vadd.f32 %v4647, %v4862
        %v4864 = vpop.f32.mrb[0].mxu0
        %4865 = vmatprep.mubr.bf16.mxu0 %v4611
        %4866 = vmatmul.mubr.bf16.gmra.mrb[0].mxu0 %v4610
        %v4867 = vpop.f32.mrb[0].mxu0
        %v4868 = vadd.f32 %v4647, %v4867
        %v4869 = vpop.f32.mrb[0].mxu0
        %v4870 = vpop.f32.mrb[0].mxu0
        %v4871 = vadd.f32 %v4647, %v4870
        %v4872 = vpop.f32.mrb[0].mxu0
        %4873 = vmatprep.mubr.bf16.mxu0 %v4614
        %4874 = vmatmul.mubr.bf16.gmra.mrb[0].mxu0 %v4613
        %v4875 = vpop.f32.mrb[0].mxu0
        %v4876 = vadd.f32 %v4647, %v4875
        %v4877 = vpop.f32.mrb[0].mxu0
        %v4878 = vpop.f32.mrb[0].mxu0
        %v4879 = vadd.f32 %v4647, %v4878
        %v4880 = vpop.f32.mrb[0].mxu0
        %4881 = vmatprep.mubr.bf16.mxu0 %v4617
        %4882 = vmatmul.mubr.bf16.gmra.mrb[0].mxu0 %v4616
        %v4883 = vpop.f32.mrb[0].mxu0
        %v4884 = vadd.f32 %v4647, %v4883
        %v4885 = vpop.f32.mrb[0].mxu0
        %v4886 = vpop.f32.mrb[0].mxu0
        %v4887 = vadd.f32 %v4647, %v4886
        %v4888 = vpop.f32.mrb[0].mxu0
        %4889 = vmatprep.mubr.bf16.mxu0 %v4620
        %4890 = vmatmul.mubr.bf16.gmra.mrb[0].mxu0 %v4619
        %v4891 = vpop.f32.mrb[0].mxu0
        %v4892 = vadd.f32 %v4647, %v4891
        %v4893 = vpop.f32.mrb[0].mxu0
        %v4894 = vpop.f32.mrb[0].mxu0
        %v4895 = vadd.f32 %v4647, %v4894
        %v4896 = vpop.f32.mrb[0].mxu0
        %4897 = vmatprep.mubr.bf16.mxu0 %v4623
        %4898 = vmatmul.mubr.bf16.gmra.mrb[0].mxu0 %v4622
        %v4899 = vpop.f32.mrb[0].mxu0
        %v4900 = vadd.f32 %v4647, %v4899
        %v4901 = vpop.f32.mrb[0].mxu0
        %v4902 = vpop.f32.mrb[0].mxu0
        %v4903 = vadd.f32 %v4647, %v4902
        %v4904 = vpop.f32.mrb[0].mxu0
        %4905 = vmatprep.mubr.bf16.mxu0 %v4626
        %4906 = vmatmul.mubr.bf16.gmra.mrb[0].mxu0 %v4625
        %v4907 = vpop.f32.mrb[0].mxu0
        %v4908 = vadd.f32 %v4647, %v4907
        %v4909 = vpop.f32.mrb[0].mxu0
        %v4910 = vpop.f32.mrb[0].mxu0
        %v4911 = vadd.f32 %v4647, %v4910
        %v4912 = vpop.f32.mrb[0].mxu0
        %4913 = vmatprep.mubr.bf16.mxu0 %v4629
        %4914 = vmatmul.mubr.bf16.gmra.mrb[0].mxu0 %v4628
        %v4915 = vpop.f32.mrb[0].mxu0
        %v4916 = vadd.f32 %v4647, %v4915
        %v4917 = vpop.f32.mrb[0].mxu0
        %v4918 = vpop.f32.mrb[0].mxu0
        %v4919 = vadd.f32 %v4647, %v4918
        %v4920 = vpop.f32.mrb[0].mxu0
        %4921 = vmatprep.mubr.bf16.mxu0 %v4632
        %4922 = vmatmul.mubr.bf16.gmra.mrb[0].mxu0 %v4631
        %v4923 = vpop.f32.mrb[0].mxu0
        %v4924 = vadd.f32 %v4647, %v4923
        %v4925 = vpop.f32.mrb[0].mxu0
        %v4926 = vpop.f32.mrb[0].mxu0
        %v4927 = vadd.f32 %v4647, %v4926
        %v4928 = vpop.f32.mrb[0].mxu0
        %4929 = vmatprep.mubr.bf16.mxu0 %v4635
        %4930 = vmatmul.mubr.bf16.gmra.mrb[0].mxu0 %v4634
        %v4931 = vpop.f32.mrb[0].mxu0
        %v4932 = vadd.f32 %v4647, %v4931
        %v4933 = vpop.f32.mrb[0].mxu0
        %v4934 = vpop.f32.mrb[0].mxu0
        %v4935 = vadd.f32 %v4647, %v4934
        %v4936 = vpop.f32.mrb[0].mxu0
        %4937 = vmatprep.mubr.bf16.mxu0 %v4638
        %4938 = vmatmul.mubr.bf16.gmra.mrb[0].mxu0 %v4637
        %v4939 = vpop.f32.mrb[0].mxu0
        %v4940 = vadd.f32 %v4647, %v4939
        %v4941 = vpop.f32.mrb[0].mxu0
        %v4942 = vpop.f32.mrb[0].mxu0
        %v4943 = vadd.f32 %v4647, %v4942
        %v4944 = vpop.f32.mrb[0].mxu0
        %4945 = vmatprep.mubr.bf16.mxu0 %v4641
        %4946 = vmatmul.mubr.bf16.gmra.mrb[0].mxu0 %v4640
        %v4947 = vpop.f32.mrb[0].mxu0
        %v4948 = vadd.f32 %v4647, %v4947
        %v4949 = vpop.f32.mrb[0].mxu0
        %v4950 = vpop.f32.mrb[0].mxu0
        %v4951 = vadd.f32 %v4647, %v4950
        %v4952 = vpop.f32.mrb[0].mxu0
        %4953 = vdwg.mxu0
        %4954 = vmatprep.subr.bf16.mxu0 0
        %4955 = vmatpush1.bf16.msra.mxu0 %v4761
        %4956 = vmatprep.subr.bf16.mxu0 0
        %4957 = vmatpush1.bf16.msra.mxu0 %v4762
        %4958 = vmatprep.subr.bf16.mxu0 0
        %4959 = vmatpush1.bf16.msra.mxu0 %v4763
        %4960 = vmatprep.subr.bf16.mxu0 0
        %4961 = vmatpush1.bf16.msra.mxu0 %v4764
        %4962 = vmatprep.subr.bf16.mxu0 0
        %4963 = vmatpush1.bf16.msra.mxu0 %v4765
        %4964 = vmatprep.subr.bf16.mxu0 0
        %4965 = vmatpush1.bf16.msra.mxu0 %v4766
        %4966 = vmatprep.subr.bf16.mxu0 0
        %4967 = vmatpush1.bf16.msra.mxu0 %v4767
        %4968 = vmatprep.subr.bf16.mxu0 0
        %4969 = vmatpush1.bf16.msra.mxu0 %v4768
        %4970 = vmatprep.subr.bf16.mxu0 0
        %4971 = vmatpush1.bf16.msra.mxu0 0
        %4972 = vmatprep.subr.bf16.mxu0 0
        %4973 = vmatpush1.bf16.msra.mxu0 0
        %4974 = vmatprep.subr.bf16.mxu0 0
        %4975 = vmatpush1.bf16.msra.mxu0 0
        %4976 = vmatprep.subr.bf16.mxu0 0
        %4977 = vmatpush1.bf16.msra.mxu0 0
        %4978 = vmatprep.subr.bf16.mxu0 0
        %4979 = vmatpush1.bf16.msra.mxu0 0
        %4980 = vmatprep.subr.bf16.mxu0 0
        %4981 = vmatpush1.bf16.msra.mxu0 0
        %4982 = vmatprep.subr.bf16.mxu0 0
        %4983 = vmatpush1.bf16.msra.mxu0 0
        %4984 = vmatprep.subr.bf16.mxu0 0
        %4985 = vmatpush1.bf16.msra.mxu0 0
        %4986 = vmatprep.mubr.bf16.mxu0 0
        %4987 = vmatmul.mubr.bf16.gmra.mrb[0].mxu0 %v4597
        %v4988 = vpop.f32.mrb[0].mxu0
        %v4989 = vadd.f32 %v4828, %v4988
        %v4990 = vpop.f32.mrb[0].mxu0
        %v4991 = vpop.f32.mrb[0].mxu0
        %v4992 = vadd.f32 %v4831, %v4991
        %v4993 = vpop.f32.mrb[0].mxu0
        %4994 = vmatprep.mubr.bf16.mxu0 0
        %4995 = vmatmul.mubr.bf16.gmra.mrb[0].mxu0 %v4600
        %v4996 = vpop.f32.mrb[0].mxu0
        %v4997 = vadd.f32 %v4836, %v4996
        %v4998 = vpop.f32.mrb[0].mxu0
        %v4999 = vpop.f32.mrb[0].mxu0
        %v5000 = vadd.f32 %v4839, %v4999
        %v5001 = vpop.f32.mrb[0].mxu0
        %5002 = vmatprep.mubr.bf16.mxu0 0
        %5003 = vmatmul.mubr.bf16.gmra.mrb[0].mxu0 %v4603
        %v5004 = vpop.f32.mrb[0].mxu0
        %v5005 = vadd.f32 %v4844, %v5004
        %v5006 = vpop.f32.mrb[0].mxu0
        %v5007 = vpop.f32.mrb[0].mxu0
        %v5008 = vadd.f32 %v4847, %v5007
        %v5009 = vpop.f32.mrb[0].mxu0
        %5010 = vmatprep.mubr.bf16.mxu0 0
        %5011 = vmatmul.mubr.bf16.gmra.mrb[0].mxu0 %v4606
        %v5012 = vpop.f32.mrb[0].mxu0
        %v5013 = vadd.f32 %v4852, %v5012
        %v5014 = vpop.f32.mrb[0].mxu0
        %v5015 = vpop.f32.mrb[0].mxu0
        %v5016 = vadd.f32 %v4855, %v5015
        %v5017 = vpop.f32.mrb[0].mxu0
        %5018 = vmatprep.mubr.bf16.mxu0 0
        %5019 = vmatmul.mubr.bf16.gmra.mrb[0].mxu0 %v4609
        %v5020 = vpop.f32.mrb[0].mxu0
        %v5021 = vadd.f32 %v4860, %v5020
        %v5022 = vpop.f32.mrb[0].mxu0
        %v5023 = vpop.f32.mrb[0].mxu0
        %v5024 = vadd.f32 %v4863, %v5023
        %v5025 = vpop.f32.mrb[0].mxu0
        %5026 = vmatprep.mubr.bf16.mxu0 0
        %5027 = vmatmul.mubr.bf16.gmra.mrb[0].mxu0 %v4612
        %v5028 = vpop.f32.mrb[0].mxu0
        %v5029 = vadd.f32 %v4868, %v5028
        %v5030 = vpop.f32.mrb[0].mxu0
        %v5031 = vpop.f32.mrb[0].mxu0
        %v5032 = vadd.f32 %v4871, %v5031
        %v5033 = vpop.f32.mrb[0].mxu0
        %5034 = vmatprep.mubr.bf16.mxu0 0
        %5035 = vmatmul.mubr.bf16.gmra.mrb[0].mxu0 %v4615
        %v5036 = vpop.f32.mrb[0].mxu0
        %v5037 = vadd.f32 %v4876, %v5036
        %v5038 = vpop.f32.mrb[0].mxu0
        %v5039 = vpop.f32.mrb[0].mxu0
        %v5040 = vadd.f32 %v4879, %v5039
        %v5041 = vpop.f32.mrb[0].mxu0
        %5042 = vmatprep.mubr.bf16.mxu0 0
        %5043 = vmatmul.mubr.bf16.gmra.mrb[0].mxu0 %v4618
        %v5044 = vpop.f32.mrb[0].mxu0
        %v5045 = vadd.f32 %v4884, %v5044
        %v5046 = vpop.f32.mrb[0].mxu0
        %v5047 = vpop.f32.mrb[0].mxu0
        %v5048 = vadd.f32 %v4887, %v5047
        %v5049 = vpop.f32.mrb[0].mxu0
        %5050 = vmatprep.mubr.bf16.mxu0 0
        %5051 = vmatmul.mubr.bf16.gmra.mrb[0].mxu0 %v4621
        %v5052 = vpop.f32.mrb[0].mxu0
        %v5053 = vadd.f32 %v4892, %v5052
        %v5054 = vpop.f32.mrb[0].mxu0
        %v5055 = vpop.f32.mrb[0].mxu0
        %v5056 = vadd.f32 %v4895, %v5055
        %v5057 = vpop.f32.mrb[0].mxu0
        %5058 = vmatprep.mubr.bf16.mxu0 0
        %5059 = vmatmul.mubr.bf16.gmra.mrb[0].mxu0 %v4624
        %v5060 = vpop.f32.mrb[0].mxu0
        %v5061 = vadd.f32 %v4900, %v5060
        %v5062 = vpop.f32.mrb[0].mxu0
        %v5063 = vpop.f32.mrb[0].mxu0
        %v5064 = vadd.f32 %v4903, %v5063
        %v5065 = vpop.f32.mrb[0].mxu0
        %5066 = vmatprep.mubr.bf16.mxu0 0
        %5067 = vmatmul.mubr.bf16.gmra.mrb[0].mxu0 %v4627
        %v5068 = vpop.f32.mrb[0].mxu0
        %v5069 = vadd.f32 %v4908, %v5068
        %v5070 = vpop.f32.mrb[0].mxu0
        %v5071 = vpop.f32.mrb[0].mxu0
        %v5072 = vadd.f32 %v4911, %v5071
        %v5073 = vpop.f32.mrb[0].mxu0
        %5074 = vmatprep.mubr.bf16.mxu0 0
        %5075 = vmatmul.mubr.bf16.gmra.mrb[0].mxu0 %v4630
        %v5076 = vpop.f32.mrb[0].mxu0
        %v5077 = vadd.f32 %v4916, %v5076
        %v5078 = vpop.f32.mrb[0].mxu0
        %v5079 = vpop.f32.mrb[0].mxu0
        %v5080 = vadd.f32 %v4919, %v5079
        %v5081 = vpop.f32.mrb[0].mxu0
        %5082 = vmatprep.mubr.bf16.mxu0 0
        %5083 = vmatmul.mubr.bf16.gmra.mrb[0].mxu0 %v4633
        %v5084 = vpop.f32.mrb[0].mxu0
        %v5085 = vadd.f32 %v4924, %v5084
        %v5086 = vpop.f32.mrb[0].mxu0
        %v5087 = vpop.f32.mrb[0].mxu0
        %v5088 = vadd.f32 %v4927, %v5087
        %v5089 = vpop.f32.mrb[0].mxu0
        %5090 = vmatprep.mubr.bf16.mxu0 0
        %5091 = vmatmul.mubr.bf16.gmra.mrb[0].mxu0 %v4636
        %v5092 = vpop.f32.mrb[0].mxu0
        %v5093 = vadd.f32 %v4932, %v5092
        %v5094 = vpop.f32.mrb[0].mxu0
        %v5095 = vpop.f32.mrb[0].mxu0
        %v5096 = vadd.f32 %v4935, %v5095
        %v5097 = vpop.f32.mrb[0].mxu0
        %5098 = vmatprep.mubr.bf16.mxu0 0
        %5099 = vmatmul.mubr.bf16.gmra.mrb[0].mxu0 %v4639
        %v5100 = vpop.f32.mrb[0].mxu0
        %v5101 = vadd.f32 %v4940, %v5100
        %v5102 = vpop.f32.mrb[0].mxu0
        %v5103 = vpop.f32.mrb[0].mxu0
        %v5104 = vadd.f32 %v4943, %v5103
        %v5105 = vpop.f32.mrb[0].mxu0
        %5106 = vmatprep.mubr.bf16.mxu0 0
        %5107 = vmatmul.mubr.bf16.gmra.mrb[0].mxu0 %v4642
        %v5108 = vpop.f32.mrb[0].mxu0
        %v5109 = vadd.f32 %v4948, %v5108
        %v5110 = vpop.f32.mrb[0].mxu0
        %v5111 = vpop.f32.mrb[0].mxu0
        %v5112 = vadd.f32 %v4951, %v5111
        %v5113 = vpop.f32.mrb[0].mxu0
        %5114 = vdwg.mxu0
        %5115 = vst [vmem:[%s408] sm:$0xff] %v4989
        %5116 = vst [vmem:[%s408 + $0x8] sm:$0xff] %v4992
        %5117 = vst [vmem:[%s408 + $0x10] sm:$0xff] %v4997
        %5118 = vst [vmem:[%s408 + $0x18] sm:$0xff] %v5000
        %5119 = vst [vmem:[%s408 + $0x20] sm:$0xff] %v5005
        %5120 = vst [vmem:[%s408 + $0x28] sm:$0xff] %v5008
        %5121 = vst [vmem:[%s408 + $0x30] sm:$0xff] %v5013
        %5122 = vst [vmem:[%s408 + $0x38] sm:$0xff] %v5016
        %5123 = vst [vmem:[%s408 + $0x40] sm:$0xff] %v5021
        %5124 = vst [vmem:[%s408 + $0x48] sm:$0xff] %v5024
        %5125 = vst [vmem:[%s408 + $0x50] sm:$0xff] %v5029
        %5126 = vst [vmem:[%s408 + $0x58] sm:$0xff] %v5032
        %5127 = vst [vmem:[%s408 + $0x60] sm:$0xff] %v5037
        %5128 = vst [vmem:[%s408 + $0x68] sm:$0xff] %v5040
        %5129 = vst [vmem:[%s408 + $0x70] sm:$0xff] %v5045
        %5130 = vst [vmem:[%s408 + $0x78] sm:$0xff] %v5048
        %5131 = vst [vmem:[%s408 + $0x80] sm:$0xff] %v5053
        %5132 = vst [vmem:[%s408 + $0x88] sm:$0xff] %v5056
        %5133 = vst [vmem:[%s408 + $0x90] sm:$0xff] %v5061
        %5134 = vst [vmem:[%s408 + $0x98] sm:$0xff] %v5064
        %5135 = vst [vmem:[%s408 + $0xa0] sm:$0xff] %v5069
        %5136 = vst [vmem:[%s408 + $0xa8] sm:$0xff] %v5072
        %5137 = vst [vmem:[%s408 + $0xb0] sm:$0xff] %v5077
        %5138 = vst [vmem:[%s408 + $0xb8] sm:$0xff] %v5080
        %5139 = vst [vmem:[%s408 + $0xc0] sm:$0xff] %v5085
        %5140 = vst [vmem:[%s408 + $0xc8] sm:$0xff] %v5088
        %5141 = vst [vmem:[%s408 + $0xd0] sm:$0xff] %v5093
        %5142 = vst [vmem:[%s408 + $0xd8] sm:$0xff] %v5096
        %5143 = vst [vmem:[%s408 + $0xe0] sm:$0xff] %v5101
        %5144 = vst [vmem:[%s408 + $0xe8] sm:$0xff] %v5104
        %5145 = vst [vmem:[%s408 + $0xf0] sm:$0xff] %v5109
        %5146 = vst [vmem:[%s408 + $0xf8] sm:$0xff] %v5112
        %s5147 = sand.u32 %s230, 1
        %s5148 = scalar_lea.sflag [#allocation5], %s5147
        %s5149 = sand.u32 %s230, 1
        %s5150 = smul.addr %s5149, 256
        %s5151 = scalar_lea.vmem [#allocation12], %s5150
        // Predicated region
        $region77: #{tpu_custom_call.1} parent=55 // pred_check
          %p5152 = pneg %p240
        $region78: #{tpu_custom_call.1} parent=55 // pred_check_branch
          %5154 = sbr.rel (%p5152) target = $region80
        $region79: #{tpu_custom_call.1} parent=55 // pred_region
          %s5156 = ssub.s32 4096, 4096
          %5157 = vsyncadd %s5148, %s5156
          %s5158 = smul.addr %s28, 32
          %s5159 = smul.addr %s5158, 128
          %s5160 = scalar_lea.hbm %s9, %s5159
          %s5161 = sshll.u32 %s5151, 4
          %s5162 = int_to_ptr.vmem [resolvable:$true] %s5161
          %5167 = dma.vmem_to_hbm [thread:$0]  %s5162, 4096, %s5160, %s5148, 128, 128, 8
        $region80: #{tpu_custom_call.1} parent=55 // pred_fallthru
          _
      $region56: #{tpu_custom_call.1} parent=5 // pred_fallthru
        _
      %p5168 = scmp.le.s32.totalorder 2, %s23
      // Predicated region
      $region81: #{tpu_custom_call.1} parent=5 // pred_check
        %p5169 = pneg %p5168
      $region82: #{tpu_custom_call.1} parent=5 // pred_check_branch
        %5171 = sbr.rel (%p5169) target = $region84
      $region83: #{tpu_custom_call.1} parent=5 // pred_region
        %s5172 = ssub.s32 %s23, 2
        // Predicated region
        $region85: #{tpu_custom_call.1} parent=83 // pred_check
          %p5173 = pneg %p246
        $region86: #{tpu_custom_call.1} parent=83 // pred_check_branch
          %5175 = sbr.rel (%p5173) target = $region88
        $region87: #{tpu_custom_call.1} parent=83 // pred_region
          %s5176 = sand.u32 %s231, 1
          %s5177 = scalar_lea.sflag [#allocation5], %s5176
          %s5178 = sand.u32 %s231, 1
          %s5179 = smul.addr %s5178, 256
          %s5180 = scalar_lea.vmem [#allocation12], %s5179
          %5181 = dma.done %s5177, 4096
        $region88: #{tpu_custom_call.1} parent=83 // pred_fallthru
          _
      $region84: #{tpu_custom_call.1} parent=5 // pred_fallthru
        _
    $region6: #{tpu_custom_call.1} parent=1 // loop_footer
      %s27 = sadd.s32 1, %s23
    $region7: #{tpu_custom_call.1} parent=1 // loop_footer_branch
      %22 = sbr.rel target = $region3
    $region8: #{tpu_custom_call.1} parent=1 // loop_exit
      _
    %5182 = vsyncpa [#allocation4], 1
    %s5183 = scalar_lea.sflag [#allocation4], 1
    %5184 = vsyncpa %s5183, 1
    %5185 = vsyncpa [#allocation7], 1
    %5186 = vsyncpa [#allocation10], 1
    %5187 = vsyncpa [#allocation5], 1
    %s5188 = scalar_lea.sflag [#allocation5], 1
    %5189 = vsyncpa %s5188, 1

</llo_original>
